<compile_context>
chip_gen: v7x
topology: tpu7x:2x2x1
jax: 0.10.0
libtpu: 0.0.40
codegen_flags: <defaults>
</compile_context>

<pallas_src>
import functools

import jax
import jax.numpy as jnp
from jax.experimental import pallas as pl
from jax.experimental.pallas import tpu as pltpu

_VMEM = pl.BlockSpec(memory_space=pltpu.MemorySpace.VMEM)
_ANY = pl.BlockSpec(memory_space=pl.ANY)


def _round_up(a, b):
    return ((a + b - 1) // b) * b


def _fused_film_kernel(*refs, num_layers, cps, real_n, n_pad, blk, n_blk):
    """refs = (x, adjT_hbm, deg, inv_deg,
               [W_cat_l, b_cat_l] * num_layers,
               [bn_w_l, bn_b_l] * (num_layers - 1),
               o_ref, adj_buf, dma_sem, hmsg_ref, acc_ref)"""
    n_in = 4 + 2 * num_layers + 2 * (num_layers - 1)
    x_ref, adj_hbm, deg_ref, inv_deg_ref = refs[0:4]
    layer_refs = refs[4:4 + 2 * num_layers]
    bn_refs = refs[4 + 2 * num_layers:n_in]
    o_ref, adj_buf, dma_sem, hmsg_ref, acc_ref = refs[n_in:]

    def fetch(s, slot):
        # adjT_hbm is source-major: row block = (blk sources, n_pad destinations).
        pltpu.make_async_copy(adj_hbm.at[pl.ds(s * blk, blk), :],
                              adj_buf.at[slot], dma_sem.at[slot]).start()

    def wait(slot):
        pltpu.make_async_copy(adj_hbm.at[pl.ds(0, blk), :],
                              adj_buf.at[slot], dma_sem.at[slot]).wait()

    deg = deg_ref[...]                      # (n_pad, 1) f32, in-degree
    inv_deg = inv_deg_ref[...]              # (n_pad, 1) f32, 1/max(deg,1)
    row_ids = jax.lax.broadcasted_iota(jnp.int32, (n_pad, 1), 0)
    valid = row_ids < real_n

    h = x_ref[...]                          # (n_pad, cin_pad0) bf16, padded zeros
    for l in range(num_layers):
        cp = cps[l]                         # 128-aligned section width of layer l
        last = (l == num_layers - 1)

        fetch(0, 0)                         # overlap first adj-block DMA with matmul

        # One fused, lane-aligned MXU matmul for all six projections of this layer.
        W = layer_refs[2 * l][...]          # (cin_pad, 6*cp) bf16
        b = layer_refs[2 * l + 1][...]      # (1, 6*cp) f32
        fused = jnp.dot(h.astype(jnp.bfloat16), W,
                        preferred_element_type=jnp.float32) + b
        h_msg = fused[:, 0 * cp:1 * cp]
        beta = fused[:, 1 * cp:2 * cp]
        gamma = fused[:, 2 * cp:3 * cp]
        skip_h = fused[:, 3 * cp:4 * cp]
        beta_s = fused[:, 4 * cp:5 * cp]
        gamma_s = fused[:, 5 * cp:6 * cp]

        pre = gamma_s * skip_h + beta_s
        skip = pre if last else jnp.maximum(pre, 0.0)

        # Stash h_msg in VMEM scratch so source blocks can be sliced dynamically.
        hmsg_ref[:, 0:cp] = h_msg
        acc_ref[...] = jnp.zeros_like(acc_ref)

        if last:
            # act = identity: linear aggregation collapses to a streamed MXU matmul:
            #   sum_j adjT[j,i] h_msg[j]  ==  (adj @ h_msg)_i
            @pl.loop(0, n_blk)
            def _(s):
                slot = s % 2
                wait(slot)

                @pl.when(s + 1 < n_blk)
                def _():
                    fetch(s + 1, 1 - slot)

                j0 = pl.multiple_of(s * blk, blk)
                adjT_blk = adj_buf[slot]                               # (blk, n_pad) bf16
                h_blk = hmsg_ref[pl.ds(j0, blk), 0:cp].astype(jnp.bfloat16)
                acc_ref[:, 0:cp] += jax.lax.dot_general(
                    adjT_blk, h_blk,
                    dimension_numbers=(((0,), (0,)), ((), ())),
                    preferred_element_type=jnp.float32)

            agg = acc_ref[:, 0:cp]
            acc = gamma * agg + deg * beta
        else:
            # ReLU layers: streamed source-block message loop (VPU, f32).
            @pl.loop(0, n_blk)
            def _(s):
                slot = s % 2
                wait(slot)

                @pl.when(s + 1 < n_blk)
                def _():
                    fetch(s + 1, 1 - slot)

                j0 = pl.multiple_of(s * blk, blk)
                adjT_blk = adj_buf[slot].astype(jnp.float32)           # (blk, n_pad)
                h_blk = hmsg_ref[pl.ds(j0, blk), 0:cp]                 # (blk, cp) f32
                msgs = jnp.maximum(
                    gamma[None, :, :] * h_blk[:, None, :] + beta[None, :, :],
                    0.0)                                               # (blk, n_pad, cp)
                acc_ref[:, 0:cp] += jnp.sum(adjT_blk[:, :, None] * msgs, axis=0)

            acc = acc_ref[:, 0:cp]

        # Mean aggregation (zero in-degree nodes get 0) + skip connection.
        h = skip + acc * inv_deg

        if not last:
            # BatchNorm1d (training mode, biased variance, eps=1e-5), fused in.
            bn_w = bn_refs[2 * l][...]
            bn_b = bn_refs[2 * l + 1][...]
            mean = jnp.sum(h, axis=0, keepdims=True) * (1.0 / real_n)
            d = h - mean
            if n_pad != real_n:
                d = jnp.where(valid, d, 0.0)
            var = jnp.sum(d * d, axis=0, keepdims=True) * (1.0 / real_n)
            h = d * jax.lax.rsqrt(var + 1e-5) * bn_w + bn_b
            if n_pad != real_n:
                h = jnp.where(valid, h, 0.0)   # keep padded rows exactly zero

    o_ref[...] = h                            # lane-dense (n_pad, cps[-1]) slab


def film_forward(x, edge_index, conv_params, bn_params):
    n, in_c = x.shape
    num_layers = len(conv_params)
    c_outs = [p["w_lin"].shape[1] for p in conv_params]
    c_ins = [in_c] + c_outs[:-1]
    cps = tuple(_round_up(c, 128) for c in c_outs)         # lane-aligned sections
    cin_pads = tuple(_round_up(c, 128) for c in c_ins)
    cp_max = max(cps)

    # Source-block size: bound the (blk, n_pad, cp) message intermediate to ~2 MiB.
    n8 = _round_up(n, 8)
    blk = (2 * 2**20) // max(1, n8 * cp_max * 4)
    blk = max(8, min(128, (blk // 8) * 8))
    blk = min(blk, n8)
    n_pad = _round_up(n, blk)
    n_blk = n_pad // blk

    src, dst = edge_index[0], edge_index[1]
    # Source-major dense adjacency (glue): adjT[j, i] = #edges j -> i.
    adjT = jnp.zeros((n_pad, n_pad), jnp.float32).at[src, dst].add(1.0)
    deg = jnp.sum(adjT, axis=0)[:, None]                    # in-degree, (n_pad, 1)
    inv_deg = 1.0 / jnp.maximum(deg, 1.0)
    adjT = adjT.astype(jnp.bfloat16)     # small integer multiplicities -> exact

    x_pad = jnp.zeros((n_pad, cin_pads[0]), jnp.float32).at[:n, :in_c].set(x)
    x_pad = x_pad.astype(jnp.bfloat16)

    args = [x_pad, adjT, deg, inv_deg]
    for l, p in enumerate(conv_params):
        ci, co, cip, cp = c_ins[l], c_outs[l], cin_pads[l], cps[l]
        w_cat = jnp.zeros((cip, 6 * cp), jnp.float32)
        for k, wk in enumerate([p["w_lin"], p["w_beta"], p["w_gamma"],
                                p["w_lin_skip"], p["w_beta_s"], p["w_gamma_s"]]):
            w_cat = w_cat.at[:ci, k * cp:k * cp + co].set(wk)
        b_cat = jnp.zeros((1, 6 * cp), jnp.float32)
        b_cat = b_cat.at[:, 1 * cp:1 * cp + co].set(p["b_beta"])
        b_cat = b_cat.at[:, 2 * cp:2 * cp + co].set(p["b_gamma"])
        args += [w_cat.astype(jnp.bfloat16), b_cat]
    for l, bn in enumerate(bn_params):
        cp, co = cps[l], c_outs[l]
        bw = jnp.ones((1, cp), jnp.float32).at[:, :co].set(bn["weight"])
        bb = jnp.zeros((1, cp), jnp.float32).at[:, :co].set(bn["bias"])
        args += [bw, bb]

    # Explicit scoped-VMEM budget (default is only 16/32 MiB on v5e / v6e,v7x).
    vmem_param = sum(int(a.size) * a.dtype.itemsize
                     for i, a in enumerate(args) if i != 1)   # adjT stays in HBM
    vmem_scratch = 2 * blk * n_pad * 2 + 2 * n_pad * cp_max * 4
    vmem_work = (10 * n_pad * cp_max * 4
                 + 2 * blk * n_pad * cp_max * 4
                 + n_pad * cps[-1] * 4)
    vmem_limit = int(min(56 * 2**20,
                         max(16 * 2**20,
                             2 * (vmem_param + vmem_scratch + vmem_work))))

    kernel = functools.partial(
        _fused_film_kernel, num_layers=num_layers, cps=cps,
        real_n=n, n_pad=n_pad, blk=blk, n_blk=n_blk)

    in_specs = [_VMEM, _ANY, _VMEM, _VMEM] + [_VMEM] * (len(args) - 4)
    out = pl.pallas_call(
        kernel,
        out_shape=jax.ShapeDtypeStruct((n_pad, cps[-1]), jnp.float32),
        in_specs=in_specs,
        out_specs=_VMEM,
        scratch_shapes=[
            pltpu.VMEM((2, blk, n_pad), jnp.bfloat16),   # adjacency double buffer
            pltpu.SemaphoreType.DMA((2,)),
            pltpu.VMEM((n_pad, cp_max), jnp.float32),    # resident h_msg (dyn-sliced)
            pltpu.VMEM((n_pad, cp_max), jnp.float32),    # aggregation accumulator
        ],
        compiler_params=pltpu.CompilerParams(vmem_limit_bytes=vmem_limit),
    )(*args)
    return out[:n, :c_outs[-1]]


def init_params(key, in_c, hid, out_c, num_layers):
    dims = [(in_c, hid)] + [(hid, hid)] * (num_layers - 2) + [(hid, out_c)]
    conv_params = []
    for (ci, co) in dims:
        key, *ks = jax.random.split(key, 9)
        s = 1.0 / jnp.sqrt(jnp.float32(ci))
        u = lambda k, shape: jax.random.uniform(k, shape, jnp.float32, -s, s)
        conv_params.append(dict(
            w_lin=u(ks[0], (ci, co)),
            w_beta=u(ks[1], (ci, co)), w_gamma=u(ks[2], (ci, co)),
            b_beta=u(ks[3], (1, co)), b_gamma=u(ks[4], (1, co)),
            w_lin_skip=u(ks[5], (ci, co)),
            w_beta_s=u(ks[6], (ci, co)), w_gamma_s=u(ks[7], (ci, co)),
        ))
    bn_params = [dict(weight=jnp.ones((1, hid), jnp.float32),
                      bias=jnp.zeros((1, hid), jnp.float32))
                 for _ in range(num_layers - 1)]
    return conv_params, bn_params


def _film_reference(x, edge_index, conv_params, bn_params):
    """Pure-JAX f32 reference (no Pallas) for numerical validation."""
    n = x.shape[0]
    src, dst = edge_index[0], edge_index[1]
    adj = jnp.zeros((n, n), jnp.float32).at[dst, src].add(1.0)
    inv_deg = 1.0 / jnp.maximum(jnp.sum(adj, axis=1, keepdims=True), 1.0)
    h = x
    num_layers = len(conv_params)
    for l, p in enumerate(conv_params):
        act = (lambda v: jnp.maximum(v, 0.0)) if l < num_layers - 1 else (lambda v: v)
        beta_s = h @ p["w_beta_s"]
        gamma_s = h @ p["w_gamma_s"]
        skip = act(gamma_s * (h @ p["w_lin_skip"]) + beta_s)
        hm = h @ p["w_lin"]
        beta = h @ p["w_beta"] + p["b_beta"]
        gamma = h @ p["w_gamma"] + p["b_gamma"]
        msgs = act(gamma[:, None, :] * hm[None, :, :] + beta[:, None, :])
        agg = jnp.sum(adj[:, :, None] * msgs, axis=1) * inv_deg
        h = skip + agg
        if l < num_layers - 1:
            bn = bn_params[l]
            mean = jnp.mean(h, axis=0, keepdims=True)
            var = jnp.mean((h - mean) ** 2, axis=0, keepdims=True)
            h = (h - mean) * jax.lax.rsqrt(var + 1e-5) * bn["weight"] + bn["bias"]
    return h


if __name__ == "__main__":
    key = jax.random.PRNGKey(0)
    N, E = 16, 48
    in_c, hid, out_c, num_layers = 8, 32, 4, 3

    kx, ke, kp = jax.random.split(key, 3)
    x = jax.random.normal(kx, (N, in_c), jnp.float32)
    edge_index = jax.random.randint(ke, (2, E), 0, N, dtype=jnp.int32)

    conv_params, bn_params = init_params(kp, in_c, hid, out_c, num_layers)

    out = film_forward(x, edge_index, conv_params, bn_params)
    jax.block_until_ready(out)
    assert out.shape == (N, out_c) and out.dtype == jnp.float32

    # bf16 MXU operands vs f32 reference -> compare with a scale-aware tolerance.
    ref = _film_reference(x, edge_index, conv_params, bn_params)
    err = float(jnp.max(jnp.abs(out - ref)) / (jnp.max(jnp.abs(ref)) + 1e-6))
    assert err < 3e-2, f"normalized max-abs error too large: {err}"

    print("KERNEL_OK")
</pallas_src>

<mosaic_0001>
module attributes {stable_mosaic.version = 11 : i64} {
  func.func @_fused_film_kernel(%arg0: memref<16x128xbf16, #tpu.memory_space<vmem>>, %arg1: memref<16x16xbf16, #tpu.memory_space<any>>, %arg2: memref<16x1xf32, #tpu.memory_space<vmem>>, %arg3: memref<16x1xf32, #tpu.memory_space<vmem>>, %arg4: memref<128x768xbf16, #tpu.memory_space<vmem>>, %arg5: memref<1x768xf32, #tpu.memory_space<vmem>>, %arg6: memref<128x768xbf16, #tpu.memory_space<vmem>>, %arg7: memref<1x768xf32, #tpu.memory_space<vmem>>, %arg8: memref<128x768xbf16, #tpu.memory_space<vmem>>, %arg9: memref<1x768xf32, #tpu.memory_space<vmem>>, %arg10: memref<1x128xf32, #tpu.memory_space<vmem>>, %arg11: memref<1x128xf32, #tpu.memory_space<vmem>>, %arg12: memref<1x128xf32, #tpu.memory_space<vmem>>, %arg13: memref<1x128xf32, #tpu.memory_space<vmem>>, %arg14: memref<16x128xf32, #tpu.memory_space<vmem>>, %arg15: memref<2x16x16xbf16, #tpu.memory_space<vmem>>, %arg16: memref<2x!tpu.dma_semaphore, #tpu.memory_space<semaphore_mem>>, %arg17: memref<16x128xf32, #tpu.memory_space<vmem>>, %arg18: memref<16x128xf32, #tpu.memory_space<vmem>>) attributes {dimension_semantics = [], scalar_prefetch = 0 : i64, scratch_operands = 4 : i64, tpu.core_type = #tpu.core_type<tc>} {
    %c0 = arith.constant 0 : index
    %c0_0 = arith.constant 0 : index
    %0 = vector.load %arg2[%c0, %c0_0] : memref<16x1xf32, #tpu.memory_space<vmem>>, vector<16x1xf32>
    %c0_1 = arith.constant 0 : index
    %c0_2 = arith.constant 0 : index
    %1 = vector.load %arg3[%c0_1, %c0_2] : memref<16x1xf32, #tpu.memory_space<vmem>>, vector<16x1xf32>
    %c0_3 = arith.constant 0 : index
    %c0_4 = arith.constant 0 : index
    %2 = vector.load %arg0[%c0_3, %c0_4] : memref<16x128xbf16, #tpu.memory_space<vmem>>, vector<16x128xbf16>
    %c0_i32 = arith.constant 0 : i32
    %c0_i32_5 = arith.constant 0 : i32
    %c0_i32_6 = arith.constant 0 : i32
    %c0_i32_7 = arith.constant 0 : i32
    %3 = tpu.memref_slice %arg1[%c0_i32_6, %c0_i32_7] : memref<16x16xbf16, #tpu.memory_space<any>> -> memref<16x16xbf16, #tpu.memory_space<any>>
    %c0_i32_8 = arith.constant 0 : i32
    %c0_i32_9 = arith.constant 0 : i32
    %4 = tpu.memref_slice %arg15[%c0_i32, %c0_i32_8, %c0_i32_9] : memref<2x16x16xbf16, #tpu.memory_space<vmem>> -> memref<1x16x16xbf16, #tpu.memory_space<vmem>>
    %5 = tpu.memref_squeeze %4 : memref<1x16x16xbf16, #tpu.memory_space<vmem>> -> memref<16x16xbf16, #tpu.memory_space<vmem>>
    %6 = tpu.memref_slice %arg16[%c0_i32_5] : memref<2x!tpu.dma_semaphore, #tpu.memory_space<semaphore_mem>> -> memref<1x!tpu.dma_semaphore, #tpu.memory_space<semaphore_mem>>
    %7 = tpu.memref_squeeze %6 : memref<1x!tpu.dma_semaphore, #tpu.memory_space<semaphore_mem>> -> memref<!tpu.dma_semaphore, #tpu.memory_space<semaphore_mem>>
    tpu.enqueue_dma source(%3 : memref<16x16xbf16, #tpu.memory_space<any>>) target(%5 : memref<16x16xbf16, #tpu.memory_space<vmem>>) target_semaphore(%7 : memref<!tpu.dma_semaphore, #tpu.memory_space<semaphore_mem>>)
    %c0_10 = arith.constant 0 : index
    %c0_11 = arith.constant 0 : index
    %8 = vector.load %arg4[%c0_10, %c0_11] : memref<128x768xbf16, #tpu.memory_space<vmem>>, vector<128x768xbf16>
    %c0_12 = arith.constant 0 : index
    %c0_13 = arith.constant 0 : index
    %9 = vector.load %arg5[%c0_12, %c0_13] : memref<1x768xf32, #tpu.memory_space<vmem>>, vector<1x768xf32>
    %cst = arith.constant dense<0.000000e+00> : vector<16x768xf32>
    %10 = tpu.matmul %2, %8, %cst {dimension_numbers = #tpu.dot_dimension_numbers<[1], [0], [0], [1], [0, 0, 1, 1], [], []>} : vector<16x128xbf16>, vector<128x768xbf16>, vector<16x768xf32> -> vector<16x768xf32>
    %11 = vector.broadcast %9 : vector<1x768xf32> to vector<16x768xf32>
    %12 = arith.addf %10, %11 : vector<16x768xf32>
    %13 = vector.extract_strided_slice %12 {offsets = [0, 0], sizes = [16, 128], strides = [1, 1]} : vector<16x768xf32> to vector<16x128xf32>
    %14 = vector.extract_strided_slice %12 {offsets = [0, 128], sizes = [16, 128], strides = [1, 1]} : vector<16x768xf32> to vector<16x128xf32>
    %15 = vector.extract_strided_slice %12 {offsets = [0, 256], sizes = [16, 128], strides = [1, 1]} : vector<16x768xf32> to vector<16x128xf32>
    %16 = vector.extract_strided_slice %12 {offsets = [0, 384], sizes = [16, 128], strides = [1, 1]} : vector<16x768xf32> to vector<16x128xf32>
    %17 = vector.extract_strided_slice %12 {offsets = [0, 512], sizes = [16, 128], strides = [1, 1]} : vector<16x768xf32> to vector<16x128xf32>
    %18 = vector.extract_strided_slice %12 {offsets = [0, 640], sizes = [16, 128], strides = [1, 1]} : vector<16x768xf32> to vector<16x128xf32>
    %19 = arith.mulf %18, %16 : vector<16x128xf32>
    %20 = arith.addf %19, %17 : vector<16x128xf32>
    %cst_14 = arith.constant 0.000000e+00 : f32
    %21 = vector.broadcast %cst_14 : f32 to vector<16x128xf32>
    %22 = arith.maximumf %20, %21 : vector<16x128xf32>
    %c0_15 = arith.constant 0 : index
    %c0_16 = arith.constant 0 : index
    %23 = vector.load %arg17[%c0_15, %c0_16] : memref<16x128xf32, #tpu.memory_space<vmem>>, vector<16x128xf32>
    tpu.vector_store %arg17[%c0_15, %c0_16], %13 {strides = array<i32>} : memref<16x128xf32, #tpu.memory_space<vmem>>, vector<16x128xf32>,
    %cst_17 = arith.constant 0.000000e+00 : f32
    %24 = vector.broadcast %cst_17 : f32 to vector<16x128xf32>
    %c0_18 = arith.constant 0 : index
    %c0_19 = arith.constant 0 : index
    %25 = vector.load %arg18[%c0_18, %c0_19] : memref<16x128xf32, #tpu.memory_space<vmem>>, vector<16x128xf32>
    tpu.vector_store %arg18[%c0_18, %c0_19], %24 {strides = array<i32>} : memref<16x128xf32, #tpu.memory_space<vmem>>, vector<16x128xf32>,
    %c0_i32_20 = arith.constant 0 : i32
    %c1_i32 = arith.constant 1 : i32
    %26 = arith.muli %c0_i32_20, %c1_i32 : i32
    %c0_i32_21 = arith.constant 0 : i32
    %27 = arith.addi %c0_i32_21, %26 : i32
    %c2_i32 = arith.constant 2 : i32
    %c0_i32_22 = arith.constant 0 : i32
    %28 = arith.cmpi eq, %c2_i32, %c0_i32_22 : i32
    %c1_i32_23 = arith.constant 1 : i32
    %29 = arith.select %28, %c1_i32_23, %c2_i32 : i32
    %30 = arith.remsi %27, %29 : i32
    %c0_i32_24 = arith.constant 0 : i32
    %31 = arith.cmpi ne, %30, %c0_i32_24 : i32
    %c0_i32_25 = arith.constant 0 : i32
    %32 = arith.cmpi slt, %30, %c0_i32_25 : i32
    %c0_i32_26 = arith.constant 0 : i32
    %33 = arith.cmpi slt, %29, %c0_i32_26 : i32
    %34 = arith.xori %32, %33 : i1
    %35 = arith.andi %34, %31 : i1
    %36 = arith.addi %30, %29 : i32
    %37 = arith.select %35, %36, %30 : i32
    %c0_i32_27 = arith.constant 0 : i32
    %c0_i32_28 = arith.constant 0 : i32
    %38 = tpu.memref_slice %arg1[%c0_i32_27, %c0_i32_28] : memref<16x16xbf16, #tpu.memory_space<any>> -> memref<16x16xbf16, #tpu.memory_space<any>>
    %c0_i32_29 = arith.constant 0 : i32
    %c0_i32_30 = arith.constant 0 : i32
    %39 = tpu.memref_slice %arg15[%37, %c0_i32_29, %c0_i32_30] : memref<2x16x16xbf16, #tpu.memory_space<vmem>> -> memref<1x16x16xbf16, #tpu.memory_space<vmem>>
    %40 = tpu.memref_squeeze %39 : memref<1x16x16xbf16, #tpu.memory_space<vmem>> -> memref<16x16xbf16, #tpu.memory_space<vmem>>
    %41 = tpu.memref_slice %arg16[%37] : memref<2x!tpu.dma_semaphore, #tpu.memory_space<semaphore_mem>> -> memref<1x!tpu.dma_semaphore, #tpu.memory_space<semaphore_mem>>
    %42 = tpu.memref_squeeze %41 : memref<1x!tpu.dma_semaphore, #tpu.memory_space<semaphore_mem>> -> memref<!tpu.dma_semaphore, #tpu.memory_space<semaphore_mem>>
    tpu.wait_dma2 semaphore(%42 : memref<!tpu.dma_semaphore, #tpu.memory_space<semaphore_mem>>) src(%38 : memref<16x16xbf16, #tpu.memory_space<any>>) dst(%40 : memref<16x16xbf16, #tpu.memory_space<vmem>>)
    %c1_i32_31 = arith.constant 1 : i32
    %43 = arith.addi %27, %c1_i32_31 : i32
    %c1_i32_32 = arith.constant 1 : i32
    %44 = arith.cmpi slt, %43, %c1_i32_32 : i32
    %45 = arith.extui %44 : i1 to i32
    %c0_i32_33 = arith.constant 0 : i32
    %46 = arith.cmpi ne, %45, %c0_i32_33 : i32
    scf.if %46 {
      %c1_i32_156 = arith.constant 1 : i32
      %258 = arith.addi %27, %c1_i32_156 : i32
      %c1_i32_157 = arith.constant 1 : i32
      %259 = arith.subi %c1_i32_157, %37 : i32
      %c16_i32_158 = arith.constant 16 : i32
      %260 = arith.muli %258, %c16_i32_158 : i32
      %c0_i32_159 = arith.constant 0 : i32
      %261 = tpu.memref_slice %arg1[%260, %c0_i32_159] : memref<16x16xbf16, #tpu.memory_space<any>> -> memref<16x16xbf16, #tpu.memory_space<any>>
      %c0_i32_160 = arith.constant 0 : i32
      %c0_i32_161 = arith.constant 0 : i32
      %262 = tpu.memref_slice %arg15[%259, %c0_i32_160, %c0_i32_161] : memref<2x16x16xbf16, #tpu.memory_space<vmem>> -> memref<1x16x16xbf16, #tpu.memory_space<vmem>>
      %263 = tpu.memref_squeeze %262 : memref<1x16x16xbf16, #tpu.memory_space<vmem>> -> memref<16x16xbf16, #tpu.memory_space<vmem>>
      %264 = tpu.memref_slice %arg16[%259] : memref<2x!tpu.dma_semaphore, #tpu.memory_space<semaphore_mem>> -> memref<1x!tpu.dma_semaphore, #tpu.memory_space<semaphore_mem>>
      %265 = tpu.memref_squeeze %264 : memref<1x!tpu.dma_semaphore, #tpu.memory_space<semaphore_mem>> -> memref<!tpu.dma_semaphore, #tpu.memory_space<semaphore_mem>>
      tpu.enqueue_dma source(%261 : memref<16x16xbf16, #tpu.memory_space<any>>) target(%263 : memref<16x16xbf16, #tpu.memory_space<vmem>>) target_semaphore(%265 : memref<!tpu.dma_semaphore, #tpu.memory_space<semaphore_mem>>)
    } else {
    }
    %c16_i32 = arith.constant 16 : i32
    %47 = arith.muli %27, %c16_i32 : i32
    %48 = tpu.assume_multiple %47, 16 : i32
    %49 = arith.index_cast %37 : i32 to index
    %c0_34 = arith.constant 0 : index
    %c0_35 = arith.constant 0 : index
    %50 = vector.load %arg15[%49, %c0_34, %c0_35] : memref<2x16x16xbf16, #tpu.memory_space<vmem>>, vector<1x16x16xbf16>
    %51 = vector.shape_cast %50 : vector<1x16x16xbf16> to vector<16x16xbf16>
    %52 = arith.extf %51 : vector<16x16xbf16> to vector<16x16xf32>
    %53 = arith.index_cast %48 : i32 to index
    %c0_36 = arith.constant 0 : index
    %54 = vector.load %arg17[%53, %c0_36] : memref<16x128xf32, #tpu.memory_space<vmem>>, vector<16x128xf32>
    %55 = vector.shape_cast %15 : vector<16x128xf32> to vector<1x16x128xf32>
    %56 = vector.shape_cast %54 : vector<16x128xf32> to vector<16x1x128xf32>
    %57 = vector.broadcast %55 : vector<1x16x128xf32> to vector<16x16x128xf32>
    %58 = vector.broadcast %56 : vector<16x1x128xf32> to vector<16x16x128xf32>
    %59 = arith.mulf %57, %58 : vector<16x16x128xf32>
    %60 = vector.shape_cast %14 : vector<16x128xf32> to vector<1x16x128xf32>
    %61 = vector.broadcast %60 : vector<1x16x128xf32> to vector<16x16x128xf32>
    %62 = arith.addf %59, %61 : vector<16x16x128xf32>
    %cst_37 = arith.constant 0.000000e+00 : f32
    %63 = vector.broadcast %cst_37 : f32 to vector<16x16x128xf32>
    %64 = arith.maximumf %62, %63 : vector<16x16x128xf32>
    %c0_38 = arith.constant 0 : index
    %c0_39 = arith.constant 0 : index
    %65 = vector.load %arg18[%c0_38, %c0_39] : memref<16x128xf32, #tpu.memory_space<vmem>>, vector<16x128xf32>
    %66 = vector.shape_cast %52 : vector<16x16xf32> to vector<16x16x1xf32>
    %67 = vector.broadcast %66 : vector<16x16x1xf32> to vector<16x16x128xf32>
    %68 = arith.mulf %67, %64 : vector<16x16x128xf32>
    %cst_40 = arith.constant dense<0.000000e+00> : vector<16x128xf32>
    %69 = vector.multi_reduction <add>, %68, %cst_40 [0] : vector<16x16x128xf32> to vector<16x128xf32>
    %70 = arith.addf %65, %69 : vector<16x128xf32>
    %c0_41 = arith.constant 0 : index
    %c0_42 = arith.constant 0 : index
    %71 = vector.load %arg18[%c0_41, %c0_42] : memref<16x128xf32, #tpu.memory_space<vmem>>, vector<16x128xf32>
    tpu.vector_store %arg18[%c0_41, %c0_42], %70 {strides = array<i32>} : memref<16x128xf32, #tpu.memory_space<vmem>>, vector<16x128xf32>,
    %c1_i32_43 = arith.constant 1 : i32
    %c0_44 = arith.constant 0 : index
    %c0_45 = arith.constant 0 : index
    %72 = vector.load %arg18[%c0_44, %c0_45] : memref<16x128xf32, #tpu.memory_space<vmem>>, vector<16x128xf32>
    %73 = vector.broadcast %1 : vector<16x1xf32> to vector<16x128xf32>
    %74 = arith.mulf %72, %73 : vector<16x128xf32>
    %75 = arith.addf %22, %74 : vector<16x128xf32>
    %c0_46 = arith.constant 0 : index
    %c0_47 = arith.constant 0 : index
    %76 = vector.load %arg10[%c0_46, %c0_47] : memref<1x128xf32, #tpu.memory_space<vmem>>, vector<1x128xf32>
    %c0_48 = arith.constant 0 : index
    %c0_49 = arith.constant 0 : index
    %77 = vector.load %arg11[%c0_48, %c0_49] : memref<1x128xf32, #tpu.memory_space<vmem>>, vector<1x128xf32>
    %cst_50 = arith.constant dense<0.000000e+00> : vector<128xf32>
    %78 = vector.multi_reduction <add>, %75, %cst_50 [0] : vector<16x128xf32> to vector<128xf32>
    %79 = vector.shape_cast %78 : vector<128xf32> to vector<1x128xf32>
    %cst_51 = arith.constant 6.250000e-02 : f32
    %80 = vector.broadcast %cst_51 : f32 to vector<1x128xf32>
    %81 = arith.mulf %79, %80 : vector<1x128xf32>
    %82 = vector.broadcast %81 : vector<1x128xf32> to vector<16x128xf32>
    %83 = arith.subf %75, %82 : vector<16x128xf32>
    %84 = arith.mulf %83, %83 : vector<16x128xf32>
    %cst_52 = arith.constant dense<0.000000e+00> : vector<128xf32>
    %85 = vector.multi_reduction <add>, %84, %cst_52 [0] : vector<16x128xf32> to vector<128xf32>
    %86 = vector.shape_cast %85 : vector<128xf32> to vector<1x128xf32>
    %cst_53 = arith.constant 6.250000e-02 : f32
    %87 = vector.broadcast %cst_53 : f32 to vector<1x128xf32>
    %88 = arith.mulf %86, %87 : vector<1x128xf32>
    %cst_54 = arith.constant 9.99999974E-6 : f32
    %89 = vector.broadcast %cst_54 : f32 to vector<1x128xf32>
    %90 = arith.addf %88, %89 : vector<1x128xf32>
    %91 = math.rsqrt %90 : vector<1x128xf32>
    %92 = vector.broadcast %91 : vector<1x128xf32> to vector<16x128xf32>
    %93 = arith.mulf %83, %92 : vector<16x128xf32>
    %94 = vector.broadcast %76 : vector<1x128xf32> to vector<16x128xf32>
    %95 = arith.mulf %93, %94 : vector<16x128xf32>
    %96 = vector.broadcast %77 : vector<1x128xf32> to vector<16x128xf32>
    %97 = arith.addf %95, %96 : vector<16x128xf32>
    %c0_i32_55 = arith.constant 0 : i32
    %c0_i32_56 = arith.constant 0 : i32
    %c0_i32_57 = arith.constant 0 : i32
    %c0_i32_58 = arith.constant 0 : i32
    %98 = tpu.memref_slice %arg1[%c0_i32_57, %c0_i32_58] : memref<16x16xbf16, #tpu.memory_space<any>> -> memref<16x16xbf16, #tpu.memory_space<any>>
    %c0_i32_59 = arith.constant 0 : i32
    %c0_i32_60 = arith.constant 0 : i32
    %99 = tpu.memref_slice %arg15[%c0_i32_55, %c0_i32_59, %c0_i32_60] : memref<2x16x16xbf16, #tpu.memory_space<vmem>> -> memref<1x16x16xbf16, #tpu.memory_space<vmem>>
    %100 = tpu.memref_squeeze %99 : memref<1x16x16xbf16, #tpu.memory_space<vmem>> -> memref<16x16xbf16, #tpu.memory_space<vmem>>
    %101 = tpu.memref_slice %arg16[%c0_i32_56] : memref<2x!tpu.dma_semaphore, #tpu.memory_space<semaphore_mem>> -> memref<1x!tpu.dma_semaphore, #tpu.memory_space<semaphore_mem>>
    %102 = tpu.memref_squeeze %101 : memref<1x!tpu.dma_semaphore, #tpu.memory_space<semaphore_mem>> -> memref<!tpu.dma_semaphore, #tpu.memory_space<semaphore_mem>>
    tpu.enqueue_dma source(%98 : memref<16x16xbf16, #tpu.memory_space<any>>) target(%100 : memref<16x16xbf16, #tpu.memory_space<vmem>>) target_semaphore(%102 : memref<!tpu.dma_semaphore, #tpu.memory_space<semaphore_mem>>)
    %c0_61 = arith.constant 0 : index
    %c0_62 = arith.constant 0 : index
    %103 = vector.load %arg6[%c0_61, %c0_62] : memref<128x768xbf16, #tpu.memory_space<vmem>>, vector<128x768xbf16>
    %c0_63 = arith.constant 0 : index
    %c0_64 = arith.constant 0 : index
    %104 = vector.load %arg7[%c0_63, %c0_64] : memref<1x768xf32, #tpu.memory_space<vmem>>, vector<1x768xf32>
    %105 = arith.truncf %97 : vector<16x128xf32> to vector<16x128xbf16>
    %cst_65 = arith.constant dense<0.000000e+00> : vector<16x768xf32>
    %106 = tpu.matmul %105, %103, %cst_65 {dimension_numbers = #tpu.dot_dimension_numbers<[1], [0], [0], [1], [0, 0, 1, 1], [], []>} : vector<16x128xbf16>, vector<128x768xbf16>, vector<16x768xf32> -> vector<16x768xf32>
    %107 = vector.broadcast %104 : vector<1x768xf32> to vector<16x768xf32>
    %108 = arith.addf %106, %107 : vector<16x768xf32>
    %109 = vector.extract_strided_slice %108 {offsets = [0, 0], sizes = [16, 128], strides = [1, 1]} : vector<16x768xf32> to vector<16x128xf32>
    %110 = vector.extract_strided_slice %108 {offsets = [0, 128], sizes = [16, 128], strides = [1, 1]} : vector<16x768xf32> to vector<16x128xf32>
    %111 = vector.extract_strided_slice %108 {offsets = [0, 256], sizes = [16, 128], strides = [1, 1]} : vector<16x768xf32> to vector<16x128xf32>
    %112 = vector.extract_strided_slice %108 {offsets = [0, 384], sizes = [16, 128], strides = [1, 1]} : vector<16x768xf32> to vector<16x128xf32>
    %113 = vector.extract_strided_slice %108 {offsets = [0, 512], sizes = [16, 128], strides = [1, 1]} : vector<16x768xf32> to vector<16x128xf32>
    %114 = vector.extract_strided_slice %108 {offsets = [0, 640], sizes = [16, 128], strides = [1, 1]} : vector<16x768xf32> to vector<16x128xf32>
    %115 = arith.mulf %114, %112 : vector<16x128xf32>
    %116 = arith.addf %115, %113 : vector<16x128xf32>
    %cst_66 = arith.constant 0.000000e+00 : f32
    %117 = vector.broadcast %cst_66 : f32 to vector<16x128xf32>
    %118 = arith.maximumf %116, %117 : vector<16x128xf32>
    %c0_67 = arith.constant 0 : index
    %c0_68 = arith.constant 0 : index
    %119 = vector.load %arg17[%c0_67, %c0_68] : memref<16x128xf32, #tpu.memory_space<vmem>>, vector<16x128xf32>
    tpu.vector_store %arg17[%c0_67, %c0_68], %109 {strides = array<i32>} : memref<16x128xf32, #tpu.memory_space<vmem>>, vector<16x128xf32>,
    %cst_69 = arith.constant 0.000000e+00 : f32
    %120 = vector.broadcast %cst_69 : f32 to vector<16x128xf32>
    %c0_70 = arith.constant 0 : index
    %c0_71 = arith.constant 0 : index
    %121 = vector.load %arg18[%c0_70, %c0_71] : memref<16x128xf32, #tpu.memory_space<vmem>>, vector<16x128xf32>
    tpu.vector_store %arg18[%c0_70, %c0_71], %120 {strides = array<i32>} : memref<16x128xf32, #tpu.memory_space<vmem>>, vector<16x128xf32>,
    %c0_i32_72 = arith.constant 0 : i32
    %c1_i32_73 = arith.constant 1 : i32
    %122 = arith.muli %c0_i32_72, %c1_i32_73 : i32
    %c0_i32_74 = arith.constant 0 : i32
    %123 = arith.addi %c0_i32_74, %122 : i32
    %c2_i32_75 = arith.constant 2 : i32
    %c0_i32_76 = arith.constant 0 : i32
    %124 = arith.cmpi eq, %c2_i32_75, %c0_i32_76 : i32
    %c1_i32_77 = arith.constant 1 : i32
    %125 = arith.select %124, %c1_i32_77, %c2_i32_75 : i32
    %126 = arith.remsi %123, %125 : i32
    %c0_i32_78 = arith.constant 0 : i32
    %127 = arith.cmpi ne, %126, %c0_i32_78 : i32
    %c0_i32_79 = arith.constant 0 : i32
    %128 = arith.cmpi slt, %126, %c0_i32_79 : i32
    %c0_i32_80 = arith.constant 0 : i32
    %129 = arith.cmpi slt, %125, %c0_i32_80 : i32
    %130 = arith.xori %128, %129 : i1
    %131 = arith.andi %130, %127 : i1
    %132 = arith.addi %126, %125 : i32
    %133 = arith.select %131, %132, %126 : i32
    %c0_i32_81 = arith.constant 0 : i32
    %c0_i32_82 = arith.constant 0 : i32
    %134 = tpu.memref_slice %arg1[%c0_i32_81, %c0_i32_82] : memref<16x16xbf16, #tpu.memory_space<any>> -> memref<16x16xbf16, #tpu.memory_space<any>>
    %c0_i32_83 = arith.constant 0 : i32
    %c0_i32_84 = arith.constant 0 : i32
    %135 = tpu.memref_slice %arg15[%133, %c0_i32_83, %c0_i32_84] : memref<2x16x16xbf16, #tpu.memory_space<vmem>> -> memref<1x16x16xbf16, #tpu.memory_space<vmem>>
    %136 = tpu.memref_squeeze %135 : memref<1x16x16xbf16, #tpu.memory_space<vmem>> -> memref<16x16xbf16, #tpu.memory_space<vmem>>
    %137 = tpu.memref_slice %arg16[%133] : memref<2x!tpu.dma_semaphore, #tpu.memory_space<semaphore_mem>> -> memref<1x!tpu.dma_semaphore, #tpu.memory_space<semaphore_mem>>
    %138 = tpu.memref_squeeze %137 : memref<1x!tpu.dma_semaphore, #tpu.memory_space<semaphore_mem>> -> memref<!tpu.dma_semaphore, #tpu.memory_space<semaphore_mem>>
    tpu.wait_dma2 semaphore(%138 : memref<!tpu.dma_semaphore, #tpu.memory_space<semaphore_mem>>) src(%134 : memref<16x16xbf16, #tpu.memory_space<any>>) dst(%136 : memref<16x16xbf16, #tpu.memory_space<vmem>>)
    %c1_i32_85 = arith.constant 1 : i32
    %139 = arith.addi %123, %c1_i32_85 : i32
    %c1_i32_86 = arith.constant 1 : i32
    %140 = arith.cmpi slt, %139, %c1_i32_86 : i32
    %141 = arith.extui %140 : i1 to i32
    %c0_i32_87 = arith.constant 0 : i32
    %142 = arith.cmpi ne, %141, %c0_i32_87 : i32
    scf.if %142 {
      %c1_i32_156 = arith.constant 1 : i32
      %258 = arith.addi %123, %c1_i32_156 : i32
      %c1_i32_157 = arith.constant 1 : i32
      %259 = arith.subi %c1_i32_157, %133 : i32
      %c16_i32_158 = arith.constant 16 : i32
      %260 = arith.muli %258, %c16_i32_158 : i32
      %c0_i32_159 = arith.constant 0 : i32
      %261 = tpu.memref_slice %arg1[%260, %c0_i32_159] : memref<16x16xbf16, #tpu.memory_space<any>> -> memref<16x16xbf16, #tpu.memory_space<any>>
      %c0_i32_160 = arith.constant 0 : i32
      %c0_i32_161 = arith.constant 0 : i32
      %262 = tpu.memref_slice %arg15[%259, %c0_i32_160, %c0_i32_161] : memref<2x16x16xbf16, #tpu.memory_space<vmem>> -> memref<1x16x16xbf16, #tpu.memory_space<vmem>>
      %263 = tpu.memref_squeeze %262 : memref<1x16x16xbf16, #tpu.memory_space<vmem>> -> memref<16x16xbf16, #tpu.memory_space<vmem>>
      %264 = tpu.memref_slice %arg16[%259] : memref<2x!tpu.dma_semaphore, #tpu.memory_space<semaphore_mem>> -> memref<1x!tpu.dma_semaphore, #tpu.memory_space<semaphore_mem>>
      %265 = tpu.memref_squeeze %264 : memref<1x!tpu.dma_semaphore, #tpu.memory_space<semaphore_mem>> -> memref<!tpu.dma_semaphore, #tpu.memory_space<semaphore_mem>>
      tpu.enqueue_dma source(%261 : memref<16x16xbf16, #tpu.memory_space<any>>) target(%263 : memref<16x16xbf16, #tpu.memory_space<vmem>>) target_semaphore(%265 : memref<!tpu.dma_semaphore, #tpu.memory_space<semaphore_mem>>)
    } else {
    }
    %c16_i32_88 = arith.constant 16 : i32
    %143 = arith.muli %123, %c16_i32_88 : i32
    %144 = tpu.assume_multiple %143, 16 : i32
    %145 = arith.index_cast %133 : i32 to index
    %c0_89 = arith.constant 0 : index
    %c0_90 = arith.constant 0 : index
    %146 = vector.load %arg15[%145, %c0_89, %c0_90] : memref<2x16x16xbf16, #tpu.memory_space<vmem>>, vector<1x16x16xbf16>
    %147 = vector.shape_cast %146 : vector<1x16x16xbf16> to vector<16x16xbf16>
    %148 = arith.extf %147 : vector<16x16xbf16> to vector<16x16xf32>
    %149 = arith.index_cast %144 : i32 to index
    %c0_91 = arith.constant 0 : index
    %150 = vector.load %arg17[%149, %c0_91] : memref<16x128xf32, #tpu.memory_space<vmem>>, vector<16x128xf32>
    %151 = vector.shape_cast %111 : vector<16x128xf32> to vector<1x16x128xf32>
    %152 = vector.shape_cast %150 : vector<16x128xf32> to vector<16x1x128xf32>
    %153 = vector.broadcast %151 : vector<1x16x128xf32> to vector<16x16x128xf32>
    %154 = vector.broadcast %152 : vector<16x1x128xf32> to vector<16x16x128xf32>
    %155 = arith.mulf %153, %154 : vector<16x16x128xf32>
    %156 = vector.shape_cast %110 : vector<16x128xf32> to vector<1x16x128xf32>
    %157 = vector.broadcast %156 : vector<1x16x128xf32> to vector<16x16x128xf32>
    %158 = arith.addf %155, %157 : vector<16x16x128xf32>
    %cst_92 = arith.constant 0.000000e+00 : f32
    %159 = vector.broadcast %cst_92 : f32 to vector<16x16x128xf32>
    %160 = arith.maximumf %158, %159 : vector<16x16x128xf32>
    %c0_93 = arith.constant 0 : index
    %c0_94 = arith.constant 0 : index
    %161 = vector.load %arg18[%c0_93, %c0_94] : memref<16x128xf32, #tpu.memory_space<vmem>>, vector<16x128xf32>
    %162 = vector.shape_cast %148 : vector<16x16xf32> to vector<16x16x1xf32>
    %163 = vector.broadcast %162 : vector<16x16x1xf32> to vector<16x16x128xf32>
    %164 = arith.mulf %163, %160 : vector<16x16x128xf32>
    %cst_95 = arith.constant dense<0.000000e+00> : vector<16x128xf32>
    %165 = vector.multi_reduction <add>, %164, %cst_95 [0] : vector<16x16x128xf32> to vector<16x128xf32>
    %166 = arith.addf %161, %165 : vector<16x128xf32>
    %c0_96 = arith.constant 0 : index
    %c0_97 = arith.constant 0 : index
    %167 = vector.load %arg18[%c0_96, %c0_97] : memref<16x128xf32, #tpu.memory_space<vmem>>, vector<16x128xf32>
    tpu.vector_store %arg18[%c0_96, %c0_97], %166 {strides = array<i32>} : memref<16x128xf32, #tpu.memory_space<vmem>>, vector<16x128xf32>,
    %c1_i32_98 = arith.constant 1 : i32
    %c0_99 = arith.constant 0 : index
    %c0_100 = arith.constant 0 : index
    %168 = vector.load %arg18[%c0_99, %c0_100] : memref<16x128xf32, #tpu.memory_space<vmem>>, vector<16x128xf32>
    %169 = vector.broadcast %1 : vector<16x1xf32> to vector<16x128xf32>
    %170 = arith.mulf %168, %169 : vector<16x128xf32>
    %171 = arith.addf %118, %170 : vector<16x128xf32>
    %c0_101 = arith.constant 0 : index
    %c0_102 = arith.constant 0 : index
    %172 = vector.load %arg12[%c0_101, %c0_102] : memref<1x128xf32, #tpu.memory_space<vmem>>, vector<1x128xf32>
    %c0_103 = arith.constant 0 : index
    %c0_104 = arith.constant 0 : index
    %173 = vector.load %arg13[%c0_103, %c0_104] : memref<1x128xf32, #tpu.memory_space<vmem>>, vector<1x128xf32>
    %cst_105 = arith.constant dense<0.000000e+00> : vector<128xf32>
    %174 = vector.multi_reduction <add>, %171, %cst_105 [0] : vector<16x128xf32> to vector<128xf32>
    %175 = vector.shape_cast %174 : vector<128xf32> to vector<1x128xf32>
    %cst_106 = arith.constant 6.250000e-02 : f32
    %176 = vector.broadcast %cst_106 : f32 to vector<1x128xf32>
    %177 = arith.mulf %175, %176 : vector<1x128xf32>
    %178 = vector.broadcast %177 : vector<1x128xf32> to vector<16x128xf32>
    %179 = arith.subf %171, %178 : vector<16x128xf32>
    %180 = arith.mulf %179, %179 : vector<16x128xf32>
    %cst_107 = arith.constant dense<0.000000e+00> : vector<128xf32>
    %181 = vector.multi_reduction <add>, %180, %cst_107 [0] : vector<16x128xf32> to vector<128xf32>
    %182 = vector.shape_cast %181 : vector<128xf32> to vector<1x128xf32>
    %cst_108 = arith.constant 6.250000e-02 : f32
    %183 = vector.broadcast %cst_108 : f32 to vector<1x128xf32>
    %184 = arith.mulf %182, %183 : vector<1x128xf32>
    %cst_109 = arith.constant 9.99999974E-6 : f32
    %185 = vector.broadcast %cst_109 : f32 to vector<1x128xf32>
    %186 = arith.addf %184, %185 : vector<1x128xf32>
    %187 = math.rsqrt %186 : vector<1x128xf32>
    %188 = vector.broadcast %187 : vector<1x128xf32> to vector<16x128xf32>
    %189 = arith.mulf %179, %188 : vector<16x128xf32>
    %190 = vector.broadcast %172 : vector<1x128xf32> to vector<16x128xf32>
    %191 = arith.mulf %189, %190 : vector<16x128xf32>
    %192 = vector.broadcast %173 : vector<1x128xf32> to vector<16x128xf32>
    %193 = arith.addf %191, %192 : vector<16x128xf32>
    %c0_i32_110 = arith.constant 0 : i32
    %c0_i32_111 = arith.constant 0 : i32
    %c0_i32_112 = arith.constant 0 : i32
    %c0_i32_113 = arith.constant 0 : i32
    %194 = tpu.memref_slice %arg1[%c0_i32_112, %c0_i32_113] : memref<16x16xbf16, #tpu.memory_space<any>> -> memref<16x16xbf16, #tpu.memory_space<any>>
    %c0_i32_114 = arith.constant 0 : i32
    %c0_i32_115 = arith.constant 0 : i32
    %195 = tpu.memref_slice %arg15[%c0_i32_110, %c0_i32_114, %c0_i32_115] : memref<2x16x16xbf16, #tpu.memory_space<vmem>> -> memref<1x16x16xbf16, #tpu.memory_space<vmem>>
    %196 = tpu.memref_squeeze %195 : memref<1x16x16xbf16, #tpu.memory_space<vmem>> -> memref<16x16xbf16, #tpu.memory_space<vmem>>
    %197 = tpu.memref_slice %arg16[%c0_i32_111] : memref<2x!tpu.dma_semaphore, #tpu.memory_space<semaphore_mem>> -> memref<1x!tpu.dma_semaphore, #tpu.memory_space<semaphore_mem>>
    %198 = tpu.memref_squeeze %197 : memref<1x!tpu.dma_semaphore, #tpu.memory_space<semaphore_mem>> -> memref<!tpu.dma_semaphore, #tpu.memory_space<semaphore_mem>>
    tpu.enqueue_dma source(%194 : memref<16x16xbf16, #tpu.memory_space<any>>) target(%196 : memref<16x16xbf16, #tpu.memory_space<vmem>>) target_semaphore(%198 : memref<!tpu.dma_semaphore, #tpu.memory_space<semaphore_mem>>)
    %c0_116 = arith.constant 0 : index
    %c0_117 = arith.constant 0 : index
    %199 = vector.load %arg8[%c0_116, %c0_117] : memref<128x768xbf16, #tpu.memory_space<vmem>>, vector<128x768xbf16>
    %c0_118 = arith.constant 0 : index
    %c0_119 = arith.constant 0 : index
    %200 = vector.load %arg9[%c0_118, %c0_119] : memref<1x768xf32, #tpu.memory_space<vmem>>, vector<1x768xf32>
    %201 = arith.truncf %193 : vector<16x128xf32> to vector<16x128xbf16>
    %cst_120 = arith.constant dense<0.000000e+00> : vector<16x768xf32>
    %202 = tpu.matmul %201, %199, %cst_120 {dimension_numbers = #tpu.dot_dimension_numbers<[1], [0], [0], [1], [0, 0, 1, 1], [], []>} : vector<16x128xbf16>, vector<128x768xbf16>, vector<16x768xf32> -> vector<16x768xf32>
    %203 = vector.broadcast %200 : vector<1x768xf32> to vector<16x768xf32>
    %204 = arith.addf %202, %203 : vector<16x768xf32>
    %205 = vector.extract_strided_slice %204 {offsets = [0, 0], sizes = [16, 128], strides = [1, 1]} : vector<16x768xf32> to vector<16x128xf32>
    %206 = vector.extract_strided_slice %204 {offsets = [0, 128], sizes = [16, 128], strides = [1, 1]} : vector<16x768xf32> to vector<16x128xf32>
    %207 = vector.extract_strided_slice %204 {offsets = [0, 256], sizes = [16, 128], strides = [1, 1]} : vector<16x768xf32> to vector<16x128xf32>
    %208 = vector.extract_strided_slice %204 {offsets = [0, 384], sizes = [16, 128], strides = [1, 1]} : vector<16x768xf32> to vector<16x128xf32>
    %209 = vector.extract_strided_slice %204 {offsets = [0, 512], sizes = [16, 128], strides = [1, 1]} : vector<16x768xf32> to vector<16x128xf32>
    %210 = vector.extract_strided_slice %204 {offsets = [0, 640], sizes = [16, 128], strides = [1, 1]} : vector<16x768xf32> to vector<16x128xf32>
    %211 = arith.mulf %210, %208 : vector<16x128xf32>
    %212 = arith.addf %211, %209 : vector<16x128xf32>
    %c0_121 = arith.constant 0 : index
    %c0_122 = arith.constant 0 : index
    %213 = vector.load %arg17[%c0_121, %c0_122] : memref<16x128xf32, #tpu.memory_space<vmem>>, vector<16x128xf32>
    tpu.vector_store %arg17[%c0_121, %c0_122], %205 {strides = array<i32>} : memref<16x128xf32, #tpu.memory_space<vmem>>, vector<16x128xf32>,
    %cst_123 = arith.constant 0.000000e+00 : f32
    %214 = vector.broadcast %cst_123 : f32 to vector<16x128xf32>
    %c0_124 = arith.constant 0 : index
    %c0_125 = arith.constant 0 : index
    %215 = vector.load %arg18[%c0_124, %c0_125] : memref<16x128xf32, #tpu.memory_space<vmem>>, vector<16x128xf32>
    tpu.vector_store %arg18[%c0_124, %c0_125], %214 {strides = array<i32>} : memref<16x128xf32, #tpu.memory_space<vmem>>, vector<16x128xf32>,
    %c0_i32_126 = arith.constant 0 : i32
    %c1_i32_127 = arith.constant 1 : i32
    %216 = arith.muli %c0_i32_126, %c1_i32_127 : i32
    %c0_i32_128 = arith.constant 0 : i32
    %217 = arith.addi %c0_i32_128, %216 : i32
    %c2_i32_129 = arith.constant 2 : i32
    %c0_i32_130 = arith.constant 0 : i32
    %218 = arith.cmpi eq, %c2_i32_129, %c0_i32_130 : i32
    %c1_i32_131 = arith.constant 1 : i32
    %219 = arith.select %218, %c1_i32_131, %c2_i32_129 : i32
    %220 = arith.remsi %217, %219 : i32
    %c0_i32_132 = arith.constant 0 : i32
    %221 = arith.cmpi ne, %220, %c0_i32_132 : i32
    %c0_i32_133 = arith.constant 0 : i32
    %222 = arith.cmpi slt, %220, %c0_i32_133 : i32
    %c0_i32_134 = arith.constant 0 : i32
    %223 = arith.cmpi slt, %219, %c0_i32_134 : i32
    %224 = arith.xori %222, %223 : i1
    %225 = arith.andi %224, %221 : i1
    %226 = arith.addi %220, %219 : i32
    %227 = arith.select %225, %226, %220 : i32
    %c0_i32_135 = arith.constant 0 : i32
    %c0_i32_136 = arith.constant 0 : i32
    %228 = tpu.memref_slice %arg1[%c0_i32_135, %c0_i32_136] : memref<16x16xbf16, #tpu.memory_space<any>> -> memref<16x16xbf16, #tpu.memory_space<any>>
    %c0_i32_137 = arith.constant 0 : i32
    %c0_i32_138 = arith.constant 0 : i32
    %229 = tpu.memref_slice %arg15[%227, %c0_i32_137, %c0_i32_138] : memref<2x16x16xbf16, #tpu.memory_space<vmem>> -> memref<1x16x16xbf16, #tpu.memory_space<vmem>>
    %230 = tpu.memref_squeeze %229 : memref<1x16x16xbf16, #tpu.memory_space<vmem>> -> memref<16x16xbf16, #tpu.memory_space<vmem>>
    %231 = tpu.memref_slice %arg16[%227] : memref<2x!tpu.dma_semaphore, #tpu.memory_space<semaphore_mem>> -> memref<1x!tpu.dma_semaphore, #tpu.memory_space<semaphore_mem>>
    %232 = tpu.memref_squeeze %231 : memref<1x!tpu.dma_semaphore, #tpu.memory_space<semaphore_mem>> -> memref<!tpu.dma_semaphore, #tpu.memory_space<semaphore_mem>>
    tpu.wait_dma2 semaphore(%232 : memref<!tpu.dma_semaphore, #tpu.memory_space<semaphore_mem>>) src(%228 : memref<16x16xbf16, #tpu.memory_space<any>>) dst(%230 : memref<16x16xbf16, #tpu.memory_space<vmem>>)
    %c1_i32_139 = arith.constant 1 : i32
    %233 = arith.addi %217, %c1_i32_139 : i32
    %c1_i32_140 = arith.constant 1 : i32
    %234 = arith.cmpi slt, %233, %c1_i32_140 : i32
    %235 = arith.extui %234 : i1 to i32
    %c0_i32_141 = arith.constant 0 : i32
    %236 = arith.cmpi ne, %235, %c0_i32_141 : i32
    scf.if %236 {
      %c1_i32_156 = arith.constant 1 : i32
      %258 = arith.addi %217, %c1_i32_156 : i32
      %c1_i32_157 = arith.constant 1 : i32
      %259 = arith.subi %c1_i32_157, %227 : i32
      %c16_i32_158 = arith.constant 16 : i32
      %260 = arith.muli %258, %c16_i32_158 : i32
      %c0_i32_159 = arith.constant 0 : i32
      %261 = tpu.memref_slice %arg1[%260, %c0_i32_159] : memref<16x16xbf16, #tpu.memory_space<any>> -> memref<16x16xbf16, #tpu.memory_space<any>>
      %c0_i32_160 = arith.constant 0 : i32
      %c0_i32_161 = arith.constant 0 : i32
      %262 = tpu.memref_slice %arg15[%259, %c0_i32_160, %c0_i32_161] : memref<2x16x16xbf16, #tpu.memory_space<vmem>> -> memref<1x16x16xbf16, #tpu.memory_space<vmem>>
      %263 = tpu.memref_squeeze %262 : memref<1x16x16xbf16, #tpu.memory_space<vmem>> -> memref<16x16xbf16, #tpu.memory_space<vmem>>
      %264 = tpu.memref_slice %arg16[%259] : memref<2x!tpu.dma_semaphore, #tpu.memory_space<semaphore_mem>> -> memref<1x!tpu.dma_semaphore, #tpu.memory_space<semaphore_mem>>
      %265 = tpu.memref_squeeze %264 : memref<1x!tpu.dma_semaphore, #tpu.memory_space<semaphore_mem>> -> memref<!tpu.dma_semaphore, #tpu.memory_space<semaphore_mem>>
      tpu.enqueue_dma source(%261 : memref<16x16xbf16, #tpu.memory_space<any>>) target(%263 : memref<16x16xbf16, #tpu.memory_space<vmem>>) target_semaphore(%265 : memref<!tpu.dma_semaphore, #tpu.memory_space<semaphore_mem>>)
    } else {
    }
    %c16_i32_142 = arith.constant 16 : i32
    %237 = arith.muli %217, %c16_i32_142 : i32
    %238 = tpu.assume_multiple %237, 16 : i32
    %239 = arith.index_cast %227 : i32 to index
    %c0_143 = arith.constant 0 : index
    %c0_144 = arith.constant 0 : index
    %240 = vector.load %arg15[%239, %c0_143, %c0_144] : memref<2x16x16xbf16, #tpu.memory_space<vmem>>, vector<1x16x16xbf16>
    %241 = vector.shape_cast %240 : vector<1x16x16xbf16> to vector<16x16xbf16>
    %242 = arith.index_cast %238 : i32 to index
    %c0_145 = arith.constant 0 : index
    %243 = vector.load %arg17[%242, %c0_145] : memref<16x128xf32, #tpu.memory_space<vmem>>, vector<16x128xf32>
    %244 = arith.truncf %243 : vector<16x128xf32> to vector<16x128xbf16>
    %c0_146 = arith.constant 0 : index
    %c0_147 = arith.constant 0 : index
    %245 = vector.load %arg18[%c0_146, %c0_147] : memref<16x128xf32, #tpu.memory_space<vmem>>, vector<16x128xf32>
    %cst_148 = arith.constant dense<0.000000e+00> : vector<16x128xf32>
    %246 = tpu.matmul %241, %244, %cst_148 {dimension_numbers = #tpu.dot_dimension_numbers<[0], [0], [1], [1], [0, 1, 1, 1], [], []>} : vector<16x16xbf16>, vector<16x128xbf16>, vector<16x128xf32> -> vector<16x128xf32>
    %247 = arith.addf %245, %246 : vector<16x128xf32>
    %c0_149 = arith.constant 0 : index
    %c0_150 = arith.constant 0 : index
    %248 = vector.load %arg18[%c0_149, %c0_150] : memref<16x128xf32, #tpu.memory_space<vmem>>, vector<16x128xf32>
    tpu.vector_store %arg18[%c0_149, %c0_150], %247 {strides = array<i32>} : memref<16x128xf32, #tpu.memory_space<vmem>>, vector<16x128xf32>,
    %c1_i32_151 = arith.constant 1 : i32
    %c0_152 = arith.constant 0 : index
    %c0_153 = arith.constant 0 : index
    %249 = vector.load %arg18[%c0_152, %c0_153] : memref<16x128xf32, #tpu.memory_space<vmem>>, vector<16x128xf32>
    %250 = arith.mulf %207, %249 : vector<16x128xf32>
    %251 = vector.broadcast %0 : vector<16x1xf32> to vector<16x128xf32>
    %252 = arith.mulf %251, %206 : vector<16x128xf32>
    %253 = arith.addf %250, %252 : vector<16x128xf32>
    %254 = vector.broadcast %1 : vector<16x1xf32> to vector<16x128xf32>
    %255 = arith.mulf %253, %254 : vector<16x128xf32>
    %256 = arith.addf %212, %255 : vector<16x128xf32>
    %c0_154 = arith.constant 0 : index
    %c0_155 = arith.constant 0 : index
    %257 = vector.load %arg14[%c0_154, %c0_155] : memref<16x128xf32, #tpu.memory_space<vmem>>, vector<16x128xf32>
    tpu.vector_store %arg14[%c0_154, %c0_155], %256 {strides = array<i32>} : memref<16x128xf32, #tpu.memory_space<vmem>>, vector<16x128xf32>,
    return
  }
}

</mosaic_0001>

<llo_original>
// kernel: tpu_custom_call.1
$region0: #{tpu_custom_call.1}
  #allocation0 [shape = 'u32[]', space=smem, size = 0x4, offset = 0x4, fixed_abs, tag = 'smem constant byte address 0x4 - core index']
  #allocation1 [shape = 'u32[144,128]{1,0:T(1,128)}', space=vmem, size = 0x12000, scoped, tag = 'internal scratch']
  #allocation2 [shape = 'bf16[2,16,16]{2,1,0:T(16,128)(2,1)}', space=vmem, size = 0x2000, scoped, tag = 'scratch operand']
  #allocation3 [shape = 's32[2]{0}', space=sflag, size = 0x8, scoped, tag = 'scratch operand']
  #allocation4 [shape = 'f32[16,128]{1,0:T(8,128)}', space=vmem, size = 0x2000, scoped, tag = 'scratch operand']
  #allocation5 [shape = 'f32[16,128]{1,0:T(8,128)}', space=vmem, size = 0x2000, scoped, tag = 'scratch operand']
  #allocation13 [shape = 's32[]', space=sflag, size = 0x4, offset = 0, fixed_abs, tag = 'sflag constant byte address 0x0 - dummy sync flag']
  #allocation14 [shape = 's32[]', space=sflag, size = 0x4, offset = 0, fixed_abs, tag = 'sflag constant byte address 0x0 - dummy sync flag']
  #allocation15 [shape = 's32[]', space=sflag, size = 0x4, offset = 0, fixed_abs, tag = 'sflag constant byte address 0x0 - dummy sync flag']
  %s0 = inlined_call_operand.vmem [shape: bf16[16,128], index: 0, kind: input, shape index: {}]
  %s1 = inlined_call_operand.vmem [shape: bf16[16,16], index: 1, kind: input, shape index: {}]
  %s2 = inlined_call_operand.vmem [shape: f32[16,1], index: 2, kind: input, shape index: {}]
  %s3 = inlined_call_operand.vmem [shape: f32[16,1], index: 3, kind: input, shape index: {}]
  %s4 = inlined_call_operand.hbm [shape: bf16[128,768], index: 4, kind: input, shape index: {}]
  %s5 = inlined_call_operand.vmem [shape: f32[1,768], index: 5, kind: input, shape index: {}]
  %s6 = inlined_call_operand.hbm [shape: bf16[128,768], index: 6, kind: input, shape index: {}]
  %s7 = inlined_call_operand.vmem [shape: f32[1,768], index: 7, kind: input, shape index: {}]
  %s8 = inlined_call_operand.hbm [shape: bf16[128,768], index: 8, kind: input, shape index: {}]
  %s9 = inlined_call_operand.vmem [shape: f32[1,768], index: 9, kind: input, shape index: {}]
  %s10 = inlined_call_operand.vmem [shape: f32[1,128], index: 10, kind: input, shape index: {}]
  %s11 = inlined_call_operand.vmem [shape: f32[1,128], index: 11, kind: input, shape index: {}]
  %s12 = inlined_call_operand.vmem [shape: f32[1,128], index: 12, kind: input, shape index: {}]
  %s13 = inlined_call_operand.vmem [shape: f32[1,128], index: 13, kind: input, shape index: {}]
  %s14 = inlined_call_operand.hbm [shape: f32[16,128], index: 14, kind: output, shape index: {}]
  %s15 = sld [smem:[#allocation0]]
  $region176: #{tpu_custom_call.1} parent=0
    _
  %s17 = ssub.s32 1, %s15
  %s18 = scalar_select 0, %s17, %s15
  $region1: #{tpu_custom_call.1} parent=0
    #allocation6 [shape = 'u8[196608]{0}', space=vmem, size = 0x30000, scoped, tag = 'input window, operand 4, single buffered']
    #allocation7 [shape = 's32[1]{0}', space=sflag, size = 0x4, scoped, tag = 'scoped memory for tpu_custom_call.1']
    #allocation8 [shape = 's32[1]{0}', space=sflag, size = 0x4, scoped, tag = 'scoped memory for tpu_custom_call.1']
    #allocation9 [shape = 'u8[196608]{0}', space=vmem, size = 0x30000, scoped, tag = 'input window, operand 6, single buffered']
    #allocation10 [shape = 's32[1]{0}', space=sflag, size = 0x4, scoped, tag = 'scoped memory for tpu_custom_call.1']
    #allocation11 [shape = 'u8[196608]{0}', space=vmem, size = 0x30000, scoped, tag = 'input window, operand 8, single buffered']
    #allocation12 [shape = 'u8[8192]{0}', space=vmem, size = 0x2000, scoped, tag = 'output window, operand 0, single buffered']
    %19 = vsyncpa [#allocation7], 0
    %20 = vsyncpa [#allocation10], 0
    %21 = vsyncpa [#allocation8], 0
    // Predicated region
    $region2: #{tpu_custom_call.1} parent=1 // pred_check
      _
    $region3: #{tpu_custom_call.1} parent=1 // pred_check_branch
      %23 = sbr.rel (0) target = $region5
    $region4: #{tpu_custom_call.1} parent=1 // pred_region
      _
    $region5: #{tpu_custom_call.1} parent=1 // pred_fallthru
      _
    // Predicated region
    $region6: #{tpu_custom_call.1} parent=1 // pred_check
      _
    $region7: #{tpu_custom_call.1} parent=1 // pred_check_branch
      %25 = sbr.rel (0) target = $region9
    $region8: #{tpu_custom_call.1} parent=1 // pred_region
      _
    $region9: #{tpu_custom_call.1} parent=1 // pred_fallthru
      _
    // Predicated region
    $region10: #{tpu_custom_call.1} parent=1 // pred_check
      _
    $region11: #{tpu_custom_call.1} parent=1 // pred_check_branch
      %27 = sbr.rel (0) target = $region13
    $region12: #{tpu_custom_call.1} parent=1 // pred_region
      _
    $region13: #{tpu_custom_call.1} parent=1 // pred_fallthru
      _
    // Predicated region
    $region14: #{tpu_custom_call.1} parent=1 // pred_check
      _
    $region15: #{tpu_custom_call.1} parent=1 // pred_check_branch
      %29 = sbr.rel (0) target = $region17
    $region16: #{tpu_custom_call.1} parent=1 // pred_region
      %s31 = ssub.s32 6144, 6144
      %32 = vsyncadd [#allocation7], %s31
      %s33 = sshll.u32 [#allocation6], 4
      %s34 = int_to_ptr.vmem [resolvable:$true] %s33
      %39 = dma.hbm_to_vmem [thread:$0]  %s4, 6144, %s34, [#allocation7], 384, 384, 24
    $region17: #{tpu_custom_call.1} parent=1 // pred_fallthru
      _
    // Predicated region
    $region18: #{tpu_custom_call.1} parent=1 // pred_check
      _
    $region19: #{tpu_custom_call.1} parent=1 // pred_check_branch
      %41 = sbr.rel (0) target = $region21
    $region20: #{tpu_custom_call.1} parent=1 // pred_region
      _
    $region21: #{tpu_custom_call.1} parent=1 // pred_fallthru
      _
    // Predicated region
    $region22: #{tpu_custom_call.1} parent=1 // pred_check
      _
    $region23: #{tpu_custom_call.1} parent=1 // pred_check_branch
      %43 = sbr.rel (0) target = $region25
    $region24: #{tpu_custom_call.1} parent=1 // pred_region
      %s45 = ssub.s32 6144, 6144
      %46 = vsyncadd [#allocation10], %s45
      %s47 = sshll.u32 [#allocation9], 4
      %s48 = int_to_ptr.vmem [resolvable:$true] %s47
      %53 = dma.hbm_to_vmem [thread:$0]  %s6, 6144, %s48, [#allocation10], 384, 384, 24
    $region25: #{tpu_custom_call.1} parent=1 // pred_fallthru
      _
    // Predicated region
    $region26: #{tpu_custom_call.1} parent=1 // pred_check
      _
    $region27: #{tpu_custom_call.1} parent=1 // pred_check_branch
      %55 = sbr.rel (0) target = $region29
    $region28: #{tpu_custom_call.1} parent=1 // pred_region
      _
    $region29: #{tpu_custom_call.1} parent=1 // pred_fallthru
      _
    // Predicated region
    $region30: #{tpu_custom_call.1} parent=1 // pred_check
      _
    $region31: #{tpu_custom_call.1} parent=1 // pred_check_branch
      %57 = sbr.rel (0) target = $region33
    $region32: #{tpu_custom_call.1} parent=1 // pred_region
      %s59 = ssub.s32 6144, 6144
      %60 = vsyncadd [#allocation10], %s59
      %s61 = sshll.u32 [#allocation11], 4
      %s62 = int_to_ptr.vmem [resolvable:$true] %s61
      %67 = dma.hbm_to_vmem [thread:$0]  %s8, 6144, %s62, [#allocation10], 384, 384, 24
    $region33: #{tpu_custom_call.1} parent=1 // pred_fallthru
      _
    // Predicated region
    $region34: #{tpu_custom_call.1} parent=1 // pred_check
      _
    $region35: #{tpu_custom_call.1} parent=1 // pred_check_branch
      %69 = sbr.rel (0) target = $region37
    $region36: #{tpu_custom_call.1} parent=1 // pred_region
      _
    $region37: #{tpu_custom_call.1} parent=1 // pred_fallthru
      _
    // Predicated region
    $region38: #{tpu_custom_call.1} parent=1 // pred_check
      _
    $region39: #{tpu_custom_call.1} parent=1 // pred_check_branch
      %71 = sbr.rel (0) target = $region41
    $region40: #{tpu_custom_call.1} parent=1 // pred_region
      _
    $region41: #{tpu_custom_call.1} parent=1 // pred_fallthru
      _
    // Predicated region
    $region42: #{tpu_custom_call.1} parent=1 // pred_check
      _
    $region43: #{tpu_custom_call.1} parent=1 // pred_check_branch
      %73 = sbr.rel (0) target = $region45
    $region44: #{tpu_custom_call.1} parent=1 // pred_region
      _
    $region45: #{tpu_custom_call.1} parent=1 // pred_fallthru
      _
    // Predicated region
    $region46: #{tpu_custom_call.1} parent=1 // pred_check
      _
    $region47: #{tpu_custom_call.1} parent=1 // pred_check_branch
      %75 = sbr.rel (0) target = $region49
    $region48: #{tpu_custom_call.1} parent=1 // pred_region
      _
    $region49: #{tpu_custom_call.1} parent=1 // pred_fallthru
      _
    // Predicated region
    $region50: #{tpu_custom_call.1} parent=1 // pred_check
      _
    $region51: #{tpu_custom_call.1} parent=1 // pred_check_branch
      %77 = sbr.rel (0) target = $region53
    $region52: #{tpu_custom_call.1} parent=1 // pred_region
      _
    $region53: #{tpu_custom_call.1} parent=1 // pred_fallthru
      _
    // Predicated region
    $region54: #{tpu_custom_call.1} parent=1 // pred_check
      _
    $region55: #{tpu_custom_call.1} parent=1 // pred_check_branch
      %79 = sbr.rel (0) target = $region57
    $region56: #{tpu_custom_call.1} parent=1 // pred_region
      %80 = dma.done [#allocation7], 6144
    $region57: #{tpu_custom_call.1} parent=1 // pred_fallthru
      _
    // Predicated region
    $region58: #{tpu_custom_call.1} parent=1 // pred_check
      _
    $region59: #{tpu_custom_call.1} parent=1 // pred_check_branch
      %82 = sbr.rel (0) target = $region61
    $region60: #{tpu_custom_call.1} parent=1 // pred_region
      %83 = dma.done [#allocation10], 6144
    $region61: #{tpu_custom_call.1} parent=1 // pred_fallthru
      _
    // Predicated region
    $region62: #{tpu_custom_call.1} parent=1 // pred_check
      _
    $region63: #{tpu_custom_call.1} parent=1 // pred_check_branch
      %85 = sbr.rel (0) target = $region65
    $region64: #{tpu_custom_call.1} parent=1 // pred_region
      %86 = dma.done [#allocation10], 6144
    $region65: #{tpu_custom_call.1} parent=1 // pred_fallthru
      _
    %v88 = vld [vmem:[%s2] sm:$0xff]
    %v89 = vld [vmem:[%s2 + $0x8] sm:$0xff]
    %v90 = vld [vmem:[%s3] sm:$0xff]
    %v91 = vld [vmem:[%s3 + $0x8] sm:$0xff]
    %v92 = vld [vmem:[%s0] sm:$0xf]
    %v93 = vld [vmem:[%s0 + $0x4] sm:$0xf]
    %p95 = scmp.lt.u32.totalorder 8, 8
    %p96 = pneg %p95
    // Predicated region
    $region66: #{tpu_custom_call.1} parent=1 // pred_check
      _
    $region67: #{tpu_custom_call.1} parent=1 // pred_check_branch
      %98 = sbr.rel (%p95) target = $region69
    $region68: #{tpu_custom_call.1} parent=1 // pred_region
      %s113 = sand.u32 8, 7
      %p114 = scmp.eq.s32.totalorder %s113, 0
      // Predicated region
      $region81: #{tpu_custom_call.1} parent=68 // pred_check
        %p115 = pneg %p114
      $region82: #{tpu_custom_call.1} parent=68 // pred_check_branch
        %117 = sbr.rel (%p115) target = $region84
      $region83: #{tpu_custom_call.1} parent=68 // pred_region
        loop: start=0, step=1, limit=1
        $region85: #{tpu_custom_call.1} parent=83 // loop_pre_header
          _
        $region86: #{tpu_custom_call.1} parent=83 // loop_header
          %s119 = sphi 0, %s123
          %p120 = scmp.ge.s32.totalorder %s119, 1
          %s124 = sphi %s1, %s1
          %s125 = sphi [#allocation2], [#allocation2]
        $region87: #{tpu_custom_call.1} parent=83 // loop_header_branch
          %122 = sbr.rel (%p120) target = $region91
        $region88: #{tpu_custom_call.1} parent=83 // loop_body
          %v126 = vld [vmem:[%s124] sm:$0xff]
          %127 = vst [vmem:[%s125] sm:$0xff] %v126
        $region89: #{tpu_custom_call.1} parent=83 // loop_footer
          %s123 = sadd.s32 1, %s119
        $region90: #{tpu_custom_call.1} parent=83 // loop_footer_branch
          %118 = sbr.rel target = $region86
        $region91: #{tpu_custom_call.1} parent=83 // loop_exit
          _
      $region84: #{tpu_custom_call.1} parent=68 // pred_fallthru
        _
      %p128 = pneg %p114
      // Predicated region
      $region92: #{tpu_custom_call.1} parent=68 // pred_check
        _
      $region93: #{tpu_custom_call.1} parent=68 // pred_check_branch
        %130 = sbr.rel (%p114) target = $region95
      $region94: #{tpu_custom_call.1} parent=68 // pred_region
        %s131 = sand.u32 8, 7
      $region95: #{tpu_custom_call.1} parent=68 // pred_fallthru
        _
    $region69: #{tpu_custom_call.1} parent=1 // pred_fallthru
      _
    // Predicated region
    $region70: #{tpu_custom_call.1} parent=1 // pred_check
      %p99 = pneg %p95
    $region71: #{tpu_custom_call.1} parent=1 // pred_check_branch
      %101 = sbr.rel (%p99) target = $region73
    $region72: #{tpu_custom_call.1} parent=1 // pred_region
      %s102 = sshllo.u32 0, 8
      loop: start=0, step=1, limit=1
      $region74: #{tpu_custom_call.1} parent=72 // loop_pre_header
        _
      $region75: #{tpu_custom_call.1} parent=72 // loop_header
        %s104 = sphi 0, %s108
        %p105 = scmp.ge.s32.totalorder %s104, 1
        %s109 = sphi %s1, %s1
        %s110 = sphi [#allocation2], [#allocation2]
      $region76: #{tpu_custom_call.1} parent=72 // loop_header_branch
        %107 = sbr.rel (%p105) target = $region80
      $region77: #{tpu_custom_call.1} parent=72 // loop_body
        %v111 = vld [vmem:[%s109] sm:%s102]
        %112 = vst [vmem:[%s110] sm:%s102] %v111
      $region78: #{tpu_custom_call.1} parent=72 // loop_footer
        %s108 = sadd.s32 1, %s104
      $region79: #{tpu_custom_call.1} parent=72 // loop_footer_branch
        %103 = sbr.rel target = $region75
      $region80: #{tpu_custom_call.1} parent=72 // loop_exit
        _
    $region73: #{tpu_custom_call.1} parent=1 // pred_fallthru
      _
    // Predicated region
    $region96: #{tpu_custom_call.1} parent=1 // pred_check
      _
    $region97: #{tpu_custom_call.1} parent=1 // pred_check_branch
      %134 = sbr.rel (0) target = $region99
    $region98: #{tpu_custom_call.1} parent=1 // pred_region
      %135 = vsyncadd [#allocation3], 128
    $region99: #{tpu_custom_call.1} parent=1 // pred_fallthru
      _
    %v136 = vld [vmem:[#allocation6] sm:$0xff]
    %v137 = vld [vmem:[#allocation6 + $0x8] sm:$0xff]
    %v138 = vld [vmem:[#allocation6 + $0x10] sm:$0xff]
    %v139 = vld [vmem:[#allocation6 + $0x18] sm:$0xff]
    %v140 = vld [vmem:[#allocation6 + $0x20] sm:$0xff]
    %v141 = vld [vmem:[#allocation6 + $0x28] sm:$0xff]
    %v142 = vld [vmem:[#allocation6 + $0x30] sm:$0xff]
    %v143 = vld [vmem:[#allocation6 + $0x38] sm:$0xff]
    %v144 = vld [vmem:[#allocation6 + $0x40] sm:$0xff]
    %v145 = vld [vmem:[#allocation6 + $0x48] sm:$0xff]
    %v146 = vld [vmem:[#allocation6 + $0x50] sm:$0xff]
    %v147 = vld [vmem:[#allocation6 + $0x58] sm:$0xff]
    %v148 = vld [vmem:[#allocation6 + $0x60] sm:$0xff]
    %v149 = vld [vmem:[#allocation6 + $0x68] sm:$0xff]
    %v150 = vld [vmem:[#allocation6 + $0x70] sm:$0xff]
    %v151 = vld [vmem:[#allocation6 + $0x78] sm:$0xff]
    %v152 = vld [vmem:[#allocation6 + $0x80] sm:$0xff]
    %v153 = vld [vmem:[#allocation6 + $0x88] sm:$0xff]
    %v154 = vld [vmem:[#allocation6 + $0x90] sm:$0xff]
    %v155 = vld [vmem:[#allocation6 + $0x98] sm:$0xff]
    %v156 = vld [vmem:[#allocation6 + $0xa0] sm:$0xff]
    %v157 = vld [vmem:[#allocation6 + $0xa8] sm:$0xff]
    %v158 = vld [vmem:[#allocation6 + $0xb0] sm:$0xff]
    %v159 = vld [vmem:[#allocation6 + $0xb8] sm:$0xff]
    %v160 = vld [vmem:[#allocation6 + $0xc0] sm:$0xff]
    %v161 = vld [vmem:[#allocation6 + $0xc8] sm:$0xff]
    %v162 = vld [vmem:[#allocation6 + $0xd0] sm:$0xff]
    %v163 = vld [vmem:[#allocation6 + $0xd8] sm:$0xff]
    %v164 = vld [vmem:[#allocation6 + $0xe0] sm:$0xff]
    %v165 = vld [vmem:[#allocation6 + $0xe8] sm:$0xff]
    %v166 = vld [vmem:[#allocation6 + $0xf0] sm:$0xff]
    %v167 = vld [vmem:[#allocation6 + $0xf8] sm:$0xff]
    %v168 = vld [vmem:[#allocation6 + $0x100] sm:$0xff]
    %v169 = vld [vmem:[#allocation6 + $0x108] sm:$0xff]
    %v170 = vld [vmem:[#allocation6 + $0x110] sm:$0xff]
    %v171 = vld [vmem:[#allocation6 + $0x118] sm:$0xff]
    %v172 = vld [vmem:[#allocation6 + $0x120] sm:$0xff]
    %v173 = vld [vmem:[#allocation6 + $0x128] sm:$0xff]
    %v174 = vld [vmem:[#allocation6 + $0x130] sm:$0xff]
    %v175 = vld [vmem:[#allocation6 + $0x138] sm:$0xff]
    %v176 = vld [vmem:[#allocation6 + $0x140] sm:$0xff]
    %v177 = vld [vmem:[#allocation6 + $0x148] sm:$0xff]
    %v178 = vld [vmem:[#allocation6 + $0x150] sm:$0xff]
    %v179 = vld [vmem:[#allocation6 + $0x158] sm:$0xff]
    %v180 = vld [vmem:[#allocation6 + $0x160] sm:$0xff]
    %v181 = vld [vmem:[#allocation6 + $0x168] sm:$0xff]
    %v182 = vld [vmem:[#allocation6 + $0x170] sm:$0xff]
    %v183 = vld [vmem:[#allocation6 + $0x178] sm:$0xff]
    %v184 = vld [vmem:[%s5] sm:$0x3f]
    %v186 = vlaneseq
    %v187 = vshrl.u32 %v186, 7
    %v188 = vsub.s32 0, %v187
    %v189 = vrot.slane %v184, %v188
    %v190 = vlaneseq
    %v191 = vshrl.u32 %v190, 7
    %v192 = vsub.s32 1, %v191
    %v193 = vrot.slane %v184, %v192
    %v194 = vlaneseq
    %v195 = vshrl.u32 %v194, 7
    %v196 = vsub.s32 2, %v195
    %v197 = vrot.slane %v184, %v196
    %v198 = vlaneseq
    %v199 = vshrl.u32 %v198, 7
    %v200 = vsub.s32 3, %v199
    %v201 = vrot.slane %v184, %v200
    %v202 = vlaneseq
    %v203 = vshrl.u32 %v202, 7
    %v204 = vsub.s32 4, %v203
    %v205 = vrot.slane %v184, %v204
    %v206 = vlaneseq
    %v207 = vshrl.u32 %v206, 7
    %v208 = vsub.s32 5, %v207
    %v209 = vrot.slane %v184, %v208
    %v218 = vunpack.c.l.b16 %v92
    %v219 = vunpack.c.l.b16 %v93
    %v220 = vpack.c.b16 %v219, %v218
    %v270 = vunpack.c.l.b16 %v136
    %v271 = vunpack.c.h.b16 %v136
    %v272 = vunpack.c.l.b16 %v137
    %v273 = vunpack.c.h.b16 %v137
    %v274 = vunpack.c.l.b16 %v138
    %v275 = vunpack.c.h.b16 %v138
    %v276 = vunpack.c.l.b16 %v139
    %v277 = vunpack.c.h.b16 %v139
    %v278 = vunpack.c.l.b16 %v140
    %v279 = vunpack.c.h.b16 %v140
    %v280 = vunpack.c.l.b16 %v141
    %v281 = vunpack.c.h.b16 %v141
    %v282 = vunpack.c.l.b16 %v142
    %v283 = vunpack.c.h.b16 %v142
    %v284 = vunpack.c.l.b16 %v143
    %v285 = vunpack.c.h.b16 %v143
    %v286 = vunpack.c.l.b16 %v144
    %v287 = vunpack.c.h.b16 %v144
    %v288 = vunpack.c.l.b16 %v145
    %v289 = vunpack.c.h.b16 %v145
    %v290 = vunpack.c.l.b16 %v146
    %v291 = vunpack.c.h.b16 %v146
    %v292 = vunpack.c.l.b16 %v147
    %v293 = vunpack.c.h.b16 %v147
    %v294 = vunpack.c.l.b16 %v148
    %v295 = vunpack.c.h.b16 %v148
    %v296 = vunpack.c.l.b16 %v149
    %v297 = vunpack.c.h.b16 %v149
    %v298 = vunpack.c.l.b16 %v150
    %v299 = vunpack.c.h.b16 %v150
    %v300 = vunpack.c.l.b16 %v151
    %v301 = vunpack.c.h.b16 %v151
    %v302 = vunpack.c.l.b16 %v152
    %v303 = vunpack.c.h.b16 %v152
    %v304 = vunpack.c.l.b16 %v153
    %v305 = vunpack.c.h.b16 %v153
    %v306 = vunpack.c.l.b16 %v154
    %v307 = vunpack.c.h.b16 %v154
    %v308 = vunpack.c.l.b16 %v155
    %v309 = vunpack.c.h.b16 %v155
    %v310 = vunpack.c.l.b16 %v156
    %v311 = vunpack.c.h.b16 %v156
    %v312 = vunpack.c.l.b16 %v157
    %v313 = vunpack.c.h.b16 %v157
    %v314 = vunpack.c.l.b16 %v158
    %v315 = vunpack.c.h.b16 %v158
    %v316 = vunpack.c.l.b16 %v159
    %v317 = vunpack.c.h.b16 %v159
    %v318 = vunpack.c.l.b16 %v160
    %v319 = vunpack.c.h.b16 %v160
    %v320 = vunpack.c.l.b16 %v161
    %v321 = vunpack.c.h.b16 %v161
    %v322 = vunpack.c.l.b16 %v162
    %v323 = vunpack.c.h.b16 %v162
    %v324 = vunpack.c.l.b16 %v163
    %v325 = vunpack.c.h.b16 %v163
    %v326 = vunpack.c.l.b16 %v164
    %v327 = vunpack.c.h.b16 %v164
    %v328 = vunpack.c.l.b16 %v165
    %v329 = vunpack.c.h.b16 %v165
    %v330 = vunpack.c.l.b16 %v166
    %v331 = vunpack.c.h.b16 %v166
    %v332 = vunpack.c.l.b16 %v167
    %v333 = vunpack.c.h.b16 %v167
    %v334 = vunpack.c.l.b16 %v168
    %v335 = vunpack.c.h.b16 %v168
    %v336 = vunpack.c.l.b16 %v169
    %v337 = vunpack.c.h.b16 %v169
    %v338 = vunpack.c.l.b16 %v170
    %v339 = vunpack.c.h.b16 %v170
    %v340 = vunpack.c.l.b16 %v171
    %v341 = vunpack.c.h.b16 %v171
    %v342 = vunpack.c.l.b16 %v172
    %v343 = vunpack.c.h.b16 %v172
    %v344 = vunpack.c.l.b16 %v173
    %v345 = vunpack.c.h.b16 %v173
    %v346 = vunpack.c.l.b16 %v174
    %v347 = vunpack.c.h.b16 %v174
    %v348 = vunpack.c.l.b16 %v175
    %v349 = vunpack.c.h.b16 %v175
    %v350 = vunpack.c.l.b16 %v176
    %v351 = vunpack.c.h.b16 %v176
    %v352 = vunpack.c.l.b16 %v177
    %v353 = vunpack.c.h.b16 %v177
    %v354 = vunpack.c.l.b16 %v178
    %v355 = vunpack.c.h.b16 %v178
    %v356 = vunpack.c.l.b16 %v179
    %v357 = vunpack.c.h.b16 %v179
    %v358 = vunpack.c.l.b16 %v180
    %v359 = vunpack.c.h.b16 %v180
    %v360 = vunpack.c.l.b16 %v181
    %v361 = vunpack.c.h.b16 %v181
    %v362 = vunpack.c.l.b16 %v182
    %v363 = vunpack.c.h.b16 %v182
    %v364 = vunpack.c.l.b16 %v183
    %v365 = vunpack.c.h.b16 %v183
    %v366 = vpack.c.b16 %v276, %v270
    %v367 = vpack.c.b16 %v277, %v271
    %v368 = vpack.c.b16 %v278, %v272
    %v369 = vpack.c.b16 %v279, %v273
    %v370 = vpack.c.b16 %v280, %v274
    %v371 = vpack.c.b16 %v281, %v275
    %v372 = vpack.c.b16 %v288, %v282
    %v373 = vpack.c.b16 %v289, %v283
    %v374 = vpack.c.b16 %v290, %v284
    %v375 = vpack.c.b16 %v291, %v285
    %v376 = vpack.c.b16 %v292, %v286
    %v377 = vpack.c.b16 %v293, %v287
    %v378 = vpack.c.b16 %v300, %v294
    %v379 = vpack.c.b16 %v301, %v295
    %v380 = vpack.c.b16 %v302, %v296
    %v381 = vpack.c.b16 %v303, %v297
    %v382 = vpack.c.b16 %v304, %v298
    %v383 = vpack.c.b16 %v305, %v299
    %v384 = vpack.c.b16 %v312, %v306
    %v385 = vpack.c.b16 %v313, %v307
    %v386 = vpack.c.b16 %v314, %v308
    %v387 = vpack.c.b16 %v315, %v309
    %v388 = vpack.c.b16 %v316, %v310
    %v389 = vpack.c.b16 %v317, %v311
    %v390 = vpack.c.b16 %v324, %v318
    %v391 = vpack.c.b16 %v325, %v319
    %v392 = vpack.c.b16 %v326, %v320
    %v393 = vpack.c.b16 %v327, %v321
    %v394 = vpack.c.b16 %v328, %v322
    %v395 = vpack.c.b16 %v329, %v323
    %v396 = vpack.c.b16 %v336, %v330
    %v397 = vpack.c.b16 %v337, %v331
    %v398 = vpack.c.b16 %v338, %v332
    %v399 = vpack.c.b16 %v339, %v333
    %v400 = vpack.c.b16 %v340, %v334
    %v401 = vpack.c.b16 %v341, %v335
    %v402 = vpack.c.b16 %v348, %v342
    %v403 = vpack.c.b16 %v349, %v343
    %v404 = vpack.c.b16 %v350, %v344
    %v405 = vpack.c.b16 %v351, %v345
    %v406 = vpack.c.b16 %v352, %v346
    %v407 = vpack.c.b16 %v353, %v347
    %v408 = vpack.c.b16 %v360, %v354
    %v409 = vpack.c.b16 %v361, %v355
    %v410 = vpack.c.b16 %v362, %v356
    %v411 = vpack.c.b16 %v363, %v357
    %v412 = vpack.c.b16 %v364, %v358
    %v413 = vpack.c.b16 %v365, %v359
    %462 = vmatprep.subr.bf16.mxu0 %v367
    %463 = vmatpush1.bf16.msra.mxu0 %v366
    %464 = vmatprep.subr.bf16.mxu0 %v373
    %465 = vmatpush1.bf16.msra.mxu0 %v372
    %466 = vmatprep.subr.bf16.mxu0 %v379
    %467 = vmatpush1.bf16.msra.mxu0 %v378
    %468 = vmatprep.subr.bf16.mxu0 %v385
    %469 = vmatpush1.bf16.msra.mxu0 %v384
    %470 = vmatprep.subr.bf16.mxu0 %v391
    %471 = vmatpush1.bf16.msra.mxu0 %v390
    %472 = vmatprep.subr.bf16.mxu0 %v397
    %473 = vmatpush1.bf16.msra.mxu0 %v396
    %474 = vmatprep.subr.bf16.mxu0 %v403
    %475 = vmatpush1.bf16.msra.mxu0 %v402
    %476 = vmatprep.subr.bf16.mxu0 %v409
    %477 = vmatpush1.bf16.msra.mxu0 %v408
    %478 = vmatprep.subr.bf16.mxu0 0
    %479 = vmatpush1.bf16.msra.mxu0 0
    %480 = vmatprep.subr.bf16.mxu0 0
    %481 = vmatpush1.bf16.msra.mxu0 0
    %482 = vmatprep.subr.bf16.mxu0 0
    %483 = vmatpush1.bf16.msra.mxu0 0
    %484 = vmatprep.subr.bf16.mxu0 0
    %485 = vmatpush1.bf16.msra.mxu0 0
    %486 = vmatprep.subr.bf16.mxu0 0
    %487 = vmatpush1.bf16.msra.mxu0 0
    %488 = vmatprep.subr.bf16.mxu0 0
    %489 = vmatpush1.bf16.msra.mxu0 0
    %490 = vmatprep.subr.bf16.mxu0 0
    %491 = vmatpush1.bf16.msra.mxu0 0
    %492 = vmatprep.subr.bf16.mxu0 0
    %493 = vmatpush1.bf16.msra.mxu0 0
    %494 = vmatprep.mubr.bf16.mxu0 0
    %495 = vmatmul.mubr.bf16.gmra.mrb[0].mxu0 %v220
    %v496 = vpop.f32.mrb[0].mxu0
    %v497 = vadd.f32 %v189, %v496
    %v498 = vpop.f32.mrb[0].mxu0
    %v499 = vadd.f32 %v193, %v498
    %v500 = vpop.f32.mrb[0].mxu0
    %v501 = vadd.f32 %v189, %v500
    %v502 = vpop.f32.mrb[0].mxu0
    %v503 = vadd.f32 %v193, %v502
    %504 = vdwg.mxu0
    %505 = vmatprep.subr.bf16.mxu0 %v369
    %506 = vmatpush1.bf16.msra.mxu0 %v368
    %507 = vmatprep.subr.bf16.mxu0 %v375
    %508 = vmatpush1.bf16.msra.mxu0 %v374
    %509 = vmatprep.subr.bf16.mxu0 %v381
    %510 = vmatpush1.bf16.msra.mxu0 %v380
    %511 = vmatprep.subr.bf16.mxu0 %v387
    %512 = vmatpush1.bf16.msra.mxu0 %v386
    %513 = vmatprep.subr.bf16.mxu0 %v393
    %514 = vmatpush1.bf16.msra.mxu0 %v392
    %515 = vmatprep.subr.bf16.mxu0 %v399
    %516 = vmatpush1.bf16.msra.mxu0 %v398
    %517 = vmatprep.subr.bf16.mxu0 %v405
    %518 = vmatpush1.bf16.msra.mxu0 %v404
    %519 = vmatprep.subr.bf16.mxu0 %v411
    %520 = vmatpush1.bf16.msra.mxu0 %v410
    %521 = vmatprep.subr.bf16.mxu0 0
    %522 = vmatpush1.bf16.msra.mxu0 0
    %523 = vmatprep.subr.bf16.mxu0 0
    %524 = vmatpush1.bf16.msra.mxu0 0
    %525 = vmatprep.subr.bf16.mxu0 0
    %526 = vmatpush1.bf16.msra.mxu0 0
    %527 = vmatprep.subr.bf16.mxu0 0
    %528 = vmatpush1.bf16.msra.mxu0 0
    %529 = vmatprep.subr.bf16.mxu0 0
    %530 = vmatpush1.bf16.msra.mxu0 0
    %531 = vmatprep.subr.bf16.mxu0 0
    %532 = vmatpush1.bf16.msra.mxu0 0
    %533 = vmatprep.subr.bf16.mxu0 0
    %534 = vmatpush1.bf16.msra.mxu0 0
    %535 = vmatprep.subr.bf16.mxu0 0
    %536 = vmatpush1.bf16.msra.mxu0 0
    %537 = vmatprep.mubr.bf16.mxu0 0
    %538 = vmatmul.mubr.bf16.gmra.mrb[0].mxu0 %v220
    %v539 = vpop.f32.mrb[0].mxu0
    %v540 = vadd.f32 %v197, %v539
    %v541 = vpop.f32.mrb[0].mxu0
    %v542 = vadd.f32 %v201, %v541
    %v543 = vpop.f32.mrb[0].mxu0
    %v544 = vadd.f32 %v197, %v543
    %v545 = vpop.f32.mrb[0].mxu0
    %v546 = vadd.f32 %v201, %v545
    %547 = vdwg.mxu0
    %548 = vmatprep.subr.bf16.mxu0 %v371
    %549 = vmatpush1.bf16.msra.mxu0 %v370
    %550 = vmatprep.subr.bf16.mxu0 %v377
    %551 = vmatpush1.bf16.msra.mxu0 %v376
    %552 = vmatprep.subr.bf16.mxu0 %v383
    %553 = vmatpush1.bf16.msra.mxu0 %v382
    %554 = vmatprep.subr.bf16.mxu0 %v389
    %555 = vmatpush1.bf16.msra.mxu0 %v388
    %556 = vmatprep.subr.bf16.mxu0 %v395
    %557 = vmatpush1.bf16.msra.mxu0 %v394
    %558 = vmatprep.subr.bf16.mxu0 %v401
    %559 = vmatpush1.bf16.msra.mxu0 %v400
    %560 = vmatprep.subr.bf16.mxu0 %v407
    %561 = vmatpush1.bf16.msra.mxu0 %v406
    %562 = vmatprep.subr.bf16.mxu0 %v413
    %563 = vmatpush1.bf16.msra.mxu0 %v412
    %564 = vmatprep.subr.bf16.mxu0 0
    %565 = vmatpush1.bf16.msra.mxu0 0
    %566 = vmatprep.subr.bf16.mxu0 0
    %567 = vmatpush1.bf16.msra.mxu0 0
    %568 = vmatprep.subr.bf16.mxu0 0
    %569 = vmatpush1.bf16.msra.mxu0 0
    %570 = vmatprep.subr.bf16.mxu0 0
    %571 = vmatpush1.bf16.msra.mxu0 0
    %572 = vmatprep.subr.bf16.mxu0 0
    %573 = vmatpush1.bf16.msra.mxu0 0
    %574 = vmatprep.subr.bf16.mxu0 0
    %575 = vmatpush1.bf16.msra.mxu0 0
    %576 = vmatprep.subr.bf16.mxu0 0
    %577 = vmatpush1.bf16.msra.mxu0 0
    %578 = vmatprep.subr.bf16.mxu0 0
    %579 = vmatpush1.bf16.msra.mxu0 0
    %580 = vmatprep.mubr.bf16.mxu0 0
    %581 = vmatmul.mubr.bf16.gmra.mrb[0].mxu0 %v220
    %v582 = vpop.f32.mrb[0].mxu0
    %v583 = vadd.f32 %v205, %v582
    %v584 = vpop.f32.mrb[0].mxu0
    %v585 = vadd.f32 %v209, %v584
    %v586 = vpop.f32.mrb[0].mxu0
    %v587 = vadd.f32 %v205, %v586
    %v588 = vpop.f32.mrb[0].mxu0
    %v589 = vadd.f32 %v209, %v588
    %590 = vdwg.mxu0
    %v591 = vmul.f32 %v585, %v542
    %v592 = vmul.f32 %v589, %v546
    %v593 = vadd.f32 %v591, %v583
    %v594 = vadd.f32 %v592, %v587
    %v595 = vmax.f32 %v593, 0.0
    %v596 = vmax.f32 %v594, 0.0
    %597 = vst [vmem:[#allocation4] sm:$0xff] %v497
    %598 = vst [vmem:[#allocation4 + $0x8] sm:$0xff] %v501
    %599 = vst [vmem:[#allocation5] sm:$0xff] 0.0
    %600 = vst [vmem:[#allocation5 + $0x8] sm:$0xff] 0.0
    %s601 = smul.u32 4, 2
    %s602 = smul.u32 %s601, 1
    %s603 = sshll.u32 %s602, 4
    %604 = dma.done [#allocation3], %s603
    %v605 = vld [vmem:[#allocation2] sm:$0xff]
    %v606 = vunpack.c.l.bf16 %v605
    %v607 = vunpack.c.h.bf16 %v605
    %v608 = vld [vmem:[#allocation4] sm:$0xff]
    %v609 = vld [vmem:[#allocation4 + $0x8] sm:$0xff]
    %v612 = vcombine.high %v608, %v608
    %v614 = vunpack.c.l.s4 1966171168
    %v615 = vunpack.c.0.s8 %v614
    %v616 = vlaneseq
    %v617 = vshrl.u32 %v616, 7
    %v618 = vsub.s32 %v615, %v617
    %v619 = vrot.slane %v608, %v618
    %v621 = vunpack.c.l.s4 1966171168
    %v622 = vunpack.c.0.s8 %v621
    %v623 = vlaneseq
    %v624 = vshrl.u32 %v623, 7
    %v625 = vsub.s32 %v622, %v624
    %v626 = vrot.slane %v612, %v625
    %v627 = vcombine.high %v619, %v619
    %v628 = vcombine.high %v626, %v626
    %v630 = vunpack.c.l.s4 1966171168
    %v631 = vunpack.c.0.s8 %v630
    %v632 = vlaneseq
    %v633 = vshrl.u32 %v632, 7
    %v634 = vsub.s32 %v631, %v633
    %v635 = vrot.slane %v619, %v634
    %v637 = vunpack.c.l.s4 1966171168
    %v638 = vunpack.c.0.s8 %v637
    %v639 = vlaneseq
    %v640 = vshrl.u32 %v639, 7
    %v641 = vsub.s32 %v638, %v640
    %v642 = vrot.slane %v626, %v641
    %v644 = vunpack.c.l.s4 1966171168
    %v645 = vunpack.c.0.s8 %v644
    %v646 = vlaneseq
    %v647 = vshrl.u32 %v646, 7
    %v648 = vsub.s32 %v645, %v647
    %v649 = vrot.slane %v627, %v648
    %v651 = vunpack.c.l.s4 1966171168
    %v652 = vunpack.c.0.s8 %v651
    %v653 = vlaneseq
    %v654 = vshrl.u32 %v653, 7
    %v655 = vsub.s32 %v652, %v654
    %v656 = vrot.slane %v628, %v655
    %v657 = vcombine.high %v635, %v635
    %v658 = vcombine.high %v642, %v642
    %v659 = vcombine.high %v649, %v649
    %v660 = vcombine.high %v656, %v656
    %v661 = vcombine.high %v609, %v609
    %v663 = vunpack.c.l.s4 1966171168
    %v664 = vunpack.c.0.s8 %v663
    %v665 = vlaneseq
    %v666 = vshrl.u32 %v665, 7
    %v667 = vsub.s32 %v664, %v666
    %v668 = vrot.slane %v609, %v667
    %v670 = vunpack.c.l.s4 1966171168
    %v671 = vunpack.c.0.s8 %v670
    %v672 = vlaneseq
    %v673 = vshrl.u32 %v672, 7
    %v674 = vsub.s32 %v671, %v673
    %v675 = vrot.slane %v661, %v674
    %v676 = vcombine.high %v668, %v668
    %v677 = vcombine.high %v675, %v675
    %v679 = vunpack.c.l.s4 1966171168
    %v680 = vunpack.c.0.s8 %v679
    %v681 = vlaneseq
    %v682 = vshrl.u32 %v681, 7
    %v683 = vsub.s32 %v680, %v682
    %v684 = vrot.slane %v668, %v683
    %v686 = vunpack.c.l.s4 1966171168
    %v687 = vunpack.c.0.s8 %v686
    %v688 = vlaneseq
    %v689 = vshrl.u32 %v688, 7
    %v690 = vsub.s32 %v687, %v689
    %v691 = vrot.slane %v675, %v690
    %v693 = vunpack.c.l.s4 1966171168
    %v694 = vunpack.c.0.s8 %v693
    %v695 = vlaneseq
    %v696 = vshrl.u32 %v695, 7
    %v697 = vsub.s32 %v694, %v696
    %v698 = vrot.slane %v676, %v697
    %v700 = vunpack.c.l.s4 1966171168
    %v701 = vunpack.c.0.s8 %v700
    %v702 = vlaneseq
    %v703 = vshrl.u32 %v702, 7
    %v704 = vsub.s32 %v701, %v703
    %v705 = vrot.slane %v677, %v704
    %v706 = vcombine.high %v684, %v684
    %v707 = vcombine.high %v691, %v691
    %v708 = vcombine.high %v698, %v698
    %v709 = vcombine.high %v705, %v705
    %v710 = vlaneseq
    %v711 = vshrl.u32 %v710, 7
    %v712 = vsub.s32 0, %v711
    %v713 = vrot.slane %v635, %v712
    %v714 = vlaneseq
    %v715 = vshrl.u32 %v714, 7
    %v716 = vsub.s32 0, %v715
    %v717 = vrot.slane %v649, %v716
    %v718 = vlaneseq
    %v719 = vshrl.u32 %v718, 7
    %v720 = vsub.s32 0, %v719
    %v721 = vrot.slane %v657, %v720
    %v722 = vlaneseq
    %v723 = vshrl.u32 %v722, 7
    %v724 = vsub.s32 0, %v723
    %v725 = vrot.slane %v659, %v724
    %v726 = vlaneseq
    %v727 = vshrl.u32 %v726, 7
    %v728 = vsub.s32 0, %v727
    %v729 = vrot.slane %v642, %v728
    %v730 = vlaneseq
    %v731 = vshrl.u32 %v730, 7
    %v732 = vsub.s32 0, %v731
    %v733 = vrot.slane %v656, %v732
    %v734 = vlaneseq
    %v735 = vshrl.u32 %v734, 7
    %v736 = vsub.s32 0, %v735
    %v737 = vrot.slane %v658, %v736
    %v738 = vlaneseq
    %v739 = vshrl.u32 %v738, 7
    %v740 = vsub.s32 0, %v739
    %v741 = vrot.slane %v660, %v740
    %v742 = vlaneseq
    %v743 = vshrl.u32 %v742, 7
    %v744 = vsub.s32 0, %v743
    %v745 = vrot.slane %v684, %v744
    %v746 = vlaneseq
    %v747 = vshrl.u32 %v746, 7
    %v748 = vsub.s32 0, %v747
    %v749 = vrot.slane %v698, %v748
    %v750 = vlaneseq
    %v751 = vshrl.u32 %v750, 7
    %v752 = vsub.s32 0, %v751
    %v753 = vrot.slane %v706, %v752
    %v754 = vlaneseq
    %v755 = vshrl.u32 %v754, 7
    %v756 = vsub.s32 0, %v755
    %v757 = vrot.slane %v708, %v756
    %v758 = vlaneseq
    %v759 = vshrl.u32 %v758, 7
    %v760 = vsub.s32 0, %v759
    %v761 = vrot.slane %v691, %v760
    %v762 = vlaneseq
    %v763 = vshrl.u32 %v762, 7
    %v764 = vsub.s32 0, %v763
    %v765 = vrot.slane %v705, %v764
    %v766 = vlaneseq
    %v767 = vshrl.u32 %v766, 7
    %v768 = vsub.s32 0, %v767
    %v769 = vrot.slane %v707, %v768
    %v770 = vlaneseq
    %v771 = vshrl.u32 %v770, 7
    %v772 = vsub.s32 0, %v771
    %v773 = vrot.slane %v709, %v772
    %v790 = vmul.f32 %v540, %v713
    %v791 = vmul.f32 %v544, %v713
    %v792 = vmul.f32 %v540, %v717
    %v793 = vmul.f32 %v544, %v717
    %v794 = vmul.f32 %v540, %v721
    %v795 = vmul.f32 %v544, %v721
    %v796 = vmul.f32 %v540, %v725
    %v797 = vmul.f32 %v544, %v725
    %v798 = vmul.f32 %v540, %v729
    %v799 = vmul.f32 %v544, %v729
    %v800 = vmul.f32 %v540, %v733
    %v801 = vmul.f32 %v544, %v733
    %v802 = vmul.f32 %v540, %v737
    %v803 = vmul.f32 %v544, %v737
    %v804 = vmul.f32 %v540, %v741
    %v805 = vmul.f32 %v544, %v741
    %v806 = vmul.f32 %v540, %v745
    %v807 = vmul.f32 %v544, %v745
    %v808 = vmul.f32 %v540, %v749
    %v809 = vmul.f32 %v544, %v749
    %v810 = vmul.f32 %v540, %v753
    %v811 = vmul.f32 %v544, %v753
    %v812 = vmul.f32 %v540, %v757
    %v813 = vmul.f32 %v544, %v757
    %v814 = vmul.f32 %v540, %v761
    %v815 = vmul.f32 %v544, %v761
    %v816 = vmul.f32 %v540, %v765
    %v817 = vmul.f32 %v544, %v765
    %v818 = vmul.f32 %v540, %v769
    %v819 = vmul.f32 %v544, %v769
    %v820 = vmul.f32 %v540, %v773
    %v821 = vmul.f32 %v544, %v773
    %v822 = vadd.f32 %v790, %v499
    %v823 = vadd.f32 %v791, %v503
    %v824 = vadd.f32 %v792, %v499
    %v825 = vadd.f32 %v793, %v503
    %v826 = vadd.f32 %v794, %v499
    %v827 = vadd.f32 %v795, %v503
    %v828 = vadd.f32 %v796, %v499
    %v829 = vadd.f32 %v797, %v503
    %v830 = vadd.f32 %v798, %v499
    %v831 = vadd.f32 %v799, %v503
    %v832 = vadd.f32 %v800, %v499
    %v833 = vadd.f32 %v801, %v503
    %v834 = vadd.f32 %v802, %v499
    %v835 = vadd.f32 %v803, %v503
    %v836 = vadd.f32 %v804, %v499
    %v837 = vadd.f32 %v805, %v503
    %v838 = vadd.f32 %v806, %v499
    %v839 = vadd.f32 %v807, %v503
    %v840 = vadd.f32 %v808, %v499
    %v841 = vadd.f32 %v809, %v503
    %v842 = vadd.f32 %v810, %v499
    %v843 = vadd.f32 %v811, %v503
    %v844 = vadd.f32 %v812, %v499
    %v845 = vadd.f32 %v813, %v503
    %v846 = vadd.f32 %v814, %v499
    %v847 = vadd.f32 %v815, %v503
    %v848 = vadd.f32 %v816, %v499
    %v849 = vadd.f32 %v817, %v503
    %v850 = vadd.f32 %v818, %v499
    %v851 = vadd.f32 %v819, %v503
    %v852 = vadd.f32 %v820, %v499
    %v853 = vadd.f32 %v821, %v503
    %v854 = vmax.f32 %v822, 0.0
    %v855 = vmax.f32 %v823, 0.0
    %v856 = vmax.f32 %v824, 0.0
    %v857 = vmax.f32 %v825, 0.0
    %v858 = vmax.f32 %v826, 0.0
    %v859 = vmax.f32 %v827, 0.0
    %v860 = vmax.f32 %v828, 0.0
    %v861 = vmax.f32 %v829, 0.0
    %v862 = vmax.f32 %v830, 0.0
    %v863 = vmax.f32 %v831, 0.0
    %v864 = vmax.f32 %v832, 0.0
    %v865 = vmax.f32 %v833, 0.0
    %v866 = vmax.f32 %v834, 0.0
    %v867 = vmax.f32 %v835, 0.0
    %v868 = vmax.f32 %v836, 0.0
    %v869 = vmax.f32 %v837, 0.0
    %v870 = vmax.f32 %v838, 0.0
    %v871 = vmax.f32 %v839, 0.0
    %v872 = vmax.f32 %v840, 0.0
    %v873 = vmax.f32 %v841, 0.0
    %v874 = vmax.f32 %v842, 0.0
    %v875 = vmax.f32 %v843, 0.0
    %v876 = vmax.f32 %v844, 0.0
    %v877 = vmax.f32 %v845, 0.0
    %v878 = vmax.f32 %v846, 0.0
    %v879 = vmax.f32 %v847, 0.0
    %v880 = vmax.f32 %v848, 0.0
    %v881 = vmax.f32 %v849, 0.0
    %v882 = vmax.f32 %v850, 0.0
    %v883 = vmax.f32 %v851, 0.0
    %v884 = vmax.f32 %v852, 0.0
    %v885 = vmax.f32 %v853, 0.0
    %v886 = vld [vmem:[#allocation5] sm:$0xff]
    %v887 = vld [vmem:[#allocation5 + $0x8] sm:$0xff]
    %v888 = vlaneseq
    %v889 = vshrl.u32 %v888, 7
    %v890 = vsub.s32 0, %v889
    %v891 = vrot.slane %v606, %v890
    %893 = vbcast.lane.b32.xlu0 %v891, 256
    %v894 = vpop.permute.xlu0 %893
    %s896 = sor.u32 256, 8
    %897 = vbcast.lane.b32.xlu0 %v891, %s896
    %v898 = vpop.permute.xlu0 %897
    %v899 = vlaneseq
    %v900 = vshrl.u32 %v899, 7
    %v901 = vsub.s32 1, %v900
    %v902 = vrot.slane %v606, %v901
    %904 = vbcast.lane.b32.xlu0 %v902, 256
    %v905 = vpop.permute.xlu0 %904
    %s907 = sor.u32 256, 8
    %908 = vbcast.lane.b32.xlu0 %v902, %s907
    %v909 = vpop.permute.xlu0 %908
    %v910 = vlaneseq
    %v911 = vshrl.u32 %v910, 7
    %v912 = vsub.s32 2, %v911
    %v913 = vrot.slane %v606, %v912
    %915 = vbcast.lane.b32.xlu0 %v913, 256
    %v916 = vpop.permute.xlu0 %915
    %s918 = sor.u32 256, 8
    %919 = vbcast.lane.b32.xlu0 %v913, %s918
    %v920 = vpop.permute.xlu0 %919
    %v921 = vlaneseq
    %v922 = vshrl.u32 %v921, 7
    %v923 = vsub.s32 3, %v922
    %v924 = vrot.slane %v606, %v923
    %926 = vbcast.lane.b32.xlu0 %v924, 256
    %v927 = vpop.permute.xlu0 %926
    %s929 = sor.u32 256, 8
    %930 = vbcast.lane.b32.xlu0 %v924, %s929
    %v931 = vpop.permute.xlu0 %930
    %v932 = vlaneseq
    %v933 = vshrl.u32 %v932, 7
    %v934 = vsub.s32 4, %v933
    %v935 = vrot.slane %v606, %v934
    %937 = vbcast.lane.b32.xlu0 %v935, 256
    %v938 = vpop.permute.xlu0 %937
    %s940 = sor.u32 256, 8
    %941 = vbcast.lane.b32.xlu0 %v935, %s940
    %v942 = vpop.permute.xlu0 %941
    %v943 = vlaneseq
    %v944 = vshrl.u32 %v943, 7
    %v945 = vsub.s32 5, %v944
    %v946 = vrot.slane %v606, %v945
    %948 = vbcast.lane.b32.xlu0 %v946, 256
    %v949 = vpop.permute.xlu0 %948
    %s951 = sor.u32 256, 8
    %952 = vbcast.lane.b32.xlu0 %v946, %s951
    %v953 = vpop.permute.xlu0 %952
    %v954 = vlaneseq
    %v955 = vshrl.u32 %v954, 7
    %v956 = vsub.s32 6, %v955
    %v957 = vrot.slane %v606, %v956
    %959 = vbcast.lane.b32.xlu0 %v957, 256
    %v960 = vpop.permute.xlu0 %959
    %s962 = sor.u32 256, 8
    %963 = vbcast.lane.b32.xlu0 %v957, %s962
    %v964 = vpop.permute.xlu0 %963
    %v965 = vlaneseq
    %v966 = vshrl.u32 %v965, 7
    %v967 = vsub.s32 7, %v966
    %v968 = vrot.slane %v606, %v967
    %970 = vbcast.lane.b32.xlu0 %v968, 256
    %v971 = vpop.permute.xlu0 %970
    %s973 = sor.u32 256, 8
    %974 = vbcast.lane.b32.xlu0 %v968, %s973
    %v975 = vpop.permute.xlu0 %974
    %v976 = vlaneseq
    %v977 = vshrl.u32 %v976, 7
    %v978 = vsub.s32 0, %v977
    %v979 = vrot.slane %v607, %v978
    %981 = vbcast.lane.b32.xlu0 %v979, 256
    %v982 = vpop.permute.xlu0 %981
    %s984 = sor.u32 256, 8
    %985 = vbcast.lane.b32.xlu0 %v979, %s984
    %v986 = vpop.permute.xlu0 %985
    %v987 = vlaneseq
    %v988 = vshrl.u32 %v987, 7
    %v989 = vsub.s32 1, %v988
    %v990 = vrot.slane %v607, %v989
    %992 = vbcast.lane.b32.xlu0 %v990, 256
    %v993 = vpop.permute.xlu0 %992
    %s995 = sor.u32 256, 8
    %996 = vbcast.lane.b32.xlu0 %v990, %s995
    %v997 = vpop.permute.xlu0 %996
    %v998 = vlaneseq
    %v999 = vshrl.u32 %v998, 7
    %v1000 = vsub.s32 2, %v999
    %v1001 = vrot.slane %v607, %v1000
    %1003 = vbcast.lane.b32.xlu0 %v1001, 256
    %v1004 = vpop.permute.xlu0 %1003
    %s1006 = sor.u32 256, 8
    %1007 = vbcast.lane.b32.xlu0 %v1001, %s1006
    %v1008 = vpop.permute.xlu0 %1007
    %v1009 = vlaneseq
    %v1010 = vshrl.u32 %v1009, 7
    %v1011 = vsub.s32 3, %v1010
    %v1012 = vrot.slane %v607, %v1011
    %1014 = vbcast.lane.b32.xlu0 %v1012, 256
    %v1015 = vpop.permute.xlu0 %1014
    %s1017 = sor.u32 256, 8
    %1018 = vbcast.lane.b32.xlu0 %v1012, %s1017
    %v1019 = vpop.permute.xlu0 %1018
    %v1020 = vlaneseq
    %v1021 = vshrl.u32 %v1020, 7
    %v1022 = vsub.s32 4, %v1021
    %v1023 = vrot.slane %v607, %v1022
    %1025 = vbcast.lane.b32.xlu0 %v1023, 256
    %v1026 = vpop.permute.xlu0 %1025
    %s1028 = sor.u32 256, 8
    %1029 = vbcast.lane.b32.xlu0 %v1023, %s1028
    %v1030 = vpop.permute.xlu0 %1029
    %v1031 = vlaneseq
    %v1032 = vshrl.u32 %v1031, 7
    %v1033 = vsub.s32 5, %v1032
    %v1034 = vrot.slane %v607, %v1033
    %1036 = vbcast.lane.b32.xlu0 %v1034, 256
    %v1037 = vpop.permute.xlu0 %1036
    %s1039 = sor.u32 256, 8
    %1040 = vbcast.lane.b32.xlu0 %v1034, %s1039
    %v1041 = vpop.permute.xlu0 %1040
    %v1042 = vlaneseq
    %v1043 = vshrl.u32 %v1042, 7
    %v1044 = vsub.s32 6, %v1043
    %v1045 = vrot.slane %v607, %v1044
    %1047 = vbcast.lane.b32.xlu0 %v1045, 256
    %v1048 = vpop.permute.xlu0 %1047
    %s1050 = sor.u32 256, 8
    %1051 = vbcast.lane.b32.xlu0 %v1045, %s1050
    %v1052 = vpop.permute.xlu0 %1051
    %v1053 = vlaneseq
    %v1054 = vshrl.u32 %v1053, 7
    %v1055 = vsub.s32 7, %v1054
    %v1056 = vrot.slane %v607, %v1055
    %1058 = vbcast.lane.b32.xlu0 %v1056, 256
    %v1059 = vpop.permute.xlu0 %1058
    %s1061 = sor.u32 256, 8
    %1062 = vbcast.lane.b32.xlu0 %v1056, %s1061
    %v1063 = vpop.permute.xlu0 %1062
    %v1064 = vmul.f32 %v894, %v854
    %v1065 = vmul.f32 %v898, %v855
    %v1066 = vmul.f32 %v905, %v856
    %v1067 = vmul.f32 %v909, %v857
    %v1068 = vmul.f32 %v916, %v858
    %v1069 = vmul.f32 %v920, %v859
    %v1070 = vmul.f32 %v927, %v860
    %v1071 = vmul.f32 %v931, %v861
    %v1072 = vmul.f32 %v938, %v862
    %v1073 = vmul.f32 %v942, %v863
    %v1074 = vmul.f32 %v949, %v864
    %v1075 = vmul.f32 %v953, %v865
    %v1076 = vmul.f32 %v960, %v866
    %v1077 = vmul.f32 %v964, %v867
    %v1078 = vmul.f32 %v971, %v868
    %v1079 = vmul.f32 %v975, %v869
    %v1080 = vmul.f32 %v982, %v870
    %v1081 = vmul.f32 %v986, %v871
    %v1082 = vmul.f32 %v993, %v872
    %v1083 = vmul.f32 %v997, %v873
    %v1084 = vmul.f32 %v1004, %v874
    %v1085 = vmul.f32 %v1008, %v875
    %v1086 = vmul.f32 %v1015, %v876
    %v1087 = vmul.f32 %v1019, %v877
    %v1088 = vmul.f32 %v1026, %v878
    %v1089 = vmul.f32 %v1030, %v879
    %v1090 = vmul.f32 %v1037, %v880
    %v1091 = vmul.f32 %v1041, %v881
    %v1092 = vmul.f32 %v1048, %v882
    %v1093 = vmul.f32 %v1052, %v883
    %v1094 = vmul.f32 %v1059, %v884
    %v1095 = vmul.f32 %v1063, %v885
    %v1096 = vadd.f32 %v1064, %v1066
    %v1097 = vadd.f32 %v1096, %v1068
    %v1098 = vadd.f32 %v1097, %v1070
    %v1099 = vadd.f32 %v1098, %v1072
    %v1100 = vadd.f32 %v1099, %v1074
    %v1101 = vadd.f32 %v1100, %v1076
    %v1102 = vadd.f32 %v1101, %v1078
    %v1103 = vadd.f32 %v1102, %v1080
    %v1104 = vadd.f32 %v1103, %v1082
    %v1105 = vadd.f32 %v1104, %v1084
    %v1106 = vadd.f32 %v1105, %v1086
    %v1107 = vadd.f32 %v1106, %v1088
    %v1108 = vadd.f32 %v1107, %v1090
    %v1109 = vadd.f32 %v1108, %v1092
    %v1110 = vadd.f32 %v1109, %v1094
    %v1111 = vadd.f32 %v1065, %v1067
    %v1112 = vadd.f32 %v1111, %v1069
    %v1113 = vadd.f32 %v1112, %v1071
    %v1114 = vadd.f32 %v1113, %v1073
    %v1115 = vadd.f32 %v1114, %v1075
    %v1116 = vadd.f32 %v1115, %v1077
    %v1117 = vadd.f32 %v1116, %v1079
    %v1118 = vadd.f32 %v1117, %v1081
    %v1119 = vadd.f32 %v1118, %v1083
    %v1120 = vadd.f32 %v1119, %v1085
    %v1121 = vadd.f32 %v1120, %v1087
    %v1122 = vadd.f32 %v1121, %v1089
    %v1123 = vadd.f32 %v1122, %v1091
    %v1124 = vadd.f32 %v1123, %v1093
    %v1125 = vadd.f32 %v1124, %v1095
    %v1126 = vadd.f32 %v886, %v1110
    %v1127 = vadd.f32 %v887, %v1125
    %1128 = vst [vmem:[#allocation5] sm:$0xff] %v1126
    %1129 = vst [vmem:[#allocation5 + $0x8] sm:$0xff] %v1127
    %v1130 = vld [vmem:[#allocation5] sm:$0xff]
    %v1131 = vld [vmem:[#allocation5 + $0x8] sm:$0xff]
    %1133 = vset.pattern.permute.xlu0 0
    %1134 = vperm.xlu0 %1133, %v90
    %v1135 = vpop.permute.xlu0 %1134
    %1138 = vset.pattern.permute.xlu0 0
    %1139 = vperm.xlu0 %1138, %v91
    %v1140 = vpop.permute.xlu0 %1139
    %v1142 = vmul.f32 %v1130, %v1135
    %v1143 = vmul.f32 %v1131, %v1140
    %v1144 = vadd.f32 %v595, %v1142
    %v1145 = vadd.f32 %v596, %v1143
    %v1146 = vld [vmem:[%s10] sm:$0x1]
    %v1147 = vld [vmem:[%s11] sm:$0x1]
    %v1148 = vadd.f32 %v1144, %v1145
    %v1149 = vrot.slane %v1148, 4
    %v1150 = vadd.f32 %v1148, %v1149
    %v1151 = vrot.slane %v1150, 2
    %v1152 = vadd.f32 %v1150, %v1151
    %v1153 = vrot.slane %v1152, 1
    %v1154 = vadd.f32 %v1152, %v1153
    %v1155 = vmul.f32 %v1154, 0.0625
    %v1156 = vsub.f32 %v1144, %v1155
    %v1157 = vsub.f32 %v1145, %v1155
    %v1158 = vmul.f32 %v1156, %v1156
    %v1159 = vmul.f32 %v1157, %v1157
    %v1160 = vadd.f32 %v1158, %v1159
    %v1161 = vrot.slane %v1160, 4
    %v1162 = vadd.f32 %v1160, %v1161
    %v1163 = vrot.slane %v1162, 2
    %v1164 = vadd.f32 %v1162, %v1163
    %v1165 = vrot.slane %v1164, 1
    %v1166 = vadd.f32 %v1164, %v1165
    %v1167 = vmul.f32 %v1166, 0.0625
    %v1168 = vadd.f32 %v1167, 1e-05
    %v1169 = vrsqrt.pop %v1168
    %v1170 = vmul.f32 %v1156, %v1169
    %v1171 = vmul.f32 %v1157, %v1169
    %v1173 = vlaneseq
    %v1174 = vshrl.u32 %v1173, 7
    %v1175 = vsub.s32 0, %v1174
    %v1176 = vrot.slane %v1146, %v1175
    %v1178 = vmul.f32 %v1170, %v1176
    %v1179 = vmul.f32 %v1171, %v1176
    %v1181 = vlaneseq
    %v1182 = vshrl.u32 %v1181, 7
    %v1183 = vsub.s32 0, %v1182
    %v1184 = vrot.slane %v1147, %v1183
    %v1186 = vadd.f32 %v1178, %v1184
    %v1187 = vadd.f32 %v1179, %v1184
    %p1189 = scmp.lt.u32.totalorder 8, 8
    %p1190 = pneg %p1189
    // Predicated region
    $region100: #{tpu_custom_call.1} parent=1 // pred_check
      _
    $region101: #{tpu_custom_call.1} parent=1 // pred_check_branch
      %1192 = sbr.rel (%p1189) target = $region103
    $region102: #{tpu_custom_call.1} parent=1 // pred_region
      %s1207 = sand.u32 8, 7
      %p1208 = scmp.eq.s32.totalorder %s1207, 0
      // Predicated region
      $region115: #{tpu_custom_call.1} parent=102 // pred_check
        %p1209 = pneg %p1208
      $region116: #{tpu_custom_call.1} parent=102 // pred_check_branch
        %1211 = sbr.rel (%p1209) target = $region118
      $region117: #{tpu_custom_call.1} parent=102 // pred_region
        loop: start=0, step=1, limit=1
        $region119: #{tpu_custom_call.1} parent=117 // loop_pre_header
          _
        $region120: #{tpu_custom_call.1} parent=117 // loop_header
          %s1213 = sphi 0, %s1217
          %p1214 = scmp.ge.s32.totalorder %s1213, 1
          %s1218 = sphi %s1, %s1
          %s1219 = sphi [#allocation2], [#allocation2]
        $region121: #{tpu_custom_call.1} parent=117 // loop_header_branch
          %1216 = sbr.rel (%p1214) target = $region125
        $region122: #{tpu_custom_call.1} parent=117 // loop_body
          %v1220 = vld [vmem:[%s1218] sm:$0xff]
          %1221 = vst [vmem:[%s1219] sm:$0xff] %v1220
        $region123: #{tpu_custom_call.1} parent=117 // loop_footer
          %s1217 = sadd.s32 1, %s1213
        $region124: #{tpu_custom_call.1} parent=117 // loop_footer_branch
          %1212 = sbr.rel target = $region120
        $region125: #{tpu_custom_call.1} parent=117 // loop_exit
          _
      $region118: #{tpu_custom_call.1} parent=102 // pred_fallthru
        _
      %p1222 = pneg %p1208
      // Predicated region
      $region126: #{tpu_custom_call.1} parent=102 // pred_check
        _
      $region127: #{tpu_custom_call.1} parent=102 // pred_check_branch
        %1224 = sbr.rel (%p1208) target = $region129
      $region128: #{tpu_custom_call.1} parent=102 // pred_region
        %s1225 = sand.u32 8, 7
      $region129: #{tpu_custom_call.1} parent=102 // pred_fallthru
        _
    $region103: #{tpu_custom_call.1} parent=1 // pred_fallthru
      _
    // Predicated region
    $region104: #{tpu_custom_call.1} parent=1 // pred_check
      %p1193 = pneg %p1189
    $region105: #{tpu_custom_call.1} parent=1 // pred_check_branch
      %1195 = sbr.rel (%p1193) target = $region107
    $region106: #{tpu_custom_call.1} parent=1 // pred_region
      %s1196 = sshllo.u32 0, 8
      loop: start=0, step=1, limit=1
      $region108: #{tpu_custom_call.1} parent=106 // loop_pre_header
        _
      $region109: #{tpu_custom_call.1} parent=106 // loop_header
        %s1198 = sphi 0, %s1202
        %p1199 = scmp.ge.s32.totalorder %s1198, 1
        %s1203 = sphi %s1, %s1
        %s1204 = sphi [#allocation2], [#allocation2]
      $region110: #{tpu_custom_call.1} parent=106 // loop_header_branch
        %1201 = sbr.rel (%p1199) target = $region114
      $region111: #{tpu_custom_call.1} parent=106 // loop_body
        %v1205 = vld [vmem:[%s1203] sm:%s1196]
        %1206 = vst [vmem:[%s1204] sm:%s1196] %v1205
      $region112: #{tpu_custom_call.1} parent=106 // loop_footer
        %s1202 = sadd.s32 1, %s1198
      $region113: #{tpu_custom_call.1} parent=106 // loop_footer_branch
        %1197 = sbr.rel target = $region109
      $region114: #{tpu_custom_call.1} parent=106 // loop_exit
        _
    $region107: #{tpu_custom_call.1} parent=1 // pred_fallthru
      _
    // Predicated region
    $region130: #{tpu_custom_call.1} parent=1 // pred_check
      _
    $region131: #{tpu_custom_call.1} parent=1 // pred_check_branch
      %1228 = sbr.rel (0) target = $region133
    $region132: #{tpu_custom_call.1} parent=1 // pred_region
      %1229 = vsyncadd [#allocation3], 128
    $region133: #{tpu_custom_call.1} parent=1 // pred_fallthru
      _
    %v1230 = vld [vmem:[#allocation9] sm:$0xff]
    %v1231 = vld [vmem:[#allocation9 + $0x8] sm:$0xff]
    %v1232 = vld [vmem:[#allocation9 + $0x10] sm:$0xff]
    %v1233 = vld [vmem:[#allocation9 + $0x18] sm:$0xff]
    %v1234 = vld [vmem:[#allocation9 + $0x20] sm:$0xff]
    %v1235 = vld [vmem:[#allocation9 + $0x28] sm:$0xff]
    %v1236 = vld [vmem:[#allocation9 + $0x30] sm:$0xff]
    %v1237 = vld [vmem:[#allocation9 + $0x38] sm:$0xff]
    %v1238 = vld [vmem:[#allocation9 + $0x40] sm:$0xff]
    %v1239 = vld [vmem:[#allocation9 + $0x48] sm:$0xff]
    %v1240 = vld [vmem:[#allocation9 + $0x50] sm:$0xff]
    %v1241 = vld [vmem:[#allocation9 + $0x58] sm:$0xff]
    %v1242 = vld [vmem:[#allocation9 + $0x60] sm:$0xff]
    %v1243 = vld [vmem:[#allocation9 + $0x68] sm:$0xff]
    %v1244 = vld [vmem:[#allocation9 + $0x70] sm:$0xff]
    %v1245 = vld [vmem:[#allocation9 + $0x78] sm:$0xff]
    %v1246 = vld [vmem:[#allocation9 + $0x80] sm:$0xff]
    %v1247 = vld [vmem:[#allocation9 + $0x88] sm:$0xff]
    %v1248 = vld [vmem:[#allocation9 + $0x90] sm:$0xff]
    %v1249 = vld [vmem:[#allocation9 + $0x98] sm:$0xff]
    %v1250 = vld [vmem:[#allocation9 + $0xa0] sm:$0xff]
    %v1251 = vld [vmem:[#allocation9 + $0xa8] sm:$0xff]
    %v1252 = vld [vmem:[#allocation9 + $0xb0] sm:$0xff]
    %v1253 = vld [vmem:[#allocation9 + $0xb8] sm:$0xff]
    %v1254 = vld [vmem:[#allocation9 + $0xc0] sm:$0xff]
    %v1255 = vld [vmem:[#allocation9 + $0xc8] sm:$0xff]
    %v1256 = vld [vmem:[#allocation9 + $0xd0] sm:$0xff]
    %v1257 = vld [vmem:[#allocation9 + $0xd8] sm:$0xff]
    %v1258 = vld [vmem:[#allocation9 + $0xe0] sm:$0xff]
    %v1259 = vld [vmem:[#allocation9 + $0xe8] sm:$0xff]
    %v1260 = vld [vmem:[#allocation9 + $0xf0] sm:$0xff]
    %v1261 = vld [vmem:[#allocation9 + $0xf8] sm:$0xff]
    %v1262 = vld [vmem:[#allocation9 + $0x100] sm:$0xff]
    %v1263 = vld [vmem:[#allocation9 + $0x108] sm:$0xff]
    %v1264 = vld [vmem:[#allocation9 + $0x110] sm:$0xff]
    %v1265 = vld [vmem:[#allocation9 + $0x118] sm:$0xff]
    %v1266 = vld [vmem:[#allocation9 + $0x120] sm:$0xff]
    %v1267 = vld [vmem:[#allocation9 + $0x128] sm:$0xff]
    %v1268 = vld [vmem:[#allocation9 + $0x130] sm:$0xff]
    %v1269 = vld [vmem:[#allocation9 + $0x138] sm:$0xff]
    %v1270 = vld [vmem:[#allocation9 + $0x140] sm:$0xff]
    %v1271 = vld [vmem:[#allocation9 + $0x148] sm:$0xff]
    %v1272 = vld [vmem:[#allocation9 + $0x150] sm:$0xff]
    %v1273 = vld [vmem:[#allocation9 + $0x158] sm:$0xff]
    %v1274 = vld [vmem:[#allocation9 + $0x160] sm:$0xff]
    %v1275 = vld [vmem:[#allocation9 + $0x168] sm:$0xff]
    %v1276 = vld [vmem:[#allocation9 + $0x170] sm:$0xff]
    %v1277 = vld [vmem:[#allocation9 + $0x178] sm:$0xff]
    %v1278 = vld [vmem:[%s7] sm:$0x3f]
    %v1279 = vpack.c.bf16 %v1187, %v1186
    %v1281 = vlaneseq
    %v1282 = vshrl.u32 %v1281, 7
    %v1283 = vsub.s32 0, %v1282
    %v1284 = vrot.slane %v1278, %v1283
    %v1285 = vlaneseq
    %v1286 = vshrl.u32 %v1285, 7
    %v1287 = vsub.s32 1, %v1286
    %v1288 = vrot.slane %v1278, %v1287
    %v1289 = vlaneseq
    %v1290 = vshrl.u32 %v1289, 7
    %v1291 = vsub.s32 2, %v1290
    %v1292 = vrot.slane %v1278, %v1291
    %v1293 = vlaneseq
    %v1294 = vshrl.u32 %v1293, 7
    %v1295 = vsub.s32 3, %v1294
    %v1296 = vrot.slane %v1278, %v1295
    %v1297 = vlaneseq
    %v1298 = vshrl.u32 %v1297, 7
    %v1299 = vsub.s32 4, %v1298
    %v1300 = vrot.slane %v1278, %v1299
    %v1301 = vlaneseq
    %v1302 = vshrl.u32 %v1301, 7
    %v1303 = vsub.s32 5, %v1302
    %v1304 = vrot.slane %v1278, %v1303
    %v1359 = vunpack.c.l.b16 %v1230
    %v1360 = vunpack.c.h.b16 %v1230
    %v1361 = vunpack.c.l.b16 %v1231
    %v1362 = vunpack.c.h.b16 %v1231
    %v1363 = vunpack.c.l.b16 %v1232
    %v1364 = vunpack.c.h.b16 %v1232
    %v1365 = vunpack.c.l.b16 %v1233
    %v1366 = vunpack.c.h.b16 %v1233
    %v1367 = vunpack.c.l.b16 %v1234
    %v1368 = vunpack.c.h.b16 %v1234
    %v1369 = vunpack.c.l.b16 %v1235
    %v1370 = vunpack.c.h.b16 %v1235
    %v1371 = vunpack.c.l.b16 %v1236
    %v1372 = vunpack.c.h.b16 %v1236
    %v1373 = vunpack.c.l.b16 %v1237
    %v1374 = vunpack.c.h.b16 %v1237
    %v1375 = vunpack.c.l.b16 %v1238
    %v1376 = vunpack.c.h.b16 %v1238
    %v1377 = vunpack.c.l.b16 %v1239
    %v1378 = vunpack.c.h.b16 %v1239
    %v1379 = vunpack.c.l.b16 %v1240
    %v1380 = vunpack.c.h.b16 %v1240
    %v1381 = vunpack.c.l.b16 %v1241
    %v1382 = vunpack.c.h.b16 %v1241
    %v1383 = vunpack.c.l.b16 %v1242
    %v1384 = vunpack.c.h.b16 %v1242
    %v1385 = vunpack.c.l.b16 %v1243
    %v1386 = vunpack.c.h.b16 %v1243
    %v1387 = vunpack.c.l.b16 %v1244
    %v1388 = vunpack.c.h.b16 %v1244
    %v1389 = vunpack.c.l.b16 %v1245
    %v1390 = vunpack.c.h.b16 %v1245
    %v1391 = vunpack.c.l.b16 %v1246
    %v1392 = vunpack.c.h.b16 %v1246
    %v1393 = vunpack.c.l.b16 %v1247
    %v1394 = vunpack.c.h.b16 %v1247
    %v1395 = vunpack.c.l.b16 %v1248
    %v1396 = vunpack.c.h.b16 %v1248
    %v1397 = vunpack.c.l.b16 %v1249
    %v1398 = vunpack.c.h.b16 %v1249
    %v1399 = vunpack.c.l.b16 %v1250
    %v1400 = vunpack.c.h.b16 %v1250
    %v1401 = vunpack.c.l.b16 %v1251
    %v1402 = vunpack.c.h.b16 %v1251
    %v1403 = vunpack.c.l.b16 %v1252
    %v1404 = vunpack.c.h.b16 %v1252
    %v1405 = vunpack.c.l.b16 %v1253
    %v1406 = vunpack.c.h.b16 %v1253
    %v1407 = vunpack.c.l.b16 %v1254
    %v1408 = vunpack.c.h.b16 %v1254
    %v1409 = vunpack.c.l.b16 %v1255
    %v1410 = vunpack.c.h.b16 %v1255
    %v1411 = vunpack.c.l.b16 %v1256
    %v1412 = vunpack.c.h.b16 %v1256
    %v1413 = vunpack.c.l.b16 %v1257
    %v1414 = vunpack.c.h.b16 %v1257
    %v1415 = vunpack.c.l.b16 %v1258
    %v1416 = vunpack.c.h.b16 %v1258
    %v1417 = vunpack.c.l.b16 %v1259
    %v1418 = vunpack.c.h.b16 %v1259
    %v1419 = vunpack.c.l.b16 %v1260
    %v1420 = vunpack.c.h.b16 %v1260
    %v1421 = vunpack.c.l.b16 %v1261
    %v1422 = vunpack.c.h.b16 %v1261
    %v1423 = vunpack.c.l.b16 %v1262
    %v1424 = vunpack.c.h.b16 %v1262
    %v1425 = vunpack.c.l.b16 %v1263
    %v1426 = vunpack.c.h.b16 %v1263
    %v1427 = vunpack.c.l.b16 %v1264
    %v1428 = vunpack.c.h.b16 %v1264
    %v1429 = vunpack.c.l.b16 %v1265
    %v1430 = vunpack.c.h.b16 %v1265
    %v1431 = vunpack.c.l.b16 %v1266
    %v1432 = vunpack.c.h.b16 %v1266
    %v1433 = vunpack.c.l.b16 %v1267
    %v1434 = vunpack.c.h.b16 %v1267
    %v1435 = vunpack.c.l.b16 %v1268
    %v1436 = vunpack.c.h.b16 %v1268
    %v1437 = vunpack.c.l.b16 %v1269
    %v1438 = vunpack.c.h.b16 %v1269
    %v1439 = vunpack.c.l.b16 %v1270
    %v1440 = vunpack.c.h.b16 %v1270
    %v1441 = vunpack.c.l.b16 %v1271
    %v1442 = vunpack.c.h.b16 %v1271
    %v1443 = vunpack.c.l.b16 %v1272
    %v1444 = vunpack.c.h.b16 %v1272
    %v1445 = vunpack.c.l.b16 %v1273
    %v1446 = vunpack.c.h.b16 %v1273
    %v1447 = vunpack.c.l.b16 %v1274
    %v1448 = vunpack.c.h.b16 %v1274
    %v1449 = vunpack.c.l.b16 %v1275
    %v1450 = vunpack.c.h.b16 %v1275
    %v1451 = vunpack.c.l.b16 %v1276
    %v1452 = vunpack.c.h.b16 %v1276
    %v1453 = vunpack.c.l.b16 %v1277
    %v1454 = vunpack.c.h.b16 %v1277
    %v1455 = vpack.c.b16 %v1365, %v1359
    %v1456 = vpack.c.b16 %v1366, %v1360
    %v1457 = vpack.c.b16 %v1367, %v1361
    %v1458 = vpack.c.b16 %v1368, %v1362
    %v1459 = vpack.c.b16 %v1369, %v1363
    %v1460 = vpack.c.b16 %v1370, %v1364
    %v1461 = vpack.c.b16 %v1377, %v1371
    %v1462 = vpack.c.b16 %v1378, %v1372
    %v1463 = vpack.c.b16 %v1379, %v1373
    %v1464 = vpack.c.b16 %v1380, %v1374
    %v1465 = vpack.c.b16 %v1381, %v1375
    %v1466 = vpack.c.b16 %v1382, %v1376
    %v1467 = vpack.c.b16 %v1389, %v1383
    %v1468 = vpack.c.b16 %v1390, %v1384
    %v1469 = vpack.c.b16 %v1391, %v1385
    %v1470 = vpack.c.b16 %v1392, %v1386
    %v1471 = vpack.c.b16 %v1393, %v1387
    %v1472 = vpack.c.b16 %v1394, %v1388
    %v1473 = vpack.c.b16 %v1401, %v1395
    %v1474 = vpack.c.b16 %v1402, %v1396
    %v1475 = vpack.c.b16 %v1403, %v1397
    %v1476 = vpack.c.b16 %v1404, %v1398
    %v1477 = vpack.c.b16 %v1405, %v1399
    %v1478 = vpack.c.b16 %v1406, %v1400
    %v1479 = vpack.c.b16 %v1413, %v1407
    %v1480 = vpack.c.b16 %v1414, %v1408
    %v1481 = vpack.c.b16 %v1415, %v1409
    %v1482 = vpack.c.b16 %v1416, %v1410
    %v1483 = vpack.c.b16 %v1417, %v1411
    %v1484 = vpack.c.b16 %v1418, %v1412
    %v1485 = vpack.c.b16 %v1425, %v1419
    %v1486 = vpack.c.b16 %v1426, %v1420
    %v1487 = vpack.c.b16 %v1427, %v1421
    %v1488 = vpack.c.b16 %v1428, %v1422
    %v1489 = vpack.c.b16 %v1429, %v1423
    %v1490 = vpack.c.b16 %v1430, %v1424
    %v1491 = vpack.c.b16 %v1437, %v1431
    %v1492 = vpack.c.b16 %v1438, %v1432
    %v1493 = vpack.c.b16 %v1439, %v1433
    %v1494 = vpack.c.b16 %v1440, %v1434
    %v1495 = vpack.c.b16 %v1441, %v1435
    %v1496 = vpack.c.b16 %v1442, %v1436
    %v1497 = vpack.c.b16 %v1449, %v1443
    %v1498 = vpack.c.b16 %v1450, %v1444
    %v1499 = vpack.c.b16 %v1451, %v1445
    %v1500 = vpack.c.b16 %v1452, %v1446
    %v1501 = vpack.c.b16 %v1453, %v1447
    %v1502 = vpack.c.b16 %v1454, %v1448
    %1551 = vmatprep.subr.bf16.mxu0 %v1456
    %1552 = vmatpush1.bf16.msra.mxu0 %v1455
    %1553 = vmatprep.subr.bf16.mxu0 %v1462
    %1554 = vmatpush1.bf16.msra.mxu0 %v1461
    %1555 = vmatprep.subr.bf16.mxu0 %v1468
    %1556 = vmatpush1.bf16.msra.mxu0 %v1467
    %1557 = vmatprep.subr.bf16.mxu0 %v1474
    %1558 = vmatpush1.bf16.msra.mxu0 %v1473
    %1559 = vmatprep.subr.bf16.mxu0 %v1480
    %1560 = vmatpush1.bf16.msra.mxu0 %v1479
    %1561 = vmatprep.subr.bf16.mxu0 %v1486
    %1562 = vmatpush1.bf16.msra.mxu0 %v1485
    %1563 = vmatprep.subr.bf16.mxu0 %v1492
    %1564 = vmatpush1.bf16.msra.mxu0 %v1491
    %1565 = vmatprep.subr.bf16.mxu0 %v1498
    %1566 = vmatpush1.bf16.msra.mxu0 %v1497
    %1567 = vmatprep.subr.bf16.mxu0 0
    %1568 = vmatpush1.bf16.msra.mxu0 0
    %1569 = vmatprep.subr.bf16.mxu0 0
    %1570 = vmatpush1.bf16.msra.mxu0 0
    %1571 = vmatprep.subr.bf16.mxu0 0
    %1572 = vmatpush1.bf16.msra.mxu0 0
    %1573 = vmatprep.subr.bf16.mxu0 0
    %1574 = vmatpush1.bf16.msra.mxu0 0
    %1575 = vmatprep.subr.bf16.mxu0 0
    %1576 = vmatpush1.bf16.msra.mxu0 0
    %1577 = vmatprep.subr.bf16.mxu0 0
    %1578 = vmatpush1.bf16.msra.mxu0 0
    %1579 = vmatprep.subr.bf16.mxu0 0
    %1580 = vmatpush1.bf16.msra.mxu0 0
    %1581 = vmatprep.subr.bf16.mxu0 0
    %1582 = vmatpush1.bf16.msra.mxu0 0
    %1583 = vmatprep.mubr.bf16.mxu0 0
    %1584 = vmatmul.mubr.bf16.gmra.mrb[0].mxu0 %v1279
    %v1585 = vpop.f32.mrb[0].mxu0
    %v1586 = vadd.f32 %v1284, %v1585
    %v1587 = vpop.f32.mrb[0].mxu0
    %v1588 = vadd.f32 %v1288, %v1587
    %v1589 = vpop.f32.mrb[0].mxu0
    %v1590 = vadd.f32 %v1284, %v1589
    %v1591 = vpop.f32.mrb[0].mxu0
    %v1592 = vadd.f32 %v1288, %v1591
    %1593 = vdwg.mxu0
    %1594 = vmatprep.subr.bf16.mxu0 %v1458
    %1595 = vmatpush1.bf16.msra.mxu0 %v1457
    %1596 = vmatprep.subr.bf16.mxu0 %v1464
    %1597 = vmatpush1.bf16.msra.mxu0 %v1463
    %1598 = vmatprep.subr.bf16.mxu0 %v1470
    %1599 = vmatpush1.bf16.msra.mxu0 %v1469
    %1600 = vmatprep.subr.bf16.mxu0 %v1476
    %1601 = vmatpush1.bf16.msra.mxu0 %v1475
    %1602 = vmatprep.subr.bf16.mxu0 %v1482
    %1603 = vmatpush1.bf16.msra.mxu0 %v1481
    %1604 = vmatprep.subr.bf16.mxu0 %v1488
    %1605 = vmatpush1.bf16.msra.mxu0 %v1487
    %1606 = vmatprep.subr.bf16.mxu0 %v1494
    %1607 = vmatpush1.bf16.msra.mxu0 %v1493
    %1608 = vmatprep.subr.bf16.mxu0 %v1500
    %1609 = vmatpush1.bf16.msra.mxu0 %v1499
    %1610 = vmatprep.subr.bf16.mxu0 0
    %1611 = vmatpush1.bf16.msra.mxu0 0
    %1612 = vmatprep.subr.bf16.mxu0 0
    %1613 = vmatpush1.bf16.msra.mxu0 0
    %1614 = vmatprep.subr.bf16.mxu0 0
    %1615 = vmatpush1.bf16.msra.mxu0 0
    %1616 = vmatprep.subr.bf16.mxu0 0
    %1617 = vmatpush1.bf16.msra.mxu0 0
    %1618 = vmatprep.subr.bf16.mxu0 0
    %1619 = vmatpush1.bf16.msra.mxu0 0
    %1620 = vmatprep.subr.bf16.mxu0 0
    %1621 = vmatpush1.bf16.msra.mxu0 0
    %1622 = vmatprep.subr.bf16.mxu0 0
    %1623 = vmatpush1.bf16.msra.mxu0 0
    %1624 = vmatprep.subr.bf16.mxu0 0
    %1625 = vmatpush1.bf16.msra.mxu0 0
    %1626 = vmatprep.mubr.bf16.mxu0 0
    %1627 = vmatmul.mubr.bf16.gmra.mrb[0].mxu0 %v1279
    %v1628 = vpop.f32.mrb[0].mxu0
    %v1629 = vadd.f32 %v1292, %v1628
    %v1630 = vpop.f32.mrb[0].mxu0
    %v1631 = vadd.f32 %v1296, %v1630
    %v1632 = vpop.f32.mrb[0].mxu0
    %v1633 = vadd.f32 %v1292, %v1632
    %v1634 = vpop.f32.mrb[0].mxu0
    %v1635 = vadd.f32 %v1296, %v1634
    %1636 = vdwg.mxu0
    %1637 = vmatprep.subr.bf16.mxu0 %v1460
    %1638 = vmatpush1.bf16.msra.mxu0 %v1459
    %1639 = vmatprep.subr.bf16.mxu0 %v1466
    %1640 = vmatpush1.bf16.msra.mxu0 %v1465
    %1641 = vmatprep.subr.bf16.mxu0 %v1472
    %1642 = vmatpush1.bf16.msra.mxu0 %v1471
    %1643 = vmatprep.subr.bf16.mxu0 %v1478
    %1644 = vmatpush1.bf16.msra.mxu0 %v1477
    %1645 = vmatprep.subr.bf16.mxu0 %v1484
    %1646 = vmatpush1.bf16.msra.mxu0 %v1483
    %1647 = vmatprep.subr.bf16.mxu0 %v1490
    %1648 = vmatpush1.bf16.msra.mxu0 %v1489
    %1649 = vmatprep.subr.bf16.mxu0 %v1496
    %1650 = vmatpush1.bf16.msra.mxu0 %v1495
    %1651 = vmatprep.subr.bf16.mxu0 %v1502
    %1652 = vmatpush1.bf16.msra.mxu0 %v1501
    %1653 = vmatprep.subr.bf16.mxu0 0
    %1654 = vmatpush1.bf16.msra.mxu0 0
    %1655 = vmatprep.subr.bf16.mxu0 0
    %1656 = vmatpush1.bf16.msra.mxu0 0
    %1657 = vmatprep.subr.bf16.mxu0 0
    %1658 = vmatpush1.bf16.msra.mxu0 0
    %1659 = vmatprep.subr.bf16.mxu0 0
    %1660 = vmatpush1.bf16.msra.mxu0 0
    %1661 = vmatprep.subr.bf16.mxu0 0
    %1662 = vmatpush1.bf16.msra.mxu0 0
    %1663 = vmatprep.subr.bf16.mxu0 0
    %1664 = vmatpush1.bf16.msra.mxu0 0
    %1665 = vmatprep.subr.bf16.mxu0 0
    %1666 = vmatpush1.bf16.msra.mxu0 0
    %1667 = vmatprep.subr.bf16.mxu0 0
    %1668 = vmatpush1.bf16.msra.mxu0 0
    %1669 = vmatprep.mubr.bf16.mxu0 0
    %1670 = vmatmul.mubr.bf16.gmra.mrb[0].mxu0 %v1279
    %v1671 = vpop.f32.mrb[0].mxu0
    %v1672 = vadd.f32 %v1300, %v1671
    %v1673 = vpop.f32.mrb[0].mxu0
    %v1674 = vadd.f32 %v1304, %v1673
    %v1675 = vpop.f32.mrb[0].mxu0
    %v1676 = vadd.f32 %v1300, %v1675
    %v1677 = vpop.f32.mrb[0].mxu0
    %v1678 = vadd.f32 %v1304, %v1677
    %1679 = vdwg.mxu0
    %v1680 = vmul.f32 %v1674, %v1631
    %v1681 = vmul.f32 %v1678, %v1635
    %v1682 = vadd.f32 %v1680, %v1672
    %v1683 = vadd.f32 %v1681, %v1676
    %v1684 = vmax.f32 %v1682, 0.0
    %v1685 = vmax.f32 %v1683, 0.0
    %1686 = vst [vmem:[#allocation4] sm:$0xff] %v1586
    %1687 = vst [vmem:[#allocation4 + $0x8] sm:$0xff] %v1590
    %1688 = vst [vmem:[#allocation5] sm:$0xff] 0.0
    %1689 = vst [vmem:[#allocation5 + $0x8] sm:$0xff] 0.0
    %s1690 = sshll.u32 %s602, 4
    %1691 = dma.done [#allocation3], %s1690
    %v1692 = vld [vmem:[#allocation2] sm:$0xff]
    %v1693 = vunpack.c.l.bf16 %v1692
    %v1694 = vunpack.c.h.bf16 %v1692
    %v1695 = vld [vmem:[#allocation4] sm:$0xff]
    %v1696 = vld [vmem:[#allocation4 + $0x8] sm:$0xff]
    %v1699 = vcombine.high %v1695, %v1695
    %v1701 = vunpack.c.l.s4 1966171168
    %v1702 = vunpack.c.0.s8 %v1701
    %v1703 = vlaneseq
    %v1704 = vshrl.u32 %v1703, 7
    %v1705 = vsub.s32 %v1702, %v1704
    %v1706 = vrot.slane %v1695, %v1705
    %v1708 = vunpack.c.l.s4 1966171168
    %v1709 = vunpack.c.0.s8 %v1708
    %v1710 = vlaneseq
    %v1711 = vshrl.u32 %v1710, 7
    %v1712 = vsub.s32 %v1709, %v1711
    %v1713 = vrot.slane %v1699, %v1712
    %v1714 = vcombine.high %v1706, %v1706
    %v1715 = vcombine.high %v1713, %v1713
    %v1717 = vunpack.c.l.s4 1966171168
    %v1718 = vunpack.c.0.s8 %v1717
    %v1719 = vlaneseq
    %v1720 = vshrl.u32 %v1719, 7
    %v1721 = vsub.s32 %v1718, %v1720
    %v1722 = vrot.slane %v1706, %v1721
    %v1724 = vunpack.c.l.s4 1966171168
    %v1725 = vunpack.c.0.s8 %v1724
    %v1726 = vlaneseq
    %v1727 = vshrl.u32 %v1726, 7
    %v1728 = vsub.s32 %v1725, %v1727
    %v1729 = vrot.slane %v1713, %v1728
    %v1731 = vunpack.c.l.s4 1966171168
    %v1732 = vunpack.c.0.s8 %v1731
    %v1733 = vlaneseq
    %v1734 = vshrl.u32 %v1733, 7
    %v1735 = vsub.s32 %v1732, %v1734
    %v1736 = vrot.slane %v1714, %v1735
    %v1738 = vunpack.c.l.s4 1966171168
    %v1739 = vunpack.c.0.s8 %v1738
    %v1740 = vlaneseq
    %v1741 = vshrl.u32 %v1740, 7
    %v1742 = vsub.s32 %v1739, %v1741
    %v1743 = vrot.slane %v1715, %v1742
    %v1744 = vcombine.high %v1722, %v1722
    %v1745 = vcombine.high %v1729, %v1729
    %v1746 = vcombine.high %v1736, %v1736
    %v1747 = vcombine.high %v1743, %v1743
    %v1748 = vcombine.high %v1696, %v1696
    %v1750 = vunpack.c.l.s4 1966171168
    %v1751 = vunpack.c.0.s8 %v1750
    %v1752 = vlaneseq
    %v1753 = vshrl.u32 %v1752, 7
    %v1754 = vsub.s32 %v1751, %v1753
    %v1755 = vrot.slane %v1696, %v1754
    %v1757 = vunpack.c.l.s4 1966171168
    %v1758 = vunpack.c.0.s8 %v1757
    %v1759 = vlaneseq
    %v1760 = vshrl.u32 %v1759, 7
    %v1761 = vsub.s32 %v1758, %v1760
    %v1762 = vrot.slane %v1748, %v1761
    %v1763 = vcombine.high %v1755, %v1755
    %v1764 = vcombine.high %v1762, %v1762
    %v1766 = vunpack.c.l.s4 1966171168
    %v1767 = vunpack.c.0.s8 %v1766
    %v1768 = vlaneseq
    %v1769 = vshrl.u32 %v1768, 7
    %v1770 = vsub.s32 %v1767, %v1769
    %v1771 = vrot.slane %v1755, %v1770
    %v1773 = vunpack.c.l.s4 1966171168
    %v1774 = vunpack.c.0.s8 %v1773
    %v1775 = vlaneseq
    %v1776 = vshrl.u32 %v1775, 7
    %v1777 = vsub.s32 %v1774, %v1776
    %v1778 = vrot.slane %v1762, %v1777
    %v1780 = vunpack.c.l.s4 1966171168
    %v1781 = vunpack.c.0.s8 %v1780
    %v1782 = vlaneseq
    %v1783 = vshrl.u32 %v1782, 7
    %v1784 = vsub.s32 %v1781, %v1783
    %v1785 = vrot.slane %v1763, %v1784
    %v1787 = vunpack.c.l.s4 1966171168
    %v1788 = vunpack.c.0.s8 %v1787
    %v1789 = vlaneseq
    %v1790 = vshrl.u32 %v1789, 7
    %v1791 = vsub.s32 %v1788, %v1790
    %v1792 = vrot.slane %v1764, %v1791
    %v1793 = vcombine.high %v1771, %v1771
    %v1794 = vcombine.high %v1778, %v1778
    %v1795 = vcombine.high %v1785, %v1785
    %v1796 = vcombine.high %v1792, %v1792
    %v1797 = vlaneseq
    %v1798 = vshrl.u32 %v1797, 7
    %v1799 = vsub.s32 0, %v1798
    %v1800 = vrot.slane %v1722, %v1799
    %v1801 = vlaneseq
    %v1802 = vshrl.u32 %v1801, 7
    %v1803 = vsub.s32 0, %v1802
    %v1804 = vrot.slane %v1736, %v1803
    %v1805 = vlaneseq
    %v1806 = vshrl.u32 %v1805, 7
    %v1807 = vsub.s32 0, %v1806
    %v1808 = vrot.slane %v1744, %v1807
    %v1809 = vlaneseq
    %v1810 = vshrl.u32 %v1809, 7
    %v1811 = vsub.s32 0, %v1810
    %v1812 = vrot.slane %v1746, %v1811
    %v1813 = vlaneseq
    %v1814 = vshrl.u32 %v1813, 7
    %v1815 = vsub.s32 0, %v1814
    %v1816 = vrot.slane %v1729, %v1815
    %v1817 = vlaneseq
    %v1818 = vshrl.u32 %v1817, 7
    %v1819 = vsub.s32 0, %v1818
    %v1820 = vrot.slane %v1743, %v1819
    %v1821 = vlaneseq
    %v1822 = vshrl.u32 %v1821, 7
    %v1823 = vsub.s32 0, %v1822
    %v1824 = vrot.slane %v1745, %v1823
    %v1825 = vlaneseq
    %v1826 = vshrl.u32 %v1825, 7
    %v1827 = vsub.s32 0, %v1826
    %v1828 = vrot.slane %v1747, %v1827
    %v1829 = vlaneseq
    %v1830 = vshrl.u32 %v1829, 7
    %v1831 = vsub.s32 0, %v1830
    %v1832 = vrot.slane %v1771, %v1831
    %v1833 = vlaneseq
    %v1834 = vshrl.u32 %v1833, 7
    %v1835 = vsub.s32 0, %v1834
    %v1836 = vrot.slane %v1785, %v1835
    %v1837 = vlaneseq
    %v1838 = vshrl.u32 %v1837, 7
    %v1839 = vsub.s32 0, %v1838
    %v1840 = vrot.slane %v1793, %v1839
    %v1841 = vlaneseq
    %v1842 = vshrl.u32 %v1841, 7
    %v1843 = vsub.s32 0, %v1842
    %v1844 = vrot.slane %v1795, %v1843
    %v1845 = vlaneseq
    %v1846 = vshrl.u32 %v1845, 7
    %v1847 = vsub.s32 0, %v1846
    %v1848 = vrot.slane %v1778, %v1847
    %v1849 = vlaneseq
    %v1850 = vshrl.u32 %v1849, 7
    %v1851 = vsub.s32 0, %v1850
    %v1852 = vrot.slane %v1792, %v1851
    %v1853 = vlaneseq
    %v1854 = vshrl.u32 %v1853, 7
    %v1855 = vsub.s32 0, %v1854
    %v1856 = vrot.slane %v1794, %v1855
    %v1857 = vlaneseq
    %v1858 = vshrl.u32 %v1857, 7
    %v1859 = vsub.s32 0, %v1858
    %v1860 = vrot.slane %v1796, %v1859
    %v1877 = vmul.f32 %v1629, %v1800
    %v1878 = vmul.f32 %v1633, %v1800
    %v1879 = vmul.f32 %v1629, %v1804
    %v1880 = vmul.f32 %v1633, %v1804
    %v1881 = vmul.f32 %v1629, %v1808
    %v1882 = vmul.f32 %v1633, %v1808
    %v1883 = vmul.f32 %v1629, %v1812
    %v1884 = vmul.f32 %v1633, %v1812
    %v1885 = vmul.f32 %v1629, %v1816
    %v1886 = vmul.f32 %v1633, %v1816
    %v1887 = vmul.f32 %v1629, %v1820
    %v1888 = vmul.f32 %v1633, %v1820
    %v1889 = vmul.f32 %v1629, %v1824
    %v1890 = vmul.f32 %v1633, %v1824
    %v1891 = vmul.f32 %v1629, %v1828
    %v1892 = vmul.f32 %v1633, %v1828
    %v1893 = vmul.f32 %v1629, %v1832
    %v1894 = vmul.f32 %v1633, %v1832
    %v1895 = vmul.f32 %v1629, %v1836
    %v1896 = vmul.f32 %v1633, %v1836
    %v1897 = vmul.f32 %v1629, %v1840
    %v1898 = vmul.f32 %v1633, %v1840
    %v1899 = vmul.f32 %v1629, %v1844
    %v1900 = vmul.f32 %v1633, %v1844
    %v1901 = vmul.f32 %v1629, %v1848
    %v1902 = vmul.f32 %v1633, %v1848
    %v1903 = vmul.f32 %v1629, %v1852
    %v1904 = vmul.f32 %v1633, %v1852
    %v1905 = vmul.f32 %v1629, %v1856
    %v1906 = vmul.f32 %v1633, %v1856
    %v1907 = vmul.f32 %v1629, %v1860
    %v1908 = vmul.f32 %v1633, %v1860
    %v1909 = vadd.f32 %v1877, %v1588
    %v1910 = vadd.f32 %v1878, %v1592
    %v1911 = vadd.f32 %v1879, %v1588
    %v1912 = vadd.f32 %v1880, %v1592
    %v1913 = vadd.f32 %v1881, %v1588
    %v1914 = vadd.f32 %v1882, %v1592
    %v1915 = vadd.f32 %v1883, %v1588
    %v1916 = vadd.f32 %v1884, %v1592
    %v1917 = vadd.f32 %v1885, %v1588
    %v1918 = vadd.f32 %v1886, %v1592
    %v1919 = vadd.f32 %v1887, %v1588
    %v1920 = vadd.f32 %v1888, %v1592
    %v1921 = vadd.f32 %v1889, %v1588
    %v1922 = vadd.f32 %v1890, %v1592
    %v1923 = vadd.f32 %v1891, %v1588
    %v1924 = vadd.f32 %v1892, %v1592
    %v1925 = vadd.f32 %v1893, %v1588
    %v1926 = vadd.f32 %v1894, %v1592
    %v1927 = vadd.f32 %v1895, %v1588
    %v1928 = vadd.f32 %v1896, %v1592
    %v1929 = vadd.f32 %v1897, %v1588
    %v1930 = vadd.f32 %v1898, %v1592
    %v1931 = vadd.f32 %v1899, %v1588
    %v1932 = vadd.f32 %v1900, %v1592
    %v1933 = vadd.f32 %v1901, %v1588
    %v1934 = vadd.f32 %v1902, %v1592
    %v1935 = vadd.f32 %v1903, %v1588
    %v1936 = vadd.f32 %v1904, %v1592
    %v1937 = vadd.f32 %v1905, %v1588
    %v1938 = vadd.f32 %v1906, %v1592
    %v1939 = vadd.f32 %v1907, %v1588
    %v1940 = vadd.f32 %v1908, %v1592
    %v1941 = vmax.f32 %v1909, 0.0
    %v1942 = vmax.f32 %v1910, 0.0
    %v1943 = vmax.f32 %v1911, 0.0
    %v1944 = vmax.f32 %v1912, 0.0
    %v1945 = vmax.f32 %v1913, 0.0
    %v1946 = vmax.f32 %v1914, 0.0
    %v1947 = vmax.f32 %v1915, 0.0
    %v1948 = vmax.f32 %v1916, 0.0
    %v1949 = vmax.f32 %v1917, 0.0
    %v1950 = vmax.f32 %v1918, 0.0
    %v1951 = vmax.f32 %v1919, 0.0
    %v1952 = vmax.f32 %v1920, 0.0
    %v1953 = vmax.f32 %v1921, 0.0
    %v1954 = vmax.f32 %v1922, 0.0
    %v1955 = vmax.f32 %v1923, 0.0
    %v1956 = vmax.f32 %v1924, 0.0
    %v1957 = vmax.f32 %v1925, 0.0
    %v1958 = vmax.f32 %v1926, 0.0
    %v1959 = vmax.f32 %v1927, 0.0
    %v1960 = vmax.f32 %v1928, 0.0
    %v1961 = vmax.f32 %v1929, 0.0
    %v1962 = vmax.f32 %v1930, 0.0
    %v1963 = vmax.f32 %v1931, 0.0
    %v1964 = vmax.f32 %v1932, 0.0
    %v1965 = vmax.f32 %v1933, 0.0
    %v1966 = vmax.f32 %v1934, 0.0
    %v1967 = vmax.f32 %v1935, 0.0
    %v1968 = vmax.f32 %v1936, 0.0
    %v1969 = vmax.f32 %v1937, 0.0
    %v1970 = vmax.f32 %v1938, 0.0
    %v1971 = vmax.f32 %v1939, 0.0
    %v1972 = vmax.f32 %v1940, 0.0
    %v1973 = vld [vmem:[#allocation5] sm:$0xff]
    %v1974 = vld [vmem:[#allocation5 + $0x8] sm:$0xff]
    %v1975 = vlaneseq
    %v1976 = vshrl.u32 %v1975, 7
    %v1977 = vsub.s32 0, %v1976
    %v1978 = vrot.slane %v1693, %v1977
    %1980 = vbcast.lane.b32.xlu0 %v1978, 256
    %v1981 = vpop.permute.xlu0 %1980
    %s1983 = sor.u32 256, 8
    %1984 = vbcast.lane.b32.xlu0 %v1978, %s1983
    %v1985 = vpop.permute.xlu0 %1984
    %v1986 = vlaneseq
    %v1987 = vshrl.u32 %v1986, 7
    %v1988 = vsub.s32 1, %v1987
    %v1989 = vrot.slane %v1693, %v1988
    %1991 = vbcast.lane.b32.xlu0 %v1989, 256
    %v1992 = vpop.permute.xlu0 %1991
    %s1994 = sor.u32 256, 8
    %1995 = vbcast.lane.b32.xlu0 %v1989, %s1994
    %v1996 = vpop.permute.xlu0 %1995
    %v1997 = vlaneseq
    %v1998 = vshrl.u32 %v1997, 7
    %v1999 = vsub.s32 2, %v1998
    %v2000 = vrot.slane %v1693, %v1999
    %2002 = vbcast.lane.b32.xlu0 %v2000, 256
    %v2003 = vpop.permute.xlu0 %2002
    %s2005 = sor.u32 256, 8
    %2006 = vbcast.lane.b32.xlu0 %v2000, %s2005
    %v2007 = vpop.permute.xlu0 %2006
    %v2008 = vlaneseq
    %v2009 = vshrl.u32 %v2008, 7
    %v2010 = vsub.s32 3, %v2009
    %v2011 = vrot.slane %v1693, %v2010
    %2013 = vbcast.lane.b32.xlu0 %v2011, 256
    %v2014 = vpop.permute.xlu0 %2013
    %s2016 = sor.u32 256, 8
    %2017 = vbcast.lane.b32.xlu0 %v2011, %s2016
    %v2018 = vpop.permute.xlu0 %2017
    %v2019 = vlaneseq
    %v2020 = vshrl.u32 %v2019, 7
    %v2021 = vsub.s32 4, %v2020
    %v2022 = vrot.slane %v1693, %v2021
    %2024 = vbcast.lane.b32.xlu0 %v2022, 256
    %v2025 = vpop.permute.xlu0 %2024
    %s2027 = sor.u32 256, 8
    %2028 = vbcast.lane.b32.xlu0 %v2022, %s2027
    %v2029 = vpop.permute.xlu0 %2028
    %v2030 = vlaneseq
    %v2031 = vshrl.u32 %v2030, 7
    %v2032 = vsub.s32 5, %v2031
    %v2033 = vrot.slane %v1693, %v2032
    %2035 = vbcast.lane.b32.xlu0 %v2033, 256
    %v2036 = vpop.permute.xlu0 %2035
    %s2038 = sor.u32 256, 8
    %2039 = vbcast.lane.b32.xlu0 %v2033, %s2038
    %v2040 = vpop.permute.xlu0 %2039
    %v2041 = vlaneseq
    %v2042 = vshrl.u32 %v2041, 7
    %v2043 = vsub.s32 6, %v2042
    %v2044 = vrot.slane %v1693, %v2043
    %2046 = vbcast.lane.b32.xlu0 %v2044, 256
    %v2047 = vpop.permute.xlu0 %2046
    %s2049 = sor.u32 256, 8
    %2050 = vbcast.lane.b32.xlu0 %v2044, %s2049
    %v2051 = vpop.permute.xlu0 %2050
    %v2052 = vlaneseq
    %v2053 = vshrl.u32 %v2052, 7
    %v2054 = vsub.s32 7, %v2053
    %v2055 = vrot.slane %v1693, %v2054
    %2057 = vbcast.lane.b32.xlu0 %v2055, 256
    %v2058 = vpop.permute.xlu0 %2057
    %s2060 = sor.u32 256, 8
    %2061 = vbcast.lane.b32.xlu0 %v2055, %s2060
    %v2062 = vpop.permute.xlu0 %2061
    %v2063 = vlaneseq
    %v2064 = vshrl.u32 %v2063, 7
    %v2065 = vsub.s32 0, %v2064
    %v2066 = vrot.slane %v1694, %v2065
    %2068 = vbcast.lane.b32.xlu0 %v2066, 256
    %v2069 = vpop.permute.xlu0 %2068
    %s2071 = sor.u32 256, 8
    %2072 = vbcast.lane.b32.xlu0 %v2066, %s2071
    %v2073 = vpop.permute.xlu0 %2072
    %v2074 = vlaneseq
    %v2075 = vshrl.u32 %v2074, 7
    %v2076 = vsub.s32 1, %v2075
    %v2077 = vrot.slane %v1694, %v2076
    %2079 = vbcast.lane.b32.xlu0 %v2077, 256
    %v2080 = vpop.permute.xlu0 %2079
    %s2082 = sor.u32 256, 8
    %2083 = vbcast.lane.b32.xlu0 %v2077, %s2082
    %v2084 = vpop.permute.xlu0 %2083
    %v2085 = vlaneseq
    %v2086 = vshrl.u32 %v2085, 7
    %v2087 = vsub.s32 2, %v2086
    %v2088 = vrot.slane %v1694, %v2087
    %2090 = vbcast.lane.b32.xlu0 %v2088, 256
    %v2091 = vpop.permute.xlu0 %2090
    %s2093 = sor.u32 256, 8
    %2094 = vbcast.lane.b32.xlu0 %v2088, %s2093
    %v2095 = vpop.permute.xlu0 %2094
    %v2096 = vlaneseq
    %v2097 = vshrl.u32 %v2096, 7
    %v2098 = vsub.s32 3, %v2097
    %v2099 = vrot.slane %v1694, %v2098
    %2101 = vbcast.lane.b32.xlu0 %v2099, 256
    %v2102 = vpop.permute.xlu0 %2101
    %s2104 = sor.u32 256, 8
    %2105 = vbcast.lane.b32.xlu0 %v2099, %s2104
    %v2106 = vpop.permute.xlu0 %2105
    %v2107 = vlaneseq
    %v2108 = vshrl.u32 %v2107, 7
    %v2109 = vsub.s32 4, %v2108
    %v2110 = vrot.slane %v1694, %v2109
    %2112 = vbcast.lane.b32.xlu0 %v2110, 256
    %v2113 = vpop.permute.xlu0 %2112
    %s2115 = sor.u32 256, 8
    %2116 = vbcast.lane.b32.xlu0 %v2110, %s2115
    %v2117 = vpop.permute.xlu0 %2116
    %v2118 = vlaneseq
    %v2119 = vshrl.u32 %v2118, 7
    %v2120 = vsub.s32 5, %v2119
    %v2121 = vrot.slane %v1694, %v2120
    %2123 = vbcast.lane.b32.xlu0 %v2121, 256
    %v2124 = vpop.permute.xlu0 %2123
    %s2126 = sor.u32 256, 8
    %2127 = vbcast.lane.b32.xlu0 %v2121, %s2126
    %v2128 = vpop.permute.xlu0 %2127
    %v2129 = vlaneseq
    %v2130 = vshrl.u32 %v2129, 7
    %v2131 = vsub.s32 6, %v2130
    %v2132 = vrot.slane %v1694, %v2131
    %2134 = vbcast.lane.b32.xlu0 %v2132, 256
    %v2135 = vpop.permute.xlu0 %2134
    %s2137 = sor.u32 256, 8
    %2138 = vbcast.lane.b32.xlu0 %v2132, %s2137
    %v2139 = vpop.permute.xlu0 %2138
    %v2140 = vlaneseq
    %v2141 = vshrl.u32 %v2140, 7
    %v2142 = vsub.s32 7, %v2141
    %v2143 = vrot.slane %v1694, %v2142
    %2145 = vbcast.lane.b32.xlu0 %v2143, 256
    %v2146 = vpop.permute.xlu0 %2145
    %s2148 = sor.u32 256, 8
    %2149 = vbcast.lane.b32.xlu0 %v2143, %s2148
    %v2150 = vpop.permute.xlu0 %2149
    %v2151 = vmul.f32 %v1981, %v1941
    %v2152 = vmul.f32 %v1985, %v1942
    %v2153 = vmul.f32 %v1992, %v1943
    %v2154 = vmul.f32 %v1996, %v1944
    %v2155 = vmul.f32 %v2003, %v1945
    %v2156 = vmul.f32 %v2007, %v1946
    %v2157 = vmul.f32 %v2014, %v1947
    %v2158 = vmul.f32 %v2018, %v1948
    %v2159 = vmul.f32 %v2025, %v1949
    %v2160 = vmul.f32 %v2029, %v1950
    %v2161 = vmul.f32 %v2036, %v1951
    %v2162 = vmul.f32 %v2040, %v1952
    %v2163 = vmul.f32 %v2047, %v1953
    %v2164 = vmul.f32 %v2051, %v1954
    %v2165 = vmul.f32 %v2058, %v1955
    %v2166 = vmul.f32 %v2062, %v1956
    %v2167 = vmul.f32 %v2069, %v1957
    %v2168 = vmul.f32 %v2073, %v1958
    %v2169 = vmul.f32 %v2080, %v1959
    %v2170 = vmul.f32 %v2084, %v1960
    %v2171 = vmul.f32 %v2091, %v1961
    %v2172 = vmul.f32 %v2095, %v1962
    %v2173 = vmul.f32 %v2102, %v1963
    %v2174 = vmul.f32 %v2106, %v1964
    %v2175 = vmul.f32 %v2113, %v1965
    %v2176 = vmul.f32 %v2117, %v1966
    %v2177 = vmul.f32 %v2124, %v1967
    %v2178 = vmul.f32 %v2128, %v1968
    %v2179 = vmul.f32 %v2135, %v1969
    %v2180 = vmul.f32 %v2139, %v1970
    %v2181 = vmul.f32 %v2146, %v1971
    %v2182 = vmul.f32 %v2150, %v1972
    %v2183 = vadd.f32 %v2151, %v2153
    %v2184 = vadd.f32 %v2183, %v2155
    %v2185 = vadd.f32 %v2184, %v2157
    %v2186 = vadd.f32 %v2185, %v2159
    %v2187 = vadd.f32 %v2186, %v2161
    %v2188 = vadd.f32 %v2187, %v2163
    %v2189 = vadd.f32 %v2188, %v2165
    %v2190 = vadd.f32 %v2189, %v2167
    %v2191 = vadd.f32 %v2190, %v2169
    %v2192 = vadd.f32 %v2191, %v2171
    %v2193 = vadd.f32 %v2192, %v2173
    %v2194 = vadd.f32 %v2193, %v2175
    %v2195 = vadd.f32 %v2194, %v2177
    %v2196 = vadd.f32 %v2195, %v2179
    %v2197 = vadd.f32 %v2196, %v2181
    %v2198 = vadd.f32 %v2152, %v2154
    %v2199 = vadd.f32 %v2198, %v2156
    %v2200 = vadd.f32 %v2199, %v2158
    %v2201 = vadd.f32 %v2200, %v2160
    %v2202 = vadd.f32 %v2201, %v2162
    %v2203 = vadd.f32 %v2202, %v2164
    %v2204 = vadd.f32 %v2203, %v2166
    %v2205 = vadd.f32 %v2204, %v2168
    %v2206 = vadd.f32 %v2205, %v2170
    %v2207 = vadd.f32 %v2206, %v2172
    %v2208 = vadd.f32 %v2207, %v2174
    %v2209 = vadd.f32 %v2208, %v2176
    %v2210 = vadd.f32 %v2209, %v2178
    %v2211 = vadd.f32 %v2210, %v2180
    %v2212 = vadd.f32 %v2211, %v2182
    %v2213 = vadd.f32 %v1973, %v2197
    %v2214 = vadd.f32 %v1974, %v2212
    %2215 = vst [vmem:[#allocation5] sm:$0xff] %v2213
    %2216 = vst [vmem:[#allocation5 + $0x8] sm:$0xff] %v2214
    %v2217 = vld [vmem:[#allocation5] sm:$0xff]
    %v2218 = vld [vmem:[#allocation5 + $0x8] sm:$0xff]
    %v2219 = vmul.f32 %v2217, %v1135
    %v2220 = vmul.f32 %v2218, %v1140
    %v2221 = vadd.f32 %v1684, %v2219
    %v2222 = vadd.f32 %v1685, %v2220
    %v2223 = vld [vmem:[%s12] sm:$0x1]
    %v2224 = vld [vmem:[%s13] sm:$0x1]
    %v2225 = vadd.f32 %v2221, %v2222
    %v2226 = vrot.slane %v2225, 4
    %v2227 = vadd.f32 %v2225, %v2226
    %v2228 = vrot.slane %v2227, 2
    %v2229 = vadd.f32 %v2227, %v2228
    %v2230 = vrot.slane %v2229, 1
    %v2231 = vadd.f32 %v2229, %v2230
    %v2232 = vmul.f32 %v2231, 0.0625
    %v2233 = vsub.f32 %v2221, %v2232
    %v2234 = vsub.f32 %v2222, %v2232
    %v2235 = vmul.f32 %v2233, %v2233
    %v2236 = vmul.f32 %v2234, %v2234
    %v2237 = vadd.f32 %v2235, %v2236
    %v2238 = vrot.slane %v2237, 4
    %v2239 = vadd.f32 %v2237, %v2238
    %v2240 = vrot.slane %v2239, 2
    %v2241 = vadd.f32 %v2239, %v2240
    %v2242 = vrot.slane %v2241, 1
    %v2243 = vadd.f32 %v2241, %v2242
    %v2244 = vmul.f32 %v2243, 0.0625
    %v2245 = vadd.f32 %v2244, 1e-05
    %v2246 = vrsqrt.pop %v2245
    %v2247 = vmul.f32 %v2233, %v2246
    %v2248 = vmul.f32 %v2234, %v2246
    %v2250 = vlaneseq
    %v2251 = vshrl.u32 %v2250, 7
    %v2252 = vsub.s32 0, %v2251
    %v2253 = vrot.slane %v2223, %v2252
    %v2255 = vmul.f32 %v2247, %v2253
    %v2256 = vmul.f32 %v2248, %v2253
    %v2258 = vlaneseq
    %v2259 = vshrl.u32 %v2258, 7
    %v2260 = vsub.s32 0, %v2259
    %v2261 = vrot.slane %v2224, %v2260
    %v2263 = vadd.f32 %v2255, %v2261
    %v2264 = vadd.f32 %v2256, %v2261
    %p2266 = scmp.lt.u32.totalorder 8, 8
    %p2267 = pneg %p2266
    // Predicated region
    $region134: #{tpu_custom_call.1} parent=1 // pred_check
      _
    $region135: #{tpu_custom_call.1} parent=1 // pred_check_branch
      %2269 = sbr.rel (%p2266) target = $region137
    $region136: #{tpu_custom_call.1} parent=1 // pred_region
      %s2284 = sand.u32 8, 7
      %p2285 = scmp.eq.s32.totalorder %s2284, 0
      // Predicated region
      $region149: #{tpu_custom_call.1} parent=136 // pred_check
        %p2286 = pneg %p2285
      $region150: #{tpu_custom_call.1} parent=136 // pred_check_branch
        %2288 = sbr.rel (%p2286) target = $region152
      $region151: #{tpu_custom_call.1} parent=136 // pred_region
        loop: start=0, step=1, limit=1
        $region153: #{tpu_custom_call.1} parent=151 // loop_pre_header
          _
        $region154: #{tpu_custom_call.1} parent=151 // loop_header
          %s2290 = sphi 0, %s2294
          %p2291 = scmp.ge.s32.totalorder %s2290, 1
          %s2295 = sphi %s1, %s1
          %s2296 = sphi [#allocation2], [#allocation2]
        $region155: #{tpu_custom_call.1} parent=151 // loop_header_branch
          %2293 = sbr.rel (%p2291) target = $region159
        $region156: #{tpu_custom_call.1} parent=151 // loop_body
          %v2297 = vld [vmem:[%s2295] sm:$0xff]
          %2298 = vst [vmem:[%s2296] sm:$0xff] %v2297
        $region157: #{tpu_custom_call.1} parent=151 // loop_footer
          %s2294 = sadd.s32 1, %s2290
        $region158: #{tpu_custom_call.1} parent=151 // loop_footer_branch
          %2289 = sbr.rel target = $region154
        $region159: #{tpu_custom_call.1} parent=151 // loop_exit
          _
      $region152: #{tpu_custom_call.1} parent=136 // pred_fallthru
        _
      %p2299 = pneg %p2285
      // Predicated region
      $region160: #{tpu_custom_call.1} parent=136 // pred_check
        _
      $region161: #{tpu_custom_call.1} parent=136 // pred_check_branch
        %2301 = sbr.rel (%p2285) target = $region163
      $region162: #{tpu_custom_call.1} parent=136 // pred_region
        %s2302 = sand.u32 8, 7
      $region163: #{tpu_custom_call.1} parent=136 // pred_fallthru
        _
    $region137: #{tpu_custom_call.1} parent=1 // pred_fallthru
      _
    // Predicated region
    $region138: #{tpu_custom_call.1} parent=1 // pred_check
      %p2270 = pneg %p2266
    $region139: #{tpu_custom_call.1} parent=1 // pred_check_branch
      %2272 = sbr.rel (%p2270) target = $region141
    $region140: #{tpu_custom_call.1} parent=1 // pred_region
      %s2273 = sshllo.u32 0, 8
      loop: start=0, step=1, limit=1
      $region142: #{tpu_custom_call.1} parent=140 // loop_pre_header
        _
      $region143: #{tpu_custom_call.1} parent=140 // loop_header
        %s2275 = sphi 0, %s2279
        %p2276 = scmp.ge.s32.totalorder %s2275, 1
        %s2280 = sphi %s1, %s1
        %s2281 = sphi [#allocation2], [#allocation2]
      $region144: #{tpu_custom_call.1} parent=140 // loop_header_branch
        %2278 = sbr.rel (%p2276) target = $region148
      $region145: #{tpu_custom_call.1} parent=140 // loop_body
        %v2282 = vld [vmem:[%s2280] sm:%s2273]
        %2283 = vst [vmem:[%s2281] sm:%s2273] %v2282
      $region146: #{tpu_custom_call.1} parent=140 // loop_footer
        %s2279 = sadd.s32 1, %s2275
      $region147: #{tpu_custom_call.1} parent=140 // loop_footer_branch
        %2274 = sbr.rel target = $region143
      $region148: #{tpu_custom_call.1} parent=140 // loop_exit
        _
    $region141: #{tpu_custom_call.1} parent=1 // pred_fallthru
      _
    // Predicated region
    $region164: #{tpu_custom_call.1} parent=1 // pred_check
      _
    $region165: #{tpu_custom_call.1} parent=1 // pred_check_branch
      %2305 = sbr.rel (0) target = $region167
    $region166: #{tpu_custom_call.1} parent=1 // pred_region
      %2306 = vsyncadd [#allocation3], 128
    $region167: #{tpu_custom_call.1} parent=1 // pred_fallthru
      _
    %v2307 = vld [vmem:[#allocation11] sm:$0xff]
    %v2308 = vld [vmem:[#allocation11 + $0x8] sm:$0xff]
    %v2309 = vld [vmem:[#allocation11 + $0x10] sm:$0xff]
    %v2310 = vld [vmem:[#allocation11 + $0x18] sm:$0xff]
    %v2311 = vld [vmem:[#allocation11 + $0x20] sm:$0xff]
    %v2312 = vld [vmem:[#allocation11 + $0x28] sm:$0xff]
    %v2313 = vld [vmem:[#allocation11 + $0x30] sm:$0xff]
    %v2314 = vld [vmem:[#allocation11 + $0x38] sm:$0xff]
    %v2315 = vld [vmem:[#allocation11 + $0x40] sm:$0xff]
    %v2316 = vld [vmem:[#allocation11 + $0x48] sm:$0xff]
    %v2317 = vld [vmem:[#allocation11 + $0x50] sm:$0xff]
    %v2318 = vld [vmem:[#allocation11 + $0x58] sm:$0xff]
    %v2319 = vld [vmem:[#allocation11 + $0x60] sm:$0xff]
    %v2320 = vld [vmem:[#allocation11 + $0x68] sm:$0xff]
    %v2321 = vld [vmem:[#allocation11 + $0x70] sm:$0xff]
    %v2322 = vld [vmem:[#allocation11 + $0x78] sm:$0xff]
    %v2323 = vld [vmem:[#allocation11 + $0x80] sm:$0xff]
    %v2324 = vld [vmem:[#allocation11 + $0x88] sm:$0xff]
    %v2325 = vld [vmem:[#allocation11 + $0x90] sm:$0xff]
    %v2326 = vld [vmem:[#allocation11 + $0x98] sm:$0xff]
    %v2327 = vld [vmem:[#allocation11 + $0xa0] sm:$0xff]
    %v2328 = vld [vmem:[#allocation11 + $0xa8] sm:$0xff]
    %v2329 = vld [vmem:[#allocation11 + $0xb0] sm:$0xff]
    %v2330 = vld [vmem:[#allocation11 + $0xb8] sm:$0xff]
    %v2331 = vld [vmem:[#allocation11 + $0xc0] sm:$0xff]
    %v2332 = vld [vmem:[#allocation11 + $0xc8] sm:$0xff]
    %v2333 = vld [vmem:[#allocation11 + $0xd0] sm:$0xff]
    %v2334 = vld [vmem:[#allocation11 + $0xd8] sm:$0xff]
    %v2335 = vld [vmem:[#allocation11 + $0xe0] sm:$0xff]
    %v2336 = vld [vmem:[#allocation11 + $0xe8] sm:$0xff]
    %v2337 = vld [vmem:[#allocation11 + $0xf0] sm:$0xff]
    %v2338 = vld [vmem:[#allocation11 + $0xf8] sm:$0xff]
    %v2339 = vld [vmem:[#allocation11 + $0x100] sm:$0xff]
    %v2340 = vld [vmem:[#allocation11 + $0x108] sm:$0xff]
    %v2341 = vld [vmem:[#allocation11 + $0x110] sm:$0xff]
    %v2342 = vld [vmem:[#allocation11 + $0x118] sm:$0xff]
    %v2343 = vld [vmem:[#allocation11 + $0x120] sm:$0xff]
    %v2344 = vld [vmem:[#allocation11 + $0x128] sm:$0xff]
    %v2345 = vld [vmem:[#allocation11 + $0x130] sm:$0xff]
    %v2346 = vld [vmem:[#allocation11 + $0x138] sm:$0xff]
    %v2347 = vld [vmem:[#allocation11 + $0x140] sm:$0xff]
    %v2348 = vld [vmem:[#allocation11 + $0x148] sm:$0xff]
    %v2349 = vld [vmem:[#allocation11 + $0x150] sm:$0xff]
    %v2350 = vld [vmem:[#allocation11 + $0x158] sm:$0xff]
    %v2351 = vld [vmem:[#allocation11 + $0x160] sm:$0xff]
    %v2352 = vld [vmem:[#allocation11 + $0x168] sm:$0xff]
    %v2353 = vld [vmem:[#allocation11 + $0x170] sm:$0xff]
    %v2354 = vld [vmem:[#allocation11 + $0x178] sm:$0xff]
    %v2355 = vld [vmem:[%s9] sm:$0x3f]
    %v2356 = vpack.c.bf16 %v2264, %v2263
    %v2358 = vlaneseq
    %v2359 = vshrl.u32 %v2358, 7
    %v2360 = vsub.s32 0, %v2359
    %v2361 = vrot.slane %v2355, %v2360
    %v2362 = vlaneseq
    %v2363 = vshrl.u32 %v2362, 7
    %v2364 = vsub.s32 1, %v2363
    %v2365 = vrot.slane %v2355, %v2364
    %v2366 = vlaneseq
    %v2367 = vshrl.u32 %v2366, 7
    %v2368 = vsub.s32 2, %v2367
    %v2369 = vrot.slane %v2355, %v2368
    %v2370 = vlaneseq
    %v2371 = vshrl.u32 %v2370, 7
    %v2372 = vsub.s32 3, %v2371
    %v2373 = vrot.slane %v2355, %v2372
    %v2374 = vlaneseq
    %v2375 = vshrl.u32 %v2374, 7
    %v2376 = vsub.s32 4, %v2375
    %v2377 = vrot.slane %v2355, %v2376
    %v2378 = vlaneseq
    %v2379 = vshrl.u32 %v2378, 7
    %v2380 = vsub.s32 5, %v2379
    %v2381 = vrot.slane %v2355, %v2380
    %v2436 = vunpack.c.l.b16 %v2307
    %v2437 = vunpack.c.h.b16 %v2307
    %v2438 = vunpack.c.l.b16 %v2308
    %v2439 = vunpack.c.h.b16 %v2308
    %v2440 = vunpack.c.l.b16 %v2309
    %v2441 = vunpack.c.h.b16 %v2309
    %v2442 = vunpack.c.l.b16 %v2310
    %v2443 = vunpack.c.h.b16 %v2310
    %v2444 = vunpack.c.l.b16 %v2311
    %v2445 = vunpack.c.h.b16 %v2311
    %v2446 = vunpack.c.l.b16 %v2312
    %v2447 = vunpack.c.h.b16 %v2312
    %v2448 = vunpack.c.l.b16 %v2313
    %v2449 = vunpack.c.h.b16 %v2313
    %v2450 = vunpack.c.l.b16 %v2314
    %v2451 = vunpack.c.h.b16 %v2314
    %v2452 = vunpack.c.l.b16 %v2315
    %v2453 = vunpack.c.h.b16 %v2315
    %v2454 = vunpack.c.l.b16 %v2316
    %v2455 = vunpack.c.h.b16 %v2316
    %v2456 = vunpack.c.l.b16 %v2317
    %v2457 = vunpack.c.h.b16 %v2317
    %v2458 = vunpack.c.l.b16 %v2318
    %v2459 = vunpack.c.h.b16 %v2318
    %v2460 = vunpack.c.l.b16 %v2319
    %v2461 = vunpack.c.h.b16 %v2319
    %v2462 = vunpack.c.l.b16 %v2320
    %v2463 = vunpack.c.h.b16 %v2320
    %v2464 = vunpack.c.l.b16 %v2321
    %v2465 = vunpack.c.h.b16 %v2321
    %v2466 = vunpack.c.l.b16 %v2322
    %v2467 = vunpack.c.h.b16 %v2322
    %v2468 = vunpack.c.l.b16 %v2323
    %v2469 = vunpack.c.h.b16 %v2323
    %v2470 = vunpack.c.l.b16 %v2324
    %v2471 = vunpack.c.h.b16 %v2324
    %v2472 = vunpack.c.l.b16 %v2325
    %v2473 = vunpack.c.h.b16 %v2325
    %v2474 = vunpack.c.l.b16 %v2326
    %v2475 = vunpack.c.h.b16 %v2326
    %v2476 = vunpack.c.l.b16 %v2327
    %v2477 = vunpack.c.h.b16 %v2327
    %v2478 = vunpack.c.l.b16 %v2328
    %v2479 = vunpack.c.h.b16 %v2328
    %v2480 = vunpack.c.l.b16 %v2329
    %v2481 = vunpack.c.h.b16 %v2329
    %v2482 = vunpack.c.l.b16 %v2330
    %v2483 = vunpack.c.h.b16 %v2330
    %v2484 = vunpack.c.l.b16 %v2331
    %v2485 = vunpack.c.h.b16 %v2331
    %v2486 = vunpack.c.l.b16 %v2332
    %v2487 = vunpack.c.h.b16 %v2332
    %v2488 = vunpack.c.l.b16 %v2333
    %v2489 = vunpack.c.h.b16 %v2333
    %v2490 = vunpack.c.l.b16 %v2334
    %v2491 = vunpack.c.h.b16 %v2334
    %v2492 = vunpack.c.l.b16 %v2335
    %v2493 = vunpack.c.h.b16 %v2335
    %v2494 = vunpack.c.l.b16 %v2336
    %v2495 = vunpack.c.h.b16 %v2336
    %v2496 = vunpack.c.l.b16 %v2337
    %v2497 = vunpack.c.h.b16 %v2337
    %v2498 = vunpack.c.l.b16 %v2338
    %v2499 = vunpack.c.h.b16 %v2338
    %v2500 = vunpack.c.l.b16 %v2339
    %v2501 = vunpack.c.h.b16 %v2339
    %v2502 = vunpack.c.l.b16 %v2340
    %v2503 = vunpack.c.h.b16 %v2340
    %v2504 = vunpack.c.l.b16 %v2341
    %v2505 = vunpack.c.h.b16 %v2341
    %v2506 = vunpack.c.l.b16 %v2342
    %v2507 = vunpack.c.h.b16 %v2342
    %v2508 = vunpack.c.l.b16 %v2343
    %v2509 = vunpack.c.h.b16 %v2343
    %v2510 = vunpack.c.l.b16 %v2344
    %v2511 = vunpack.c.h.b16 %v2344
    %v2512 = vunpack.c.l.b16 %v2345
    %v2513 = vunpack.c.h.b16 %v2345
    %v2514 = vunpack.c.l.b16 %v2346
    %v2515 = vunpack.c.h.b16 %v2346
    %v2516 = vunpack.c.l.b16 %v2347
    %v2517 = vunpack.c.h.b16 %v2347
    %v2518 = vunpack.c.l.b16 %v2348
    %v2519 = vunpack.c.h.b16 %v2348
    %v2520 = vunpack.c.l.b16 %v2349
    %v2521 = vunpack.c.h.b16 %v2349
    %v2522 = vunpack.c.l.b16 %v2350
    %v2523 = vunpack.c.h.b16 %v2350
    %v2524 = vunpack.c.l.b16 %v2351
    %v2525 = vunpack.c.h.b16 %v2351
    %v2526 = vunpack.c.l.b16 %v2352
    %v2527 = vunpack.c.h.b16 %v2352
    %v2528 = vunpack.c.l.b16 %v2353
    %v2529 = vunpack.c.h.b16 %v2353
    %v2530 = vunpack.c.l.b16 %v2354
    %v2531 = vunpack.c.h.b16 %v2354
    %v2532 = vpack.c.b16 %v2442, %v2436
    %v2533 = vpack.c.b16 %v2443, %v2437
    %v2534 = vpack.c.b16 %v2444, %v2438
    %v2535 = vpack.c.b16 %v2445, %v2439
    %v2536 = vpack.c.b16 %v2446, %v2440
    %v2537 = vpack.c.b16 %v2447, %v2441
    %v2538 = vpack.c.b16 %v2454, %v2448
    %v2539 = vpack.c.b16 %v2455, %v2449
    %v2540 = vpack.c.b16 %v2456, %v2450
    %v2541 = vpack.c.b16 %v2457, %v2451
    %v2542 = vpack.c.b16 %v2458, %v2452
    %v2543 = vpack.c.b16 %v2459, %v2453
    %v2544 = vpack.c.b16 %v2466, %v2460
    %v2545 = vpack.c.b16 %v2467, %v2461
    %v2546 = vpack.c.b16 %v2468, %v2462
    %v2547 = vpack.c.b16 %v2469, %v2463
    %v2548 = vpack.c.b16 %v2470, %v2464
    %v2549 = vpack.c.b16 %v2471, %v2465
    %v2550 = vpack.c.b16 %v2478, %v2472
    %v2551 = vpack.c.b16 %v2479, %v2473
    %v2552 = vpack.c.b16 %v2480, %v2474
    %v2553 = vpack.c.b16 %v2481, %v2475
    %v2554 = vpack.c.b16 %v2482, %v2476
    %v2555 = vpack.c.b16 %v2483, %v2477
    %v2556 = vpack.c.b16 %v2490, %v2484
    %v2557 = vpack.c.b16 %v2491, %v2485
    %v2558 = vpack.c.b16 %v2492, %v2486
    %v2559 = vpack.c.b16 %v2493, %v2487
    %v2560 = vpack.c.b16 %v2494, %v2488
    %v2561 = vpack.c.b16 %v2495, %v2489
    %v2562 = vpack.c.b16 %v2502, %v2496
    %v2563 = vpack.c.b16 %v2503, %v2497
    %v2564 = vpack.c.b16 %v2504, %v2498
    %v2565 = vpack.c.b16 %v2505, %v2499
    %v2566 = vpack.c.b16 %v2506, %v2500
    %v2567 = vpack.c.b16 %v2507, %v2501
    %v2568 = vpack.c.b16 %v2514, %v2508
    %v2569 = vpack.c.b16 %v2515, %v2509
    %v2570 = vpack.c.b16 %v2516, %v2510
    %v2571 = vpack.c.b16 %v2517, %v2511
    %v2572 = vpack.c.b16 %v2518, %v2512
    %v2573 = vpack.c.b16 %v2519, %v2513
    %v2574 = vpack.c.b16 %v2526, %v2520
    %v2575 = vpack.c.b16 %v2527, %v2521
    %v2576 = vpack.c.b16 %v2528, %v2522
    %v2577 = vpack.c.b16 %v2529, %v2523
    %v2578 = vpack.c.b16 %v2530, %v2524
    %v2579 = vpack.c.b16 %v2531, %v2525
    %2628 = vmatprep.subr.bf16.mxu0 %v2533
    %2629 = vmatpush1.bf16.msra.mxu0 %v2532
    %2630 = vmatprep.subr.bf16.mxu0 %v2539
    %2631 = vmatpush1.bf16.msra.mxu0 %v2538
    %2632 = vmatprep.subr.bf16.mxu0 %v2545
    %2633 = vmatpush1.bf16.msra.mxu0 %v2544
    %2634 = vmatprep.subr.bf16.mxu0 %v2551
    %2635 = vmatpush1.bf16.msra.mxu0 %v2550
    %2636 = vmatprep.subr.bf16.mxu0 %v2557
    %2637 = vmatpush1.bf16.msra.mxu0 %v2556
    %2638 = vmatprep.subr.bf16.mxu0 %v2563
    %2639 = vmatpush1.bf16.msra.mxu0 %v2562
    %2640 = vmatprep.subr.bf16.mxu0 %v2569
    %2641 = vmatpush1.bf16.msra.mxu0 %v2568
    %2642 = vmatprep.subr.bf16.mxu0 %v2575
    %2643 = vmatpush1.bf16.msra.mxu0 %v2574
    %2644 = vmatprep.subr.bf16.mxu0 0
    %2645 = vmatpush1.bf16.msra.mxu0 0
    %2646 = vmatprep.subr.bf16.mxu0 0
    %2647 = vmatpush1.bf16.msra.mxu0 0
    %2648 = vmatprep.subr.bf16.mxu0 0
    %2649 = vmatpush1.bf16.msra.mxu0 0
    %2650 = vmatprep.subr.bf16.mxu0 0
    %2651 = vmatpush1.bf16.msra.mxu0 0
    %2652 = vmatprep.subr.bf16.mxu0 0
    %2653 = vmatpush1.bf16.msra.mxu0 0
    %2654 = vmatprep.subr.bf16.mxu0 0
    %2655 = vmatpush1.bf16.msra.mxu0 0
    %2656 = vmatprep.subr.bf16.mxu0 0
    %2657 = vmatpush1.bf16.msra.mxu0 0
    %2658 = vmatprep.subr.bf16.mxu0 0
    %2659 = vmatpush1.bf16.msra.mxu0 0
    %2660 = vmatprep.mubr.bf16.mxu0 0
    %2661 = vmatmul.mubr.bf16.gmra.mrb[0].mxu0 %v2356
    %v2662 = vpop.f32.mrb[0].mxu0
    %v2663 = vadd.f32 %v2361, %v2662
    %v2664 = vpop.f32.mrb[0].mxu0
    %v2665 = vadd.f32 %v2365, %v2664
    %v2666 = vpop.f32.mrb[0].mxu0
    %v2667 = vadd.f32 %v2361, %v2666
    %v2668 = vpop.f32.mrb[0].mxu0
    %v2669 = vadd.f32 %v2365, %v2668
    %2670 = vdwg.mxu0
    %2671 = vmatprep.subr.bf16.mxu0 %v2535
    %2672 = vmatpush1.bf16.msra.mxu0 %v2534
    %2673 = vmatprep.subr.bf16.mxu0 %v2541
    %2674 = vmatpush1.bf16.msra.mxu0 %v2540
    %2675 = vmatprep.subr.bf16.mxu0 %v2547
    %2676 = vmatpush1.bf16.msra.mxu0 %v2546
    %2677 = vmatprep.subr.bf16.mxu0 %v2553
    %2678 = vmatpush1.bf16.msra.mxu0 %v2552
    %2679 = vmatprep.subr.bf16.mxu0 %v2559
    %2680 = vmatpush1.bf16.msra.mxu0 %v2558
    %2681 = vmatprep.subr.bf16.mxu0 %v2565
    %2682 = vmatpush1.bf16.msra.mxu0 %v2564
    %2683 = vmatprep.subr.bf16.mxu0 %v2571
    %2684 = vmatpush1.bf16.msra.mxu0 %v2570
    %2685 = vmatprep.subr.bf16.mxu0 %v2577
    %2686 = vmatpush1.bf16.msra.mxu0 %v2576
    %2687 = vmatprep.subr.bf16.mxu0 0
    %2688 = vmatpush1.bf16.msra.mxu0 0
    %2689 = vmatprep.subr.bf16.mxu0 0
    %2690 = vmatpush1.bf16.msra.mxu0 0
    %2691 = vmatprep.subr.bf16.mxu0 0
    %2692 = vmatpush1.bf16.msra.mxu0 0
    %2693 = vmatprep.subr.bf16.mxu0 0
    %2694 = vmatpush1.bf16.msra.mxu0 0
    %2695 = vmatprep.subr.bf16.mxu0 0
    %2696 = vmatpush1.bf16.msra.mxu0 0
    %2697 = vmatprep.subr.bf16.mxu0 0
    %2698 = vmatpush1.bf16.msra.mxu0 0
    %2699 = vmatprep.subr.bf16.mxu0 0
    %2700 = vmatpush1.bf16.msra.mxu0 0
    %2701 = vmatprep.subr.bf16.mxu0 0
    %2702 = vmatpush1.bf16.msra.mxu0 0
    %2703 = vmatprep.mubr.bf16.mxu0 0
    %2704 = vmatmul.mubr.bf16.gmra.mrb[0].mxu0 %v2356
    %v2705 = vpop.f32.mrb[0].mxu0
    %v2706 = vadd.f32 %v2369, %v2705
    %v2707 = vpop.f32.mrb[0].mxu0
    %v2708 = vadd.f32 %v2373, %v2707
    %v2709 = vpop.f32.mrb[0].mxu0
    %v2710 = vadd.f32 %v2369, %v2709
    %v2711 = vpop.f32.mrb[0].mxu0
    %v2712 = vadd.f32 %v2373, %v2711
    %2713 = vdwg.mxu0
    %2714 = vmatprep.subr.bf16.mxu0 %v2537
    %2715 = vmatpush1.bf16.msra.mxu0 %v2536
    %2716 = vmatprep.subr.bf16.mxu0 %v2543
    %2717 = vmatpush1.bf16.msra.mxu0 %v2542
    %2718 = vmatprep.subr.bf16.mxu0 %v2549
    %2719 = vmatpush1.bf16.msra.mxu0 %v2548
    %2720 = vmatprep.subr.bf16.mxu0 %v2555
    %2721 = vmatpush1.bf16.msra.mxu0 %v2554
    %2722 = vmatprep.subr.bf16.mxu0 %v2561
    %2723 = vmatpush1.bf16.msra.mxu0 %v2560
    %2724 = vmatprep.subr.bf16.mxu0 %v2567
    %2725 = vmatpush1.bf16.msra.mxu0 %v2566
    %2726 = vmatprep.subr.bf16.mxu0 %v2573
    %2727 = vmatpush1.bf16.msra.mxu0 %v2572
    %2728 = vmatprep.subr.bf16.mxu0 %v2579
    %2729 = vmatpush1.bf16.msra.mxu0 %v2578
    %2730 = vmatprep.subr.bf16.mxu0 0
    %2731 = vmatpush1.bf16.msra.mxu0 0
    %2732 = vmatprep.subr.bf16.mxu0 0
    %2733 = vmatpush1.bf16.msra.mxu0 0
    %2734 = vmatprep.subr.bf16.mxu0 0
    %2735 = vmatpush1.bf16.msra.mxu0 0
    %2736 = vmatprep.subr.bf16.mxu0 0
    %2737 = vmatpush1.bf16.msra.mxu0 0
    %2738 = vmatprep.subr.bf16.mxu0 0
    %2739 = vmatpush1.bf16.msra.mxu0 0
    %2740 = vmatprep.subr.bf16.mxu0 0
    %2741 = vmatpush1.bf16.msra.mxu0 0
    %2742 = vmatprep.subr.bf16.mxu0 0
    %2743 = vmatpush1.bf16.msra.mxu0 0
    %2744 = vmatprep.subr.bf16.mxu0 0
    %2745 = vmatpush1.bf16.msra.mxu0 0
    %2746 = vmatprep.mubr.bf16.mxu0 0
    %2747 = vmatmul.mubr.bf16.gmra.mrb[0].mxu0 %v2356
    %v2748 = vpop.f32.mrb[0].mxu0
    %v2749 = vadd.f32 %v2377, %v2748
    %v2750 = vpop.f32.mrb[0].mxu0
    %v2751 = vadd.f32 %v2381, %v2750
    %v2752 = vpop.f32.mrb[0].mxu0
    %v2753 = vadd.f32 %v2377, %v2752
    %v2754 = vpop.f32.mrb[0].mxu0
    %v2755 = vadd.f32 %v2381, %v2754
    %2756 = vdwg.mxu0
    %v2757 = vmul.f32 %v2751, %v2708
    %v2758 = vmul.f32 %v2755, %v2712
    %v2759 = vadd.f32 %v2757, %v2749
    %v2760 = vadd.f32 %v2758, %v2753
    %2761 = vst [vmem:[#allocation4] sm:$0xff] %v2663
    %2762 = vst [vmem:[#allocation4 + $0x8] sm:$0xff] %v2667
    %2763 = vst [vmem:[#allocation5] sm:$0xff] 0.0
    %2764 = vst [vmem:[#allocation5 + $0x8] sm:$0xff] 0.0
    %s2765 = sshll.u32 %s602, 4
    %2766 = dma.done [#allocation3], %s2765
    %v2767 = vld [vmem:[#allocation2] sm:$0xff]
    %v2768 = vld [vmem:[#allocation4] sm:$0xff]
    %v2769 = vld [vmem:[#allocation4 + $0x8] sm:$0xff]
    %v2770 = vpack.c.bf16 %v2769, %v2768
    %v2771 = vld [vmem:[#allocation5] sm:$0xff]
    %v2772 = vld [vmem:[#allocation5 + $0x8] sm:$0xff]
    %2773 = vxpose.xlu0.c.b16.start [1/8] %v2767, 128
    %2774 = vxpose.xlu0.c.b16.cont [2/8] 0, 128
    %2775 = vxpose.xlu0.c.b16.cont [3/8] 0, 128
    %2776 = vxpose.xlu0.c.b16.cont [4/8] 0, 128
    %2777 = vxpose.xlu0.c.b16.cont [5/8] 0, 128
    %2778 = vxpose.xlu0.c.b16.cont [6/8] 0, 128
    %2779 = vxpose.xlu0.c.b16.cont [7/8] 0, 128
    %2780 = vxpose.xlu0.c.b16.end [8/8] 0, 128
    %v2781 = vpop.trf.xlu0
    %v2782 = vpop.trf.xlu0
    %v2783 = vpop.trf.xlu0
    %v2784 = vpop.trf.xlu0
    %v2785 = vpop.trf.xlu0
    %v2786 = vpop.trf.xlu0
    %v2787 = vpop.trf.xlu0
    %v2788 = vpop.trf.xlu0
    %vm2789 = vcmask 130048
    %v2791 = vsel %vm2789, %v2781, 0
    %2793 = vmatprep.subr.bf16.mxu0 0
    %2794 = vmatpush1.bf16.msra.mxu0 %v2770
    %2795 = vmatprep.subr.bf16.mxu0 0
    %2796 = vmatpush1.bf16.msra.mxu0 0
    %2797 = vmatprep.subr.bf16.mxu0 0
    %2798 = vmatpush1.bf16.msra.mxu0 0
    %2799 = vmatprep.subr.bf16.mxu0 0
    %2800 = vmatpush1.bf16.msra.mxu0 0
    %2801 = vmatprep.subr.bf16.mxu0 0
    %2802 = vmatpush1.bf16.msra.mxu0 0
    %2803 = vmatprep.subr.bf16.mxu0 0
    %2804 = vmatpush1.bf16.msra.mxu0 0
    %2805 = vmatprep.subr.bf16.mxu0 0
    %2806 = vmatpush1.bf16.msra.mxu0 0
    %2807 = vmatprep.subr.bf16.mxu0 0
    %2808 = vmatpush1.bf16.msra.mxu0 0
    %2809 = vmatprep.subr.bf16.mxu0 0
    %2810 = vmatpush1.bf16.msra.mxu0 0
    %2811 = vmatprep.subr.bf16.mxu0 0
    %2812 = vmatpush1.bf16.msra.mxu0 0
    %2813 = vmatprep.subr.bf16.mxu0 0
    %2814 = vmatpush1.bf16.msra.mxu0 0
    %2815 = vmatprep.subr.bf16.mxu0 0
    %2816 = vmatpush1.bf16.msra.mxu0 0
    %2817 = vmatprep.subr.bf16.mxu0 0
    %2818 = vmatpush1.bf16.msra.mxu0 0
    %2819 = vmatprep.subr.bf16.mxu0 0
    %2820 = vmatpush1.bf16.msra.mxu0 0
    %2821 = vmatprep.subr.bf16.mxu0 0
    %2822 = vmatpush1.bf16.msra.mxu0 0
    %2823 = vmatprep.subr.bf16.mxu0 0
    %2824 = vmatpush1.bf16.msra.mxu0 0
    %2825 = vmatprep.mubr.bf16.mxu0 0
    %2826 = vmatmul.mubr.bf16.gmra.mrb[0].mxu0 %v2791
    %v2827 = vpop.f32.mrb[0].mxu0
    %v2828 = vadd.f32 0.0, %v2827
    %v2829 = vpop.f32.mrb[0].mxu0
    %v2830 = vpop.f32.mrb[0].mxu0
    %v2831 = vadd.f32 0.0, %v2830
    %v2832 = vpop.f32.mrb[0].mxu0
    %2833 = vdwg.mxu0
    %v2834 = vadd.f32 %v2771, %v2828
    %v2835 = vadd.f32 %v2772, %v2831
    %2836 = vst [vmem:[#allocation5] sm:$0xff] %v2834
    %2837 = vst [vmem:[#allocation5 + $0x8] sm:$0xff] %v2835
    %v2838 = vld [vmem:[#allocation5] sm:$0xff]
    %v2839 = vld [vmem:[#allocation5 + $0x8] sm:$0xff]
    %v2840 = vmul.f32 %v2706, %v2838
    %v2841 = vmul.f32 %v2710, %v2839
    %2843 = vset.pattern.permute.xlu0 0
    %2844 = vperm.xlu0 %2843, %v88
    %v2845 = vpop.permute.xlu0 %2844
    %2848 = vset.pattern.permute.xlu0 0
    %2849 = vperm.xlu0 %2848, %v89
    %v2850 = vpop.permute.xlu0 %2849
    %v2852 = vmul.f32 %v2845, %v2665
    %v2853 = vmul.f32 %v2850, %v2669
    %v2854 = vadd.f32 %v2840, %v2852
    %v2855 = vadd.f32 %v2841, %v2853
    %v2856 = vmul.f32 %v2854, %v1135
    %v2857 = vmul.f32 %v2855, %v1140
    %v2858 = vadd.f32 %v2759, %v2856
    %v2859 = vadd.f32 %v2760, %v2857
    %2860 = vst [vmem:[#allocation12] sm:$0xff] %v2858
    %2861 = vst [vmem:[#allocation12 + $0x8] sm:$0xff] %v2859
    // Predicated region
    $region168: #{tpu_custom_call.1} parent=1 // pred_check
      _
    $region169: #{tpu_custom_call.1} parent=1 // pred_check_branch
      %2863 = sbr.rel (0) target = $region171
    $region170: #{tpu_custom_call.1} parent=1 // pred_region
      %s2865 = ssub.s32 256, 256
      %2866 = vsyncadd [#allocation8], %s2865
      %s2867 = sshll.u32 [#allocation12], 4
      %s2868 = int_to_ptr.vmem [resolvable:$true] %s2867
      %2873 = dma.vmem_to_hbm [thread:$0]  %s2868, 256, %s14, [#allocation8], 128, 128, 8
    $region171: #{tpu_custom_call.1} parent=1 // pred_fallthru
      _
    // Predicated region
    $region172: #{tpu_custom_call.1} parent=1 // pred_check
      _
    $region173: #{tpu_custom_call.1} parent=1 // pred_check_branch
      %2875 = sbr.rel (0) target = $region175
    $region174: #{tpu_custom_call.1} parent=1 // pred_region
      %2876 = dma.done [#allocation8], 256
    $region175: #{tpu_custom_call.1} parent=1 // pred_fallthru
      _
    %2877 = vsyncpa [#allocation7], 1
    %2878 = vsyncpa [#allocation10], 1
    %2879 = vsyncpa [#allocation8], 1
  %2880 = vsyncmov [#allocation3]
  %s2881 = vpop.sfrf %2880
  %p2882 = scmp.eq.s32.totalorder %s2881, 0
  %p2883 = pneg %p2882
  %2885 = shalt.err (%p2883)
  %s2886 = scalar_lea.sflag [#allocation3], 1
  %2887 = vsyncmov %s2886
  %s2888 = vpop.sfrf %2887
  %p2889 = scmp.eq.s32.totalorder %s2888, 0
  %p2890 = pneg %p2889
  %2892 = shalt.err (%p2890)

</llo_original>
